<compile_context>
chip_gen: v6e
topology: v6e:2x2x1
jax: 0.10.0
libtpu: 0.0.40
codegen_flags: <defaults>
</compile_context>

<pallas_src>
import math

import jax
import jax.numpy as jnp
from jax.experimental import pallas as pl
from jax.experimental.pallas import tpu as pltpu

VOCAB_PAD = 128  # lane-dense padded vocab (token-table rows & LM-head columns)


# ---------------------------------------------------------------------------
# Kernel
# ---------------------------------------------------------------------------
def _layernorm(x, gamma, beta, eps=1e-5):
    mu = jnp.mean(x, axis=-1, keepdims=True)
    d = x - mu
    var = jnp.mean(d * d, axis=-1, keepdims=True)
    return d * jax.lax.rsqrt(var + eps) * gamma + beta


def make_chargpt_kernel(num_heads, n_layers):
    def kernel(idx_ref, tok_ref, pos_ref,
               wqkv_ref, wproj_ref, bproj_ref, ln1g_ref, ln1b_ref,
               w1_ref, b1_ref, w2_ref, b2_ref, ln2g_ref, ln2b_ref,
               lnfg_ref, lnfb_ref, wlm_ref, blm_ref, o_ref):
        """Full CharGPT forward for one batch element (one grid step)."""
        seq = idx_ref.shape[0]
        vpad, C = tok_ref.shape
        H = C // num_heads

        # --- embedding: one-hot (exact in bf16) @ padded bf16 table, + positional ---
        ids = idx_ref[...]                                               # (T, 1) int32
        onehot = (ids == jax.lax.broadcasted_iota(jnp.int32, (seq, vpad), 1)
                  ).astype(jnp.bfloat16)                                 # (T, 128)
        x = jnp.dot(onehot, tok_ref[...], preferred_element_type=jnp.float32)
        x = x + pos_ref[...]                                             # (T, C) f32

        # --- causal additive mask, built once and shared by all layers/heads ---
        row = jax.lax.broadcasted_iota(jnp.int32, (seq, seq), 0)
        col = jax.lax.broadcasted_iota(jnp.int32, (seq, seq), 1)
        neg = jnp.where(col <= row, 0.0, -1e30).astype(jnp.float32)

        for l in range(n_layers):
            # ---- multi-head attention; Q columns of w_qkv carry 1/sqrt(H) already;
            #      output projection folded per head (no lane concatenate) ----
            qkv = jnp.dot(x.astype(jnp.bfloat16), wqkv_ref[l],
                          preferred_element_type=jnp.float32)            # (T, 3C) f32
            wproj = wproj_ref[l]                                         # (C, C) bf16
            att = jnp.zeros((seq, C), jnp.float32)
            for h in range(num_heads):
                q = qkv[:, h * H:(h + 1) * H].astype(jnp.bfloat16)
                k = qkv[:, C + h * H:C + (h + 1) * H].astype(jnp.bfloat16)
                v = qkv[:, 2 * C + h * H:2 * C + (h + 1) * H].astype(jnp.bfloat16)
                s = jax.lax.dot_general(q, k, (((1,), (1,)), ((), ())),
                                        preferred_element_type=jnp.float32) + neg
                m = jnp.max(s, axis=-1, keepdims=True)
                p = jnp.exp(s - m)
                p = p * pl.reciprocal(jnp.sum(p, axis=-1, keepdims=True), approx=True)
                hv = jnp.dot(p.astype(jnp.bfloat16), v,
                             preferred_element_type=jnp.float32)         # (T, H)
                att = att + jnp.dot(hv.astype(jnp.bfloat16),
                                    wproj[h * H:(h + 1) * H, :],
                                    preferred_element_type=jnp.float32)  # (T, C)
            x = _layernorm(x + att + bproj_ref[l], ln1g_ref[l], ln1b_ref[l])

            # ---- feed-forward (ReLU), residual, LayerNorm ----
            hdn = jnp.dot(x.astype(jnp.bfloat16), w1_ref[l],
                          preferred_element_type=jnp.float32) + b1_ref[l]
            hdn = jnp.maximum(hdn, 0.0)
            y = jnp.dot(hdn.astype(jnp.bfloat16), w2_ref[l],
                        preferred_element_type=jnp.float32) + b2_ref[l]
            x = _layernorm(x + y, ln2g_ref[l], ln2b_ref[l])

        # ---- final LN + lane-dense (padded-vocab) LM head: full 128-wide stores ----
        xn = _layernorm(x, lnfg_ref[...], lnfb_ref[...])
        o_ref[...] = jnp.dot(xn.astype(jnp.bfloat16), wlm_ref[...],
                             preferred_element_type=jnp.float32) + blm_ref[...]
    return kernel


# ---------------------------------------------------------------------------
# Wrapper (single pallas_call for the whole forward pass)
# ---------------------------------------------------------------------------
def char_gpt_forward(idx, params, *, num_heads):
    """Pallas forward of CharGPT.forward(idx, targets=None) -> logits (B, T, vocab)."""
    B, T = idx.shape
    C = params["pos_table"].shape[1]
    layers = params["layers"]
    L = len(layers)
    vocab = params["w_lm"].shape[1]
    rows = B * T

    # Lane-dense padding (free at these sizes; padded logits sliced off below).
    tok_pad = jnp.zeros((VOCAB_PAD, C), jnp.bfloat16).at[:vocab, :].set(
        params["tok_table"].astype(jnp.bfloat16))
    wlm_pad = jnp.zeros((C, VOCAB_PAD), jnp.bfloat16).at[:, :vocab].set(params["w_lm"])
    blm_pad = jnp.zeros((1, VOCAB_PAD), jnp.float32).at[:, :vocab].set(params["b_lm"])
    pos = params["pos_table"][:T]

    def stack(name):
        return jnp.stack([lyr[name] for lyr in layers])

    wqkv_all, wproj_all, bproj_all = stack("w_qkv"), stack("w_proj"), stack("b_proj")
    ln1g_all, ln1b_all = stack("ln1_g"), stack("ln1_b")
    w1_all, b1_all = stack("w1"), stack("b1")
    w2_all, b2_all = stack("w2"), stack("b2")
    ln2g_all, ln2b_all = stack("ln2_g"), stack("ln2_b")

    def full(arr):
        # Whole-array block, constant index_map: weight blocks are grid-invariant.
        nd = arr.ndim
        return pl.BlockSpec(arr.shape, lambda b, _nd=nd: (0,) * _nd)

    in_specs = [
        pl.BlockSpec((T, 1), lambda b: (b, 0)),        # token ids of batch element b
        full(tok_pad), full(pos),
        full(wqkv_all), full(wproj_all), full(bproj_all), full(ln1g_all), full(ln1b_all),
        full(w1_all), full(b1_all), full(w2_all), full(b2_all),
        full(ln2g_all), full(ln2b_all),
        full(params["lnf_g"]), full(params["lnf_b"]), full(wlm_pad), full(blm_pad),
    ]

    out = pl.pallas_call(
        make_chargpt_kernel(num_heads, L),
        grid=(B,),
        in_specs=in_specs,
        out_specs=pl.BlockSpec((T, VOCAB_PAD), lambda b: (b, 0)),
        out_shape=jax.ShapeDtypeStruct((rows, VOCAB_PAD), jnp.float32),
        compiler_params=pltpu.CompilerParams(dimension_semantics=("parallel",)),
    )(idx.reshape(rows, 1).astype(jnp.int32),
      tok_pad, pos,
      wqkv_all, wproj_all, bproj_all, ln1g_all, ln1b_all,
      w1_all, b1_all, w2_all, b2_all, ln2g_all, ln2b_all,
      params["lnf_g"], params["lnf_b"], wlm_pad, blm_pad)

    return out.reshape(B, T, VOCAB_PAD)[:, :, :vocab]


# ---------------------------------------------------------------------------
# Pure-JAX reference (same bf16-operand / f32-accumulation strategy)
# ---------------------------------------------------------------------------
def _mm(a, w):
    return jnp.einsum("...k,kn->...n", a.astype(jnp.bfloat16), w,
                      preferred_element_type=jnp.float32)


def _ref_layernorm(x, g, b, eps=1e-5):
    mu = jnp.mean(x, axis=-1, keepdims=True)
    d = x - mu
    var = jnp.mean(d * d, axis=-1, keepdims=True)
    return d * jax.lax.rsqrt(var + eps) * g + b


def _ref_attention(x, layer, num_heads):
    B, T, C = x.shape
    H = C // num_heads
    qkv = _mm(x, layer["w_qkv"])            # Q columns already carry the 1/sqrt(H) scale
    mask = jnp.tril(jnp.ones((T, T), dtype=bool))
    outs = []
    for h in range(num_heads):
        qh = qkv[..., h * H:(h + 1) * H].astype(jnp.bfloat16)
        kh = qkv[..., C + h * H:C + (h + 1) * H].astype(jnp.bfloat16)
        vh = qkv[..., 2 * C + h * H:2 * C + (h + 1) * H].astype(jnp.bfloat16)
        s = jnp.einsum("btd,bsd->bts", qh, kh, preferred_element_type=jnp.float32)
        s = jnp.where(mask, s, jnp.float32(-1e30))
        p = jax.nn.softmax(s, axis=-1)
        outs.append(jnp.einsum("bts,bsd->btd", p.astype(jnp.bfloat16), vh,
                               preferred_element_type=jnp.float32))
    att = jnp.concatenate(outs, axis=-1)
    return _mm(att, layer["w_proj"]) + layer["b_proj"]


def _ref_ffn(x, layer):
    h = jnp.maximum(_mm(x, layer["w1"]) + layer["b1"], 0.0)
    return _mm(h, layer["w2"]) + layer["b2"]


def ref_char_gpt(idx, params, num_heads):
    B, T = idx.shape
    tok = params["tok_table"].astype(jnp.bfloat16).astype(jnp.float32)[idx]
    x = tok + params["pos_table"][:T][None]
    for layer in params["layers"]:
        x = x + _ref_attention(x, layer, num_heads)
        x = _ref_layernorm(x, layer["ln1_g"], layer["ln1_b"])
        x = x + _ref_ffn(x, layer)
        x = _ref_layernorm(x, layer["ln2_g"], layer["ln2_b"])
    x = _ref_layernorm(x, params["lnf_g"], params["lnf_b"])
    return _mm(x, params["w_lm"]) + params["b_lm"]


# ---------------------------------------------------------------------------
# Parameter init (deterministic; weights stored (in, out) so kernels do x @ W).
# The attention scale 1/sqrt(head_size) is folded into the Q columns of w_qkv.
# ---------------------------------------------------------------------------
def _linear_w(key, fan_in, fan_out):
    bound = 1.0 / math.sqrt(fan_in)
    return jax.random.uniform(key, (fan_in, fan_out), minval=-bound, maxval=bound,
                              dtype=jnp.float32)


def init_params(key, *, vocab_size, n_layers, block_size, n_embed, num_heads, wide_factor):
    C = n_embed
    H = C // num_heads
    hidden = wide_factor * C
    k_tok, k_pos, k_lm, *k_layers = jax.random.split(key, 3 + n_layers)
    kw, kb = jax.random.split(k_lm)
    params = {
        "tok_table": 0.02 * jax.random.normal(k_tok, (vocab_size, C), jnp.float32),
        "pos_table": 0.02 * jax.random.normal(k_pos, (block_size, C), jnp.float32),
        "lnf_g": jnp.ones((1, C), jnp.float32),
        "lnf_b": jnp.zeros((1, C), jnp.float32),
        "w_lm": _linear_w(kw, C, vocab_size).astype(jnp.bfloat16),
        "b_lm": 0.02 * jax.random.normal(kb, (1, vocab_size), jnp.float32),
        "layers": [],
    }
    for kl in k_layers:
        ks = jax.random.split(kl, 12)
        w_qkv = _linear_w(ks[0], C, 3 * C)                    # [Q_all_heads | K | V]
        w_qkv = w_qkv.at[:, :C].multiply(1.0 / math.sqrt(H))  # fold attention scale
        params["layers"].append({
            "w_qkv": w_qkv.astype(jnp.bfloat16),
            "w_proj": _linear_w(ks[1], C, C).astype(jnp.bfloat16),
            "b_proj": 0.02 * jax.random.normal(ks[2], (1, C), jnp.float32),
            "ln1_g": 1.0 + 0.1 * jax.random.normal(ks[3], (1, C), jnp.float32),
            "ln1_b": 0.1 * jax.random.normal(ks[4], (1, C), jnp.float32),
            "w1": _linear_w(ks[5], C, hidden).astype(jnp.bfloat16),
            "b1": 0.02 * jax.random.normal(ks[6], (1, hidden), jnp.float32),
            "w2": _linear_w(ks[7], hidden, C).astype(jnp.bfloat16),
            "b2": 0.02 * jax.random.normal(ks[8], (1, C), jnp.float32),
            "ln2_g": 1.0 + 0.1 * jax.random.normal(ks[9], (1, C), jnp.float32),
            "ln2_b": 0.1 * jax.random.normal(ks[10], (1, C), jnp.float32),
        })
    return params


if __name__ == "__main__":
    # Small shapes consistent with CharGPT: vocab=65, 2 layers, block_size(T)=32,
    # n_embed(C)=128 (lane-dense), 4 heads (head_size=32), wide_factor=4, batch=2.
    vocab_size = 65
    n_layers = 2
    block_size = 32
    n_embed = 128
    num_heads = 4
    wide_factor = 4
    batch = 2

    key = jax.random.PRNGKey(0)
    k_params, k_idx = jax.random.split(key)
    params = init_params(k_params, vocab_size=vocab_size, n_layers=n_layers,
                         block_size=block_size, n_embed=n_embed,
                         num_heads=num_heads, wide_factor=wide_factor)
    idx = jax.random.randint(k_idx, (batch, block_size), 0, vocab_size, dtype=jnp.int32)

    logits = char_gpt_forward(idx, params, num_heads=num_heads)
    logits = jax.block_until_ready(logits)

    ref = ref_char_gpt(idx, params, num_heads)
    assert logits.shape == (batch, block_size, vocab_size), logits.shape
    max_err = float(jnp.max(jnp.abs(logits - ref)))
    assert jnp.allclose(logits, ref, atol=2e-2, rtol=2e-2), f"max abs err {max_err}"
    print("KERNEL_OK")
</pallas_src>

<mosaic_0001>
module attributes {stable_mosaic.version = 11 : i64} {
  func.func @kernel(%arg0: i32, %arg1: memref<32x1xi32, #tpu.memory_space<vmem>>, %arg2: memref<128x128xbf16, #tpu.memory_space<vmem>>, %arg3: memref<32x128xf32, #tpu.memory_space<vmem>>, %arg4: memref<2x128x384xbf16, #tpu.memory_space<vmem>>, %arg5: memref<2x128x128xbf16, #tpu.memory_space<vmem>>, %arg6: memref<2x1x128xf32, #tpu.memory_space<vmem>>, %arg7: memref<2x1x128xf32, #tpu.memory_space<vmem>>, %arg8: memref<2x1x128xf32, #tpu.memory_space<vmem>>, %arg9: memref<2x128x512xbf16, #tpu.memory_space<vmem>>, %arg10: memref<2x1x512xf32, #tpu.memory_space<vmem>>, %arg11: memref<2x512x128xbf16, #tpu.memory_space<vmem>>, %arg12: memref<2x1x128xf32, #tpu.memory_space<vmem>>, %arg13: memref<2x1x128xf32, #tpu.memory_space<vmem>>, %arg14: memref<2x1x128xf32, #tpu.memory_space<vmem>>, %arg15: memref<1x128xf32, #tpu.memory_space<vmem>>, %arg16: memref<1x128xf32, #tpu.memory_space<vmem>>, %arg17: memref<128x128xbf16, #tpu.memory_space<vmem>>, %arg18: memref<1x128xf32, #tpu.memory_space<vmem>>, %arg19: memref<32x128xf32, #tpu.memory_space<vmem>>) attributes {dimension_semantics = [#tpu.dimension_semantics<parallel>], iteration_bounds = array<i64: 2>, scalar_prefetch = 0 : i64, scratch_operands = 0 : i64, tpu.core_type = #tpu.core_type<tc>, window_params = [{transform_indices = @transform_0, window_bounds = array<i64: 32, 1>}, {pipeline_mode = #tpu.pipeline_mode<synchronous>, transform_indices = @transform_1, window_bounds = array<i64: 128, 128>}, {pipeline_mode = #tpu.pipeline_mode<synchronous>, transform_indices = @transform_2, window_bounds = array<i64: 32, 128>}, {pipeline_mode = #tpu.pipeline_mode<synchronous>, transform_indices = @transform_3, window_bounds = array<i64: 2, 128, 384>}, {pipeline_mode = #tpu.pipeline_mode<synchronous>, transform_indices = @transform_4, window_bounds = array<i64: 2, 128, 128>}, {pipeline_mode = #tpu.pipeline_mode<synchronous>, transform_indices = @transform_5, window_bounds = array<i64: 2, 1, 128>}, {pipeline_mode = #tpu.pipeline_mode<synchronous>, transform_indices = @transform_6, window_bounds = array<i64: 2, 1, 128>}, {pipeline_mode = #tpu.pipeline_mode<synchronous>, transform_indices = @transform_7, window_bounds = array<i64: 2, 1, 128>}, {pipeline_mode = #tpu.pipeline_mode<synchronous>, transform_indices = @transform_8, window_bounds = array<i64: 2, 128, 512>}, {pipeline_mode = #tpu.pipeline_mode<synchronous>, transform_indices = @transform_9, window_bounds = array<i64: 2, 1, 512>}, {pipeline_mode = #tpu.pipeline_mode<synchronous>, transform_indices = @transform_10, window_bounds = array<i64: 2, 512, 128>}, {pipeline_mode = #tpu.pipeline_mode<synchronous>, transform_indices = @transform_11, window_bounds = array<i64: 2, 1, 128>}, {pipeline_mode = #tpu.pipeline_mode<synchronous>, transform_indices = @transform_12, window_bounds = array<i64: 2, 1, 128>}, {pipeline_mode = #tpu.pipeline_mode<synchronous>, transform_indices = @transform_13, window_bounds = array<i64: 2, 1, 128>}, {pipeline_mode = #tpu.pipeline_mode<synchronous>, transform_indices = @transform_14, window_bounds = array<i64: 1, 128>}, {pipeline_mode = #tpu.pipeline_mode<synchronous>, transform_indices = @transform_15, window_bounds = array<i64: 1, 128>}, {pipeline_mode = #tpu.pipeline_mode<synchronous>, transform_indices = @transform_16, window_bounds = array<i64: 128, 128>}, {pipeline_mode = #tpu.pipeline_mode<synchronous>, transform_indices = @transform_17, window_bounds = array<i64: 1, 128>}, {transform_indices = @transform_18, window_bounds = array<i64: 32, 128>}]} {
    %c0 = arith.constant 0 : index
    %c0_0 = arith.constant 0 : index
    %0 = vector.load %arg1[%c0, %c0_0] : memref<32x1xi32, #tpu.memory_space<vmem>>, vector<32x1xi32>
    %1 = tpu.iota {dimensions = array<i32: 1>} : vector<32x128xi32>
    %2 = vector.broadcast %0 : vector<32x1xi32> to vector<32x128xi32>
    %3 = arith.cmpi eq, %2, %1 : vector<32x128xi32>
    %4 = arith.extui %3 : vector<32x128xi1> to vector<32x128xi32>
    %5 = arith.sitofp %4 : vector<32x128xi32> to vector<32x128xf32>
    %6 = arith.truncf %5 : vector<32x128xf32> to vector<32x128xbf16>
    %c0_1 = arith.constant 0 : index
    %c0_2 = arith.constant 0 : index
    %7 = vector.load %arg2[%c0_1, %c0_2] : memref<128x128xbf16, #tpu.memory_space<vmem>>, vector<128x128xbf16>
    %cst = arith.constant dense<0.000000e+00> : vector<32x128xf32>
    %8 = tpu.matmul %6, %7, %cst {dimension_numbers = #tpu.dot_dimension_numbers<[1], [0], [0], [1], [0, 0, 1, 1], [], []>} : vector<32x128xbf16>, vector<128x128xbf16>, vector<32x128xf32> -> vector<32x128xf32>
    %c0_3 = arith.constant 0 : index
    %c0_4 = arith.constant 0 : index
    %9 = vector.load %arg3[%c0_3, %c0_4] : memref<32x128xf32, #tpu.memory_space<vmem>>, vector<32x128xf32>
    %10 = arith.addf %8, %9 : vector<32x128xf32>
    %11 = tpu.iota {dimensions = array<i32: 0>} : vector<32x32xi32>
    %12 = tpu.iota {dimensions = array<i32: 1>} : vector<32x32xi32>
    %13 = arith.cmpi sle, %12, %11 : vector<32x32xi32>
    %cst_5 = arith.constant 0.000000e+00 : f32
    %cst_6 = arith.constant -1.000000e+30 : f32
    %14 = vector.broadcast %cst_5 : f32 to vector<32x32xf32>
    %15 = vector.broadcast %cst_6 : f32 to vector<32x32xf32>
    %16 = arith.select %13, %14, %15 : vector<32x32xi1>, vector<32x32xf32>
    %17 = arith.truncf %10 : vector<32x128xf32> to vector<32x128xbf16>
    %c0_7 = arith.constant 0 : index
    %c0_8 = arith.constant 0 : index
    %c0_9 = arith.constant 0 : index
    %18 = vector.load %arg4[%c0_7, %c0_8, %c0_9] : memref<2x128x384xbf16, #tpu.memory_space<vmem>>, vector<1x128x384xbf16>
    %19 = vector.shape_cast %18 : vector<1x128x384xbf16> to vector<128x384xbf16>
    %cst_10 = arith.constant dense<0.000000e+00> : vector<32x384xf32>
    %20 = tpu.matmul %17, %19, %cst_10 {dimension_numbers = #tpu.dot_dimension_numbers<[1], [0], [0], [1], [0, 0, 1, 1], [], []>} : vector<32x128xbf16>, vector<128x384xbf16>, vector<32x384xf32> -> vector<32x384xf32>
    %c0_11 = arith.constant 0 : index
    %c0_12 = arith.constant 0 : index
    %c0_13 = arith.constant 0 : index
    %21 = vector.load %arg5[%c0_11, %c0_12, %c0_13] : memref<2x128x128xbf16, #tpu.memory_space<vmem>>, vector<1x128x128xbf16>
    %22 = vector.shape_cast %21 : vector<1x128x128xbf16> to vector<128x128xbf16>
    %cst_14 = arith.constant 0.000000e+00 : f32
    %23 = vector.broadcast %cst_14 : f32 to vector<32x128xf32>
    %24 = vector.extract_strided_slice %20 {offsets = [0, 0], sizes = [32, 32], strides = [1, 1]} : vector<32x384xf32> to vector<32x32xf32>
    %25 = arith.truncf %24 : vector<32x32xf32> to vector<32x32xbf16>
    %26 = vector.extract_strided_slice %20 {offsets = [0, 128], sizes = [32, 32], strides = [1, 1]} : vector<32x384xf32> to vector<32x32xf32>
    %27 = arith.truncf %26 : vector<32x32xf32> to vector<32x32xbf16>
    %28 = vector.extract_strided_slice %20 {offsets = [0, 256], sizes = [32, 32], strides = [1, 1]} : vector<32x384xf32> to vector<32x32xf32>
    %29 = arith.truncf %28 : vector<32x32xf32> to vector<32x32xbf16>
    %cst_15 = arith.constant dense<0.000000e+00> : vector<32x32xf32>
    %30 = tpu.matmul %25, %27, %cst_15 {dimension_numbers = #tpu.dot_dimension_numbers<[1], [1], [0], [0], [0, 0, 1, 0], [], []>} : vector<32x32xbf16>, vector<32x32xbf16>, vector<32x32xf32> -> vector<32x32xf32>
    %31 = arith.addf %30, %16 : vector<32x32xf32>
    %cst_16 = arith.constant dense<0xFF800000> : vector<32xf32>
    %32 = vector.multi_reduction <maximumf>, %31, %cst_16 [1] : vector<32x32xf32> to vector<32xf32>
    %33 = vector.shape_cast %32 : vector<32xf32> to vector<32x1xf32>
    %34 = vector.broadcast %33 : vector<32x1xf32> to vector<32x32xf32>
    %35 = arith.subf %31, %34 : vector<32x32xf32>
    %36 = math.exp %35 : vector<32x32xf32>
    %cst_17 = arith.constant dense<0.000000e+00> : vector<32xf32>
    %37 = vector.multi_reduction <add>, %36, %cst_17 [1] : vector<32x32xf32> to vector<32xf32>
    %38 = vector.shape_cast %37 : vector<32xf32> to vector<32x1xf32>
    %39 = tpu.reciprocal %38 {approx = true} : vector<32x1xf32> -> vector<32x1xf32>
    %40 = vector.broadcast %39 : vector<32x1xf32> to vector<32x32xf32>
    %41 = arith.mulf %36, %40 : vector<32x32xf32>
    %42 = arith.truncf %41 : vector<32x32xf32> to vector<32x32xbf16>
    %cst_18 = arith.constant dense<0.000000e+00> : vector<32x32xf32>
    %43 = tpu.matmul %42, %29, %cst_18 {dimension_numbers = #tpu.dot_dimension_numbers<[1], [0], [0], [1], [0, 0, 1, 1], [], []>} : vector<32x32xbf16>, vector<32x32xbf16>, vector<32x32xf32> -> vector<32x32xf32>
    %44 = arith.truncf %43 : vector<32x32xf32> to vector<32x32xbf16>
    %45 = vector.extract_strided_slice %22 {offsets = [0, 0], sizes = [32, 128], strides = [1, 1]} : vector<128x128xbf16> to vector<32x128xbf16>
    %cst_19 = arith.constant dense<0.000000e+00> : vector<32x128xf32>
    %46 = tpu.matmul %44, %45, %cst_19 {dimension_numbers = #tpu.dot_dimension_numbers<[1], [0], [0], [1], [0, 0, 1, 1], [], []>} : vector<32x32xbf16>, vector<32x128xbf16>, vector<32x128xf32> -> vector<32x128xf32>
    %47 = arith.addf %23, %46 : vector<32x128xf32>
    %48 = vector.extract_strided_slice %20 {offsets = [0, 32], sizes = [32, 32], strides = [1, 1]} : vector<32x384xf32> to vector<32x32xf32>
    %49 = arith.truncf %48 : vector<32x32xf32> to vector<32x32xbf16>
    %50 = vector.extract_strided_slice %20 {offsets = [0, 160], sizes = [32, 32], strides = [1, 1]} : vector<32x384xf32> to vector<32x32xf32>
    %51 = arith.truncf %50 : vector<32x32xf32> to vector<32x32xbf16>
    %52 = vector.extract_strided_slice %20 {offsets = [0, 288], sizes = [32, 32], strides = [1, 1]} : vector<32x384xf32> to vector<32x32xf32>
    %53 = arith.truncf %52 : vector<32x32xf32> to vector<32x32xbf16>
    %cst_20 = arith.constant dense<0.000000e+00> : vector<32x32xf32>
    %54 = tpu.matmul %49, %51, %cst_20 {dimension_numbers = #tpu.dot_dimension_numbers<[1], [1], [0], [0], [0, 0, 1, 0], [], []>} : vector<32x32xbf16>, vector<32x32xbf16>, vector<32x32xf32> -> vector<32x32xf32>
    %55 = arith.addf %54, %16 : vector<32x32xf32>
    %cst_21 = arith.constant dense<0xFF800000> : vector<32xf32>
    %56 = vector.multi_reduction <maximumf>, %55, %cst_21 [1] : vector<32x32xf32> to vector<32xf32>
    %57 = vector.shape_cast %56 : vector<32xf32> to vector<32x1xf32>
    %58 = vector.broadcast %57 : vector<32x1xf32> to vector<32x32xf32>
    %59 = arith.subf %55, %58 : vector<32x32xf32>
    %60 = math.exp %59 : vector<32x32xf32>
    %cst_22 = arith.constant dense<0.000000e+00> : vector<32xf32>
    %61 = vector.multi_reduction <add>, %60, %cst_22 [1] : vector<32x32xf32> to vector<32xf32>
    %62 = vector.shape_cast %61 : vector<32xf32> to vector<32x1xf32>
    %63 = tpu.reciprocal %62 {approx = true} : vector<32x1xf32> -> vector<32x1xf32>
    %64 = vector.broadcast %63 : vector<32x1xf32> to vector<32x32xf32>
    %65 = arith.mulf %60, %64 : vector<32x32xf32>
    %66 = arith.truncf %65 : vector<32x32xf32> to vector<32x32xbf16>
    %cst_23 = arith.constant dense<0.000000e+00> : vector<32x32xf32>
    %67 = tpu.matmul %66, %53, %cst_23 {dimension_numbers = #tpu.dot_dimension_numbers<[1], [0], [0], [1], [0, 0, 1, 1], [], []>} : vector<32x32xbf16>, vector<32x32xbf16>, vector<32x32xf32> -> vector<32x32xf32>
    %68 = arith.truncf %67 : vector<32x32xf32> to vector<32x32xbf16>
    %69 = vector.extract_strided_slice %22 {offsets = [32, 0], sizes = [32, 128], strides = [1, 1]} : vector<128x128xbf16> to vector<32x128xbf16>
    %cst_24 = arith.constant dense<0.000000e+00> : vector<32x128xf32>
    %70 = tpu.matmul %68, %69, %cst_24 {dimension_numbers = #tpu.dot_dimension_numbers<[1], [0], [0], [1], [0, 0, 1, 1], [], []>} : vector<32x32xbf16>, vector<32x128xbf16>, vector<32x128xf32> -> vector<32x128xf32>
    %71 = arith.addf %47, %70 : vector<32x128xf32>
    %72 = vector.extract_strided_slice %20 {offsets = [0, 64], sizes = [32, 32], strides = [1, 1]} : vector<32x384xf32> to vector<32x32xf32>
    %73 = arith.truncf %72 : vector<32x32xf32> to vector<32x32xbf16>
    %74 = vector.extract_strided_slice %20 {offsets = [0, 192], sizes = [32, 32], strides = [1, 1]} : vector<32x384xf32> to vector<32x32xf32>
    %75 = arith.truncf %74 : vector<32x32xf32> to vector<32x32xbf16>
    %76 = vector.extract_strided_slice %20 {offsets = [0, 320], sizes = [32, 32], strides = [1, 1]} : vector<32x384xf32> to vector<32x32xf32>
    %77 = arith.truncf %76 : vector<32x32xf32> to vector<32x32xbf16>
    %cst_25 = arith.constant dense<0.000000e+00> : vector<32x32xf32>
    %78 = tpu.matmul %73, %75, %cst_25 {dimension_numbers = #tpu.dot_dimension_numbers<[1], [1], [0], [0], [0, 0, 1, 0], [], []>} : vector<32x32xbf16>, vector<32x32xbf16>, vector<32x32xf32> -> vector<32x32xf32>
    %79 = arith.addf %78, %16 : vector<32x32xf32>
    %cst_26 = arith.constant dense<0xFF800000> : vector<32xf32>
    %80 = vector.multi_reduction <maximumf>, %79, %cst_26 [1] : vector<32x32xf32> to vector<32xf32>
    %81 = vector.shape_cast %80 : vector<32xf32> to vector<32x1xf32>
    %82 = vector.broadcast %81 : vector<32x1xf32> to vector<32x32xf32>
    %83 = arith.subf %79, %82 : vector<32x32xf32>
    %84 = math.exp %83 : vector<32x32xf32>
    %cst_27 = arith.constant dense<0.000000e+00> : vector<32xf32>
    %85 = vector.multi_reduction <add>, %84, %cst_27 [1] : vector<32x32xf32> to vector<32xf32>
    %86 = vector.shape_cast %85 : vector<32xf32> to vector<32x1xf32>
    %87 = tpu.reciprocal %86 {approx = true} : vector<32x1xf32> -> vector<32x1xf32>
    %88 = vector.broadcast %87 : vector<32x1xf32> to vector<32x32xf32>
    %89 = arith.mulf %84, %88 : vector<32x32xf32>
    %90 = arith.truncf %89 : vector<32x32xf32> to vector<32x32xbf16>
    %cst_28 = arith.constant dense<0.000000e+00> : vector<32x32xf32>
    %91 = tpu.matmul %90, %77, %cst_28 {dimension_numbers = #tpu.dot_dimension_numbers<[1], [0], [0], [1], [0, 0, 1, 1], [], []>} : vector<32x32xbf16>, vector<32x32xbf16>, vector<32x32xf32> -> vector<32x32xf32>
    %92 = arith.truncf %91 : vector<32x32xf32> to vector<32x32xbf16>
    %93 = vector.extract_strided_slice %22 {offsets = [64, 0], sizes = [32, 128], strides = [1, 1]} : vector<128x128xbf16> to vector<32x128xbf16>
    %cst_29 = arith.constant dense<0.000000e+00> : vector<32x128xf32>
    %94 = tpu.matmul %92, %93, %cst_29 {dimension_numbers = #tpu.dot_dimension_numbers<[1], [0], [0], [1], [0, 0, 1, 1], [], []>} : vector<32x32xbf16>, vector<32x128xbf16>, vector<32x128xf32> -> vector<32x128xf32>
    %95 = arith.addf %71, %94 : vector<32x128xf32>
    %96 = vector.extract_strided_slice %20 {offsets = [0, 96], sizes = [32, 32], strides = [1, 1]} : vector<32x384xf32> to vector<32x32xf32>
    %97 = arith.truncf %96 : vector<32x32xf32> to vector<32x32xbf16>
    %98 = vector.extract_strided_slice %20 {offsets = [0, 224], sizes = [32, 32], strides = [1, 1]} : vector<32x384xf32> to vector<32x32xf32>
    %99 = arith.truncf %98 : vector<32x32xf32> to vector<32x32xbf16>
    %100 = vector.extract_strided_slice %20 {offsets = [0, 352], sizes = [32, 32], strides = [1, 1]} : vector<32x384xf32> to vector<32x32xf32>
    %101 = arith.truncf %100 : vector<32x32xf32> to vector<32x32xbf16>
    %cst_30 = arith.constant dense<0.000000e+00> : vector<32x32xf32>
    %102 = tpu.matmul %97, %99, %cst_30 {dimension_numbers = #tpu.dot_dimension_numbers<[1], [1], [0], [0], [0, 0, 1, 0], [], []>} : vector<32x32xbf16>, vector<32x32xbf16>, vector<32x32xf32> -> vector<32x32xf32>
    %103 = arith.addf %102, %16 : vector<32x32xf32>
    %cst_31 = arith.constant dense<0xFF800000> : vector<32xf32>
    %104 = vector.multi_reduction <maximumf>, %103, %cst_31 [1] : vector<32x32xf32> to vector<32xf32>
    %105 = vector.shape_cast %104 : vector<32xf32> to vector<32x1xf32>
    %106 = vector.broadcast %105 : vector<32x1xf32> to vector<32x32xf32>
    %107 = arith.subf %103, %106 : vector<32x32xf32>
    %108 = math.exp %107 : vector<32x32xf32>
    %cst_32 = arith.constant dense<0.000000e+00> : vector<32xf32>
    %109 = vector.multi_reduction <add>, %108, %cst_32 [1] : vector<32x32xf32> to vector<32xf32>
    %110 = vector.shape_cast %109 : vector<32xf32> to vector<32x1xf32>
    %111 = tpu.reciprocal %110 {approx = true} : vector<32x1xf32> -> vector<32x1xf32>
    %112 = vector.broadcast %111 : vector<32x1xf32> to vector<32x32xf32>
    %113 = arith.mulf %108, %112 : vector<32x32xf32>
    %114 = arith.truncf %113 : vector<32x32xf32> to vector<32x32xbf16>
    %cst_33 = arith.constant dense<0.000000e+00> : vector<32x32xf32>
    %115 = tpu.matmul %114, %101, %cst_33 {dimension_numbers = #tpu.dot_dimension_numbers<[1], [0], [0], [1], [0, 0, 1, 1], [], []>} : vector<32x32xbf16>, vector<32x32xbf16>, vector<32x32xf32> -> vector<32x32xf32>
    %116 = arith.truncf %115 : vector<32x32xf32> to vector<32x32xbf16>
    %117 = vector.extract_strided_slice %22 {offsets = [96, 0], sizes = [32, 128], strides = [1, 1]} : vector<128x128xbf16> to vector<32x128xbf16>
    %cst_34 = arith.constant dense<0.000000e+00> : vector<32x128xf32>
    %118 = tpu.matmul %116, %117, %cst_34 {dimension_numbers = #tpu.dot_dimension_numbers<[1], [0], [0], [1], [0, 0, 1, 1], [], []>} : vector<32x32xbf16>, vector<32x128xbf16>, vector<32x128xf32> -> vector<32x128xf32>
    %119 = arith.addf %95, %118 : vector<32x128xf32>
    %120 = arith.addf %10, %119 : vector<32x128xf32>
    %c0_35 = arith.constant 0 : index
    %c0_36 = arith.constant 0 : index
    %c0_37 = arith.constant 0 : index
    %121 = vector.load %arg6[%c0_35, %c0_36, %c0_37] : memref<2x1x128xf32, #tpu.memory_space<vmem>>, vector<1x1x128xf32>
    %122 = vector.shape_cast %121 : vector<1x1x128xf32> to vector<1x128xf32>
    %123 = vector.broadcast %122 : vector<1x128xf32> to vector<32x128xf32>
    %124 = arith.addf %120, %123 : vector<32x128xf32>
    %c0_38 = arith.constant 0 : index
    %c0_39 = arith.constant 0 : index
    %c0_40 = arith.constant 0 : index
    %125 = vector.load %arg7[%c0_38, %c0_39, %c0_40] : memref<2x1x128xf32, #tpu.memory_space<vmem>>, vector<1x1x128xf32>
    %126 = vector.shape_cast %125 : vector<1x1x128xf32> to vector<1x128xf32>
    %c0_41 = arith.constant 0 : index
    %c0_42 = arith.constant 0 : index
    %c0_43 = arith.constant 0 : index
    %127 = vector.load %arg8[%c0_41, %c0_42, %c0_43] : memref<2x1x128xf32, #tpu.memory_space<vmem>>, vector<1x1x128xf32>
    %128 = vector.shape_cast %127 : vector<1x1x128xf32> to vector<1x128xf32>
    %cst_44 = arith.constant dense<0.000000e+00> : vector<32xf32>
    %129 = vector.multi_reduction <add>, %124, %cst_44 [1] : vector<32x128xf32> to vector<32xf32>
    %130 = vector.shape_cast %129 : vector<32xf32> to vector<32x1xf32>
    %cst_45 = arith.constant 1.280000e+02 : f32
    %131 = vector.broadcast %cst_45 : f32 to vector<32x1xf32>
    %132 = arith.divf %130, %131 : vector<32x1xf32>
    %133 = vector.broadcast %132 : vector<32x1xf32> to vector<32x128xf32>
    %134 = arith.subf %124, %133 : vector<32x128xf32>
    %135 = arith.mulf %134, %134 : vector<32x128xf32>
    %cst_46 = arith.constant dense<0.000000e+00> : vector<32xf32>
    %136 = vector.multi_reduction <add>, %135, %cst_46 [1] : vector<32x128xf32> to vector<32xf32>
    %137 = vector.shape_cast %136 : vector<32xf32> to vector<32x1xf32>
    %cst_47 = arith.constant 1.280000e+02 : f32
    %138 = vector.broadcast %cst_47 : f32 to vector<32x1xf32>
    %139 = arith.divf %137, %138 : vector<32x1xf32>
    %cst_48 = arith.constant 9.99999974E-6 : f32
    %140 = vector.broadcast %cst_48 : f32 to vector<32x1xf32>
    %141 = arith.addf %139, %140 : vector<32x1xf32>
    %142 = math.rsqrt %141 : vector<32x1xf32>
    %143 = vector.broadcast %142 : vector<32x1xf32> to vector<32x128xf32>
    %144 = arith.mulf %134, %143 : vector<32x128xf32>
    %145 = vector.broadcast %126 : vector<1x128xf32> to vector<32x128xf32>
    %146 = arith.mulf %144, %145 : vector<32x128xf32>
    %147 = vector.broadcast %128 : vector<1x128xf32> to vector<32x128xf32>
    %148 = arith.addf %146, %147 : vector<32x128xf32>
    %149 = arith.truncf %148 : vector<32x128xf32> to vector<32x128xbf16>
    %c0_49 = arith.constant 0 : index
    %c0_50 = arith.constant 0 : index
    %c0_51 = arith.constant 0 : index
    %150 = vector.load %arg9[%c0_49, %c0_50, %c0_51] : memref<2x128x512xbf16, #tpu.memory_space<vmem>>, vector<1x128x512xbf16>
    %151 = vector.shape_cast %150 : vector<1x128x512xbf16> to vector<128x512xbf16>
    %cst_52 = arith.constant dense<0.000000e+00> : vector<32x512xf32>
    %152 = tpu.matmul %149, %151, %cst_52 {dimension_numbers = #tpu.dot_dimension_numbers<[1], [0], [0], [1], [0, 0, 1, 1], [], []>} : vector<32x128xbf16>, vector<128x512xbf16>, vector<32x512xf32> -> vector<32x512xf32>
    %c0_53 = arith.constant 0 : index
    %c0_54 = arith.constant 0 : index
    %c0_55 = arith.constant 0 : index
    %153 = vector.load %arg10[%c0_53, %c0_54, %c0_55] : memref<2x1x512xf32, #tpu.memory_space<vmem>>, vector<1x1x512xf32>
    %154 = vector.shape_cast %153 : vector<1x1x512xf32> to vector<1x512xf32>
    %155 = vector.broadcast %154 : vector<1x512xf32> to vector<32x512xf32>
    %156 = arith.addf %152, %155 : vector<32x512xf32>
    %cst_56 = arith.constant 0.000000e+00 : f32
    %157 = vector.broadcast %cst_56 : f32 to vector<32x512xf32>
    %158 = arith.maximumf %156, %157 : vector<32x512xf32>
    %159 = arith.truncf %158 : vector<32x512xf32> to vector<32x512xbf16>
    %c0_57 = arith.constant 0 : index
    %c0_58 = arith.constant 0 : index
    %c0_59 = arith.constant 0 : index
    %160 = vector.load %arg11[%c0_57, %c0_58, %c0_59] : memref<2x512x128xbf16, #tpu.memory_space<vmem>>, vector<1x512x128xbf16>
    %161 = vector.shape_cast %160 : vector<1x512x128xbf16> to vector<512x128xbf16>
    %cst_60 = arith.constant dense<0.000000e+00> : vector<32x128xf32>
    %162 = tpu.matmul %159, %161, %cst_60 {dimension_numbers = #tpu.dot_dimension_numbers<[1], [0], [0], [1], [0, 0, 1, 1], [], []>} : vector<32x512xbf16>, vector<512x128xbf16>, vector<32x128xf32> -> vector<32x128xf32>
    %c0_61 = arith.constant 0 : index
    %c0_62 = arith.constant 0 : index
    %c0_63 = arith.constant 0 : index
    %163 = vector.load %arg12[%c0_61, %c0_62, %c0_63] : memref<2x1x128xf32, #tpu.memory_space<vmem>>, vector<1x1x128xf32>
    %164 = vector.shape_cast %163 : vector<1x1x128xf32> to vector<1x128xf32>
    %165 = vector.broadcast %164 : vector<1x128xf32> to vector<32x128xf32>
    %166 = arith.addf %162, %165 : vector<32x128xf32>
    %167 = arith.addf %148, %166 : vector<32x128xf32>
    %c0_64 = arith.constant 0 : index
    %c0_65 = arith.constant 0 : index
    %c0_66 = arith.constant 0 : index
    %168 = vector.load %arg13[%c0_64, %c0_65, %c0_66] : memref<2x1x128xf32, #tpu.memory_space<vmem>>, vector<1x1x128xf32>
    %169 = vector.shape_cast %168 : vector<1x1x128xf32> to vector<1x128xf32>
    %c0_67 = arith.constant 0 : index
    %c0_68 = arith.constant 0 : index
    %c0_69 = arith.constant 0 : index
    %170 = vector.load %arg14[%c0_67, %c0_68, %c0_69] : memref<2x1x128xf32, #tpu.memory_space<vmem>>, vector<1x1x128xf32>
    %171 = vector.shape_cast %170 : vector<1x1x128xf32> to vector<1x128xf32>
    %cst_70 = arith.constant dense<0.000000e+00> : vector<32xf32>
    %172 = vector.multi_reduction <add>, %167, %cst_70 [1] : vector<32x128xf32> to vector<32xf32>
    %173 = vector.shape_cast %172 : vector<32xf32> to vector<32x1xf32>
    %cst_71 = arith.constant 1.280000e+02 : f32
    %174 = vector.broadcast %cst_71 : f32 to vector<32x1xf32>
    %175 = arith.divf %173, %174 : vector<32x1xf32>
    %176 = vector.broadcast %175 : vector<32x1xf32> to vector<32x128xf32>
    %177 = arith.subf %167, %176 : vector<32x128xf32>
    %178 = arith.mulf %177, %177 : vector<32x128xf32>
    %cst_72 = arith.constant dense<0.000000e+00> : vector<32xf32>
    %179 = vector.multi_reduction <add>, %178, %cst_72 [1] : vector<32x128xf32> to vector<32xf32>
    %180 = vector.shape_cast %179 : vector<32xf32> to vector<32x1xf32>
    %cst_73 = arith.constant 1.280000e+02 : f32
    %181 = vector.broadcast %cst_73 : f32 to vector<32x1xf32>
    %182 = arith.divf %180, %181 : vector<32x1xf32>
    %cst_74 = arith.constant 9.99999974E-6 : f32
    %183 = vector.broadcast %cst_74 : f32 to vector<32x1xf32>
    %184 = arith.addf %182, %183 : vector<32x1xf32>
    %185 = math.rsqrt %184 : vector<32x1xf32>
    %186 = vector.broadcast %185 : vector<32x1xf32> to vector<32x128xf32>
    %187 = arith.mulf %177, %186 : vector<32x128xf32>
    %188 = vector.broadcast %169 : vector<1x128xf32> to vector<32x128xf32>
    %189 = arith.mulf %187, %188 : vector<32x128xf32>
    %190 = vector.broadcast %171 : vector<1x128xf32> to vector<32x128xf32>
    %191 = arith.addf %189, %190 : vector<32x128xf32>
    %192 = arith.truncf %191 : vector<32x128xf32> to vector<32x128xbf16>
    %c1 = arith.constant 1 : index
    %c0_75 = arith.constant 0 : index
    %c0_76 = arith.constant 0 : index
    %193 = vector.load %arg4[%c1, %c0_75, %c0_76] : memref<2x128x384xbf16, #tpu.memory_space<vmem>>, vector<1x128x384xbf16>
    %194 = vector.shape_cast %193 : vector<1x128x384xbf16> to vector<128x384xbf16>
    %cst_77 = arith.constant dense<0.000000e+00> : vector<32x384xf32>
    %195 = tpu.matmul %192, %194, %cst_77 {dimension_numbers = #tpu.dot_dimension_numbers<[1], [0], [0], [1], [0, 0, 1, 1], [], []>} : vector<32x128xbf16>, vector<128x384xbf16>, vector<32x384xf32> -> vector<32x384xf32>
    %c1_78 = arith.constant 1 : index
    %c0_79 = arith.constant 0 : index
    %c0_80 = arith.constant 0 : index
    %196 = vector.load %arg5[%c1_78, %c0_79, %c0_80] : memref<2x128x128xbf16, #tpu.memory_space<vmem>>, vector<1x128x128xbf16>
    %197 = vector.shape_cast %196 : vector<1x128x128xbf16> to vector<128x128xbf16>
    %cst_81 = arith.constant 0.000000e+00 : f32
    %198 = vector.broadcast %cst_81 : f32 to vector<32x128xf32>
    %199 = vector.extract_strided_slice %195 {offsets = [0, 0], sizes = [32, 32], strides = [1, 1]} : vector<32x384xf32> to vector<32x32xf32>
    %200 = arith.truncf %199 : vector<32x32xf32> to vector<32x32xbf16>
    %201 = vector.extract_strided_slice %195 {offsets = [0, 128], sizes = [32, 32], strides = [1, 1]} : vector<32x384xf32> to vector<32x32xf32>
    %202 = arith.truncf %201 : vector<32x32xf32> to vector<32x32xbf16>
    %203 = vector.extract_strided_slice %195 {offsets = [0, 256], sizes = [32, 32], strides = [1, 1]} : vector<32x384xf32> to vector<32x32xf32>
    %204 = arith.truncf %203 : vector<32x32xf32> to vector<32x32xbf16>
    %cst_82 = arith.constant dense<0.000000e+00> : vector<32x32xf32>
    %205 = tpu.matmul %200, %202, %cst_82 {dimension_numbers = #tpu.dot_dimension_numbers<[1], [1], [0], [0], [0, 0, 1, 0], [], []>} : vector<32x32xbf16>, vector<32x32xbf16>, vector<32x32xf32> -> vector<32x32xf32>
    %206 = arith.addf %205, %16 : vector<32x32xf32>
    %cst_83 = arith.constant dense<0xFF800000> : vector<32xf32>
    %207 = vector.multi_reduction <maximumf>, %206, %cst_83 [1] : vector<32x32xf32> to vector<32xf32>
    %208 = vector.shape_cast %207 : vector<32xf32> to vector<32x1xf32>
    %209 = vector.broadcast %208 : vector<32x1xf32> to vector<32x32xf32>
    %210 = arith.subf %206, %209 : vector<32x32xf32>
    %211 = math.exp %210 : vector<32x32xf32>
    %cst_84 = arith.constant dense<0.000000e+00> : vector<32xf32>
    %212 = vector.multi_reduction <add>, %211, %cst_84 [1] : vector<32x32xf32> to vector<32xf32>
    %213 = vector.shape_cast %212 : vector<32xf32> to vector<32x1xf32>
    %214 = tpu.reciprocal %213 {approx = true} : vector<32x1xf32> -> vector<32x1xf32>
    %215 = vector.broadcast %214 : vector<32x1xf32> to vector<32x32xf32>
    %216 = arith.mulf %211, %215 : vector<32x32xf32>
    %217 = arith.truncf %216 : vector<32x32xf32> to vector<32x32xbf16>
    %cst_85 = arith.constant dense<0.000000e+00> : vector<32x32xf32>
    %218 = tpu.matmul %217, %204, %cst_85 {dimension_numbers = #tpu.dot_dimension_numbers<[1], [0], [0], [1], [0, 0, 1, 1], [], []>} : vector<32x32xbf16>, vector<32x32xbf16>, vector<32x32xf32> -> vector<32x32xf32>
    %219 = arith.truncf %218 : vector<32x32xf32> to vector<32x32xbf16>
    %220 = vector.extract_strided_slice %197 {offsets = [0, 0], sizes = [32, 128], strides = [1, 1]} : vector<128x128xbf16> to vector<32x128xbf16>
    %cst_86 = arith.constant dense<0.000000e+00> : vector<32x128xf32>
    %221 = tpu.matmul %219, %220, %cst_86 {dimension_numbers = #tpu.dot_dimension_numbers<[1], [0], [0], [1], [0, 0, 1, 1], [], []>} : vector<32x32xbf16>, vector<32x128xbf16>, vector<32x128xf32> -> vector<32x128xf32>
    %222 = arith.addf %198, %221 : vector<32x128xf32>
    %223 = vector.extract_strided_slice %195 {offsets = [0, 32], sizes = [32, 32], strides = [1, 1]} : vector<32x384xf32> to vector<32x32xf32>
    %224 = arith.truncf %223 : vector<32x32xf32> to vector<32x32xbf16>
    %225 = vector.extract_strided_slice %195 {offsets = [0, 160], sizes = [32, 32], strides = [1, 1]} : vector<32x384xf32> to vector<32x32xf32>
    %226 = arith.truncf %225 : vector<32x32xf32> to vector<32x32xbf16>
    %227 = vector.extract_strided_slice %195 {offsets = [0, 288], sizes = [32, 32], strides = [1, 1]} : vector<32x384xf32> to vector<32x32xf32>
    %228 = arith.truncf %227 : vector<32x32xf32> to vector<32x32xbf16>
    %cst_87 = arith.constant dense<0.000000e+00> : vector<32x32xf32>
    %229 = tpu.matmul %224, %226, %cst_87 {dimension_numbers = #tpu.dot_dimension_numbers<[1], [1], [0], [0], [0, 0, 1, 0], [], []>} : vector<32x32xbf16>, vector<32x32xbf16>, vector<32x32xf32> -> vector<32x32xf32>
    %230 = arith.addf %229, %16 : vector<32x32xf32>
    %cst_88 = arith.constant dense<0xFF800000> : vector<32xf32>
    %231 = vector.multi_reduction <maximumf>, %230, %cst_88 [1] : vector<32x32xf32> to vector<32xf32>
    %232 = vector.shape_cast %231 : vector<32xf32> to vector<32x1xf32>
    %233 = vector.broadcast %232 : vector<32x1xf32> to vector<32x32xf32>
    %234 = arith.subf %230, %233 : vector<32x32xf32>
    %235 = math.exp %234 : vector<32x32xf32>
    %cst_89 = arith.constant dense<0.000000e+00> : vector<32xf32>
    %236 = vector.multi_reduction <add>, %235, %cst_89 [1] : vector<32x32xf32> to vector<32xf32>
    %237 = vector.shape_cast %236 : vector<32xf32> to vector<32x1xf32>
    %238 = tpu.reciprocal %237 {approx = true} : vector<32x1xf32> -> vector<32x1xf32>
    %239 = vector.broadcast %238 : vector<32x1xf32> to vector<32x32xf32>
    %240 = arith.mulf %235, %239 : vector<32x32xf32>
    %241 = arith.truncf %240 : vector<32x32xf32> to vector<32x32xbf16>
    %cst_90 = arith.constant dense<0.000000e+00> : vector<32x32xf32>
    %242 = tpu.matmul %241, %228, %cst_90 {dimension_numbers = #tpu.dot_dimension_numbers<[1], [0], [0], [1], [0, 0, 1, 1], [], []>} : vector<32x32xbf16>, vector<32x32xbf16>, vector<32x32xf32> -> vector<32x32xf32>
    %243 = arith.truncf %242 : vector<32x32xf32> to vector<32x32xbf16>
    %244 = vector.extract_strided_slice %197 {offsets = [32, 0], sizes = [32, 128], strides = [1, 1]} : vector<128x128xbf16> to vector<32x128xbf16>
    %cst_91 = arith.constant dense<0.000000e+00> : vector<32x128xf32>
    %245 = tpu.matmul %243, %244, %cst_91 {dimension_numbers = #tpu.dot_dimension_numbers<[1], [0], [0], [1], [0, 0, 1, 1], [], []>} : vector<32x32xbf16>, vector<32x128xbf16>, vector<32x128xf32> -> vector<32x128xf32>
    %246 = arith.addf %222, %245 : vector<32x128xf32>
    %247 = vector.extract_strided_slice %195 {offsets = [0, 64], sizes = [32, 32], strides = [1, 1]} : vector<32x384xf32> to vector<32x32xf32>
    %248 = arith.truncf %247 : vector<32x32xf32> to vector<32x32xbf16>
    %249 = vector.extract_strided_slice %195 {offsets = [0, 192], sizes = [32, 32], strides = [1, 1]} : vector<32x384xf32> to vector<32x32xf32>
    %250 = arith.truncf %249 : vector<32x32xf32> to vector<32x32xbf16>
    %251 = vector.extract_strided_slice %195 {offsets = [0, 320], sizes = [32, 32], strides = [1, 1]} : vector<32x384xf32> to vector<32x32xf32>
    %252 = arith.truncf %251 : vector<32x32xf32> to vector<32x32xbf16>
    %cst_92 = arith.constant dense<0.000000e+00> : vector<32x32xf32>
    %253 = tpu.matmul %248, %250, %cst_92 {dimension_numbers = #tpu.dot_dimension_numbers<[1], [1], [0], [0], [0, 0, 1, 0], [], []>} : vector<32x32xbf16>, vector<32x32xbf16>, vector<32x32xf32> -> vector<32x32xf32>
    %254 = arith.addf %253, %16 : vector<32x32xf32>
    %cst_93 = arith.constant dense<0xFF800000> : vector<32xf32>
    %255 = vector.multi_reduction <maximumf>, %254, %cst_93 [1] : vector<32x32xf32> to vector<32xf32>
    %256 = vector.shape_cast %255 : vector<32xf32> to vector<32x1xf32>
    %257 = vector.broadcast %256 : vector<32x1xf32> to vector<32x32xf32>
    %258 = arith.subf %254, %257 : vector<32x32xf32>
    %259 = math.exp %258 : vector<32x32xf32>
    %cst_94 = arith.constant dense<0.000000e+00> : vector<32xf32>
    %260 = vector.multi_reduction <add>, %259, %cst_94 [1] : vector<32x32xf32> to vector<32xf32>
    %261 = vector.shape_cast %260 : vector<32xf32> to vector<32x1xf32>
    %262 = tpu.reciprocal %261 {approx = true} : vector<32x1xf32> -> vector<32x1xf32>
    %263 = vector.broadcast %262 : vector<32x1xf32> to vector<32x32xf32>
    %264 = arith.mulf %259, %263 : vector<32x32xf32>
    %265 = arith.truncf %264 : vector<32x32xf32> to vector<32x32xbf16>
    %cst_95 = arith.constant dense<0.000000e+00> : vector<32x32xf32>
    %266 = tpu.matmul %265, %252, %cst_95 {dimension_numbers = #tpu.dot_dimension_numbers<[1], [0], [0], [1], [0, 0, 1, 1], [], []>} : vector<32x32xbf16>, vector<32x32xbf16>, vector<32x32xf32> -> vector<32x32xf32>
    %267 = arith.truncf %266 : vector<32x32xf32> to vector<32x32xbf16>
    %268 = vector.extract_strided_slice %197 {offsets = [64, 0], sizes = [32, 128], strides = [1, 1]} : vector<128x128xbf16> to vector<32x128xbf16>
    %cst_96 = arith.constant dense<0.000000e+00> : vector<32x128xf32>
    %269 = tpu.matmul %267, %268, %cst_96 {dimension_numbers = #tpu.dot_dimension_numbers<[1], [0], [0], [1], [0, 0, 1, 1], [], []>} : vector<32x32xbf16>, vector<32x128xbf16>, vector<32x128xf32> -> vector<32x128xf32>
    %270 = arith.addf %246, %269 : vector<32x128xf32>
    %271 = vector.extract_strided_slice %195 {offsets = [0, 96], sizes = [32, 32], strides = [1, 1]} : vector<32x384xf32> to vector<32x32xf32>
    %272 = arith.truncf %271 : vector<32x32xf32> to vector<32x32xbf16>
    %273 = vector.extract_strided_slice %195 {offsets = [0, 224], sizes = [32, 32], strides = [1, 1]} : vector<32x384xf32> to vector<32x32xf32>
    %274 = arith.truncf %273 : vector<32x32xf32> to vector<32x32xbf16>
    %275 = vector.extract_strided_slice %195 {offsets = [0, 352], sizes = [32, 32], strides = [1, 1]} : vector<32x384xf32> to vector<32x32xf32>
    %276 = arith.truncf %275 : vector<32x32xf32> to vector<32x32xbf16>
    %cst_97 = arith.constant dense<0.000000e+00> : vector<32x32xf32>
    %277 = tpu.matmul %272, %274, %cst_97 {dimension_numbers = #tpu.dot_dimension_numbers<[1], [1], [0], [0], [0, 0, 1, 0], [], []>} : vector<32x32xbf16>, vector<32x32xbf16>, vector<32x32xf32> -> vector<32x32xf32>
    %278 = arith.addf %277, %16 : vector<32x32xf32>
    %cst_98 = arith.constant dense<0xFF800000> : vector<32xf32>
    %279 = vector.multi_reduction <maximumf>, %278, %cst_98 [1] : vector<32x32xf32> to vector<32xf32>
    %280 = vector.shape_cast %279 : vector<32xf32> to vector<32x1xf32>
    %281 = vector.broadcast %280 : vector<32x1xf32> to vector<32x32xf32>
    %282 = arith.subf %278, %281 : vector<32x32xf32>
    %283 = math.exp %282 : vector<32x32xf32>
    %cst_99 = arith.constant dense<0.000000e+00> : vector<32xf32>
    %284 = vector.multi_reduction <add>, %283, %cst_99 [1] : vector<32x32xf32> to vector<32xf32>
    %285 = vector.shape_cast %284 : vector<32xf32> to vector<32x1xf32>
    %286 = tpu.reciprocal %285 {approx = true} : vector<32x1xf32> -> vector<32x1xf32>
    %287 = vector.broadcast %286 : vector<32x1xf32> to vector<32x32xf32>
    %288 = arith.mulf %283, %287 : vector<32x32xf32>
    %289 = arith.truncf %288 : vector<32x32xf32> to vector<32x32xbf16>
    %cst_100 = arith.constant dense<0.000000e+00> : vector<32x32xf32>
    %290 = tpu.matmul %289, %276, %cst_100 {dimension_numbers = #tpu.dot_dimension_numbers<[1], [0], [0], [1], [0, 0, 1, 1], [], []>} : vector<32x32xbf16>, vector<32x32xbf16>, vector<32x32xf32> -> vector<32x32xf32>
    %291 = arith.truncf %290 : vector<32x32xf32> to vector<32x32xbf16>
    %292 = vector.extract_strided_slice %197 {offsets = [96, 0], sizes = [32, 128], strides = [1, 1]} : vector<128x128xbf16> to vector<32x128xbf16>
    %cst_101 = arith.constant dense<0.000000e+00> : vector<32x128xf32>
    %293 = tpu.matmul %291, %292, %cst_101 {dimension_numbers = #tpu.dot_dimension_numbers<[1], [0], [0], [1], [0, 0, 1, 1], [], []>} : vector<32x32xbf16>, vector<32x128xbf16>, vector<32x128xf32> -> vector<32x128xf32>
    %294 = arith.addf %270, %293 : vector<32x128xf32>
    %295 = arith.addf %191, %294 : vector<32x128xf32>
    %c1_102 = arith.constant 1 : index
    %c0_103 = arith.constant 0 : index
    %c0_104 = arith.constant 0 : index
    %296 = vector.load %arg6[%c1_102, %c0_103, %c0_104] : memref<2x1x128xf32, #tpu.memory_space<vmem>>, vector<1x1x128xf32>
    %297 = vector.shape_cast %296 : vector<1x1x128xf32> to vector<1x128xf32>
    %298 = vector.broadcast %297 : vector<1x128xf32> to vector<32x128xf32>
    %299 = arith.addf %295, %298 : vector<32x128xf32>
    %c1_105 = arith.constant 1 : index
    %c0_106 = arith.constant 0 : index
    %c0_107 = arith.constant 0 : index
    %300 = vector.load %arg7[%c1_105, %c0_106, %c0_107] : memref<2x1x128xf32, #tpu.memory_space<vmem>>, vector<1x1x128xf32>
    %301 = vector.shape_cast %300 : vector<1x1x128xf32> to vector<1x128xf32>
    %c1_108 = arith.constant 1 : index
    %c0_109 = arith.constant 0 : index
    %c0_110 = arith.constant 0 : index
    %302 = vector.load %arg8[%c1_108, %c0_109, %c0_110] : memref<2x1x128xf32, #tpu.memory_space<vmem>>, vector<1x1x128xf32>
    %303 = vector.shape_cast %302 : vector<1x1x128xf32> to vector<1x128xf32>
    %cst_111 = arith.constant dense<0.000000e+00> : vector<32xf32>
    %304 = vector.multi_reduction <add>, %299, %cst_111 [1] : vector<32x128xf32> to vector<32xf32>
    %305 = vector.shape_cast %304 : vector<32xf32> to vector<32x1xf32>
    %cst_112 = arith.constant 1.280000e+02 : f32
    %306 = vector.broadcast %cst_112 : f32 to vector<32x1xf32>
    %307 = arith.divf %305, %306 : vector<32x1xf32>
    %308 = vector.broadcast %307 : vector<32x1xf32> to vector<32x128xf32>
    %309 = arith.subf %299, %308 : vector<32x128xf32>
    %310 = arith.mulf %309, %309 : vector<32x128xf32>
    %cst_113 = arith.constant dense<0.000000e+00> : vector<32xf32>
    %311 = vector.multi_reduction <add>, %310, %cst_113 [1] : vector<32x128xf32> to vector<32xf32>
    %312 = vector.shape_cast %311 : vector<32xf32> to vector<32x1xf32>
    %cst_114 = arith.constant 1.280000e+02 : f32
    %313 = vector.broadcast %cst_114 : f32 to vector<32x1xf32>
    %314 = arith.divf %312, %313 : vector<32x1xf32>
    %cst_115 = arith.constant 9.99999974E-6 : f32
    %315 = vector.broadcast %cst_115 : f32 to vector<32x1xf32>
    %316 = arith.addf %314, %315 : vector<32x1xf32>
    %317 = math.rsqrt %316 : vector<32x1xf32>
    %318 = vector.broadcast %317 : vector<32x1xf32> to vector<32x128xf32>
    %319 = arith.mulf %309, %318 : vector<32x128xf32>
    %320 = vector.broadcast %301 : vector<1x128xf32> to vector<32x128xf32>
    %321 = arith.mulf %319, %320 : vector<32x128xf32>
    %322 = vector.broadcast %303 : vector<1x128xf32> to vector<32x128xf32>
    %323 = arith.addf %321, %322 : vector<32x128xf32>
    %324 = arith.truncf %323 : vector<32x128xf32> to vector<32x128xbf16>
    %c1_116 = arith.constant 1 : index
    %c0_117 = arith.constant 0 : index
    %c0_118 = arith.constant 0 : index
    %325 = vector.load %arg9[%c1_116, %c0_117, %c0_118] : memref<2x128x512xbf16, #tpu.memory_space<vmem>>, vector<1x128x512xbf16>
    %326 = vector.shape_cast %325 : vector<1x128x512xbf16> to vector<128x512xbf16>
    %cst_119 = arith.constant dense<0.000000e+00> : vector<32x512xf32>
    %327 = tpu.matmul %324, %326, %cst_119 {dimension_numbers = #tpu.dot_dimension_numbers<[1], [0], [0], [1], [0, 0, 1, 1], [], []>} : vector<32x128xbf16>, vector<128x512xbf16>, vector<32x512xf32> -> vector<32x512xf32>
    %c1_120 = arith.constant 1 : index
    %c0_121 = arith.constant 0 : index
    %c0_122 = arith.constant 0 : index
    %328 = vector.load %arg10[%c1_120, %c0_121, %c0_122] : memref<2x1x512xf32, #tpu.memory_space<vmem>>, vector<1x1x512xf32>
    %329 = vector.shape_cast %328 : vector<1x1x512xf32> to vector<1x512xf32>
    %330 = vector.broadcast %329 : vector<1x512xf32> to vector<32x512xf32>
    %331 = arith.addf %327, %330 : vector<32x512xf32>
    %cst_123 = arith.constant 0.000000e+00 : f32
    %332 = vector.broadcast %cst_123 : f32 to vector<32x512xf32>
    %333 = arith.maximumf %331, %332 : vector<32x512xf32>
    %334 = arith.truncf %333 : vector<32x512xf32> to vector<32x512xbf16>
    %c1_124 = arith.constant 1 : index
    %c0_125 = arith.constant 0 : index
    %c0_126 = arith.constant 0 : index
    %335 = vector.load %arg11[%c1_124, %c0_125, %c0_126] : memref<2x512x128xbf16, #tpu.memory_space<vmem>>, vector<1x512x128xbf16>
    %336 = vector.shape_cast %335 : vector<1x512x128xbf16> to vector<512x128xbf16>
    %cst_127 = arith.constant dense<0.000000e+00> : vector<32x128xf32>
    %337 = tpu.matmul %334, %336, %cst_127 {dimension_numbers = #tpu.dot_dimension_numbers<[1], [0], [0], [1], [0, 0, 1, 1], [], []>} : vector<32x512xbf16>, vector<512x128xbf16>, vector<32x128xf32> -> vector<32x128xf32>
    %c1_128 = arith.constant 1 : index
    %c0_129 = arith.constant 0 : index
    %c0_130 = arith.constant 0 : index
    %338 = vector.load %arg12[%c1_128, %c0_129, %c0_130] : memref<2x1x128xf32, #tpu.memory_space<vmem>>, vector<1x1x128xf32>
    %339 = vector.shape_cast %338 : vector<1x1x128xf32> to vector<1x128xf32>
    %340 = vector.broadcast %339 : vector<1x128xf32> to vector<32x128xf32>
    %341 = arith.addf %337, %340 : vector<32x128xf32>
    %342 = arith.addf %323, %341 : vector<32x128xf32>
    %c1_131 = arith.constant 1 : index
    %c0_132 = arith.constant 0 : index
    %c0_133 = arith.constant 0 : index
    %343 = vector.load %arg13[%c1_131, %c0_132, %c0_133] : memref<2x1x128xf32, #tpu.memory_space<vmem>>, vector<1x1x128xf32>
    %344 = vector.shape_cast %343 : vector<1x1x128xf32> to vector<1x128xf32>
    %c1_134 = arith.constant 1 : index
    %c0_135 = arith.constant 0 : index
    %c0_136 = arith.constant 0 : index
    %345 = vector.load %arg14[%c1_134, %c0_135, %c0_136] : memref<2x1x128xf32, #tpu.memory_space<vmem>>, vector<1x1x128xf32>
    %346 = vector.shape_cast %345 : vector<1x1x128xf32> to vector<1x128xf32>
    %cst_137 = arith.constant dense<0.000000e+00> : vector<32xf32>
    %347 = vector.multi_reduction <add>, %342, %cst_137 [1] : vector<32x128xf32> to vector<32xf32>
    %348 = vector.shape_cast %347 : vector<32xf32> to vector<32x1xf32>
    %cst_138 = arith.constant 1.280000e+02 : f32
    %349 = vector.broadcast %cst_138 : f32 to vector<32x1xf32>
    %350 = arith.divf %348, %349 : vector<32x1xf32>
    %351 = vector.broadcast %350 : vector<32x1xf32> to vector<32x128xf32>
    %352 = arith.subf %342, %351 : vector<32x128xf32>
    %353 = arith.mulf %352, %352 : vector<32x128xf32>
    %cst_139 = arith.constant dense<0.000000e+00> : vector<32xf32>
    %354 = vector.multi_reduction <add>, %353, %cst_139 [1] : vector<32x128xf32> to vector<32xf32>
    %355 = vector.shape_cast %354 : vector<32xf32> to vector<32x1xf32>
    %cst_140 = arith.constant 1.280000e+02 : f32
    %356 = vector.broadcast %cst_140 : f32 to vector<32x1xf32>
    %357 = arith.divf %355, %356 : vector<32x1xf32>
    %cst_141 = arith.constant 9.99999974E-6 : f32
    %358 = vector.broadcast %cst_141 : f32 to vector<32x1xf32>
    %359 = arith.addf %357, %358 : vector<32x1xf32>
    %360 = math.rsqrt %359 : vector<32x1xf32>
    %361 = vector.broadcast %360 : vector<32x1xf32> to vector<32x128xf32>
    %362 = arith.mulf %352, %361 : vector<32x128xf32>
    %363 = vector.broadcast %344 : vector<1x128xf32> to vector<32x128xf32>
    %364 = arith.mulf %362, %363 : vector<32x128xf32>
    %365 = vector.broadcast %346 : vector<1x128xf32> to vector<32x128xf32>
    %366 = arith.addf %364, %365 : vector<32x128xf32>
    %c0_142 = arith.constant 0 : index
    %c0_143 = arith.constant 0 : index
    %367 = vector.load %arg15[%c0_142, %c0_143] : memref<1x128xf32, #tpu.memory_space<vmem>>, vector<1x128xf32>
    %c0_144 = arith.constant 0 : index
    %c0_145 = arith.constant 0 : index
    %368 = vector.load %arg16[%c0_144, %c0_145] : memref<1x128xf32, #tpu.memory_space<vmem>>, vector<1x128xf32>
    %cst_146 = arith.constant dense<0.000000e+00> : vector<32xf32>
    %369 = vector.multi_reduction <add>, %366, %cst_146 [1] : vector<32x128xf32> to vector<32xf32>
    %370 = vector.shape_cast %369 : vector<32xf32> to vector<32x1xf32>
    %cst_147 = arith.constant 1.280000e+02 : f32
    %371 = vector.broadcast %cst_147 : f32 to vector<32x1xf32>
    %372 = arith.divf %370, %371 : vector<32x1xf32>
    %373 = vector.broadcast %372 : vector<32x1xf32> to vector<32x128xf32>
    %374 = arith.subf %366, %373 : vector<32x128xf32>
    %375 = arith.mulf %374, %374 : vector<32x128xf32>
    %cst_148 = arith.constant dense<0.000000e+00> : vector<32xf32>
    %376 = vector.multi_reduction <add>, %375, %cst_148 [1] : vector<32x128xf32> to vector<32xf32>
    %377 = vector.shape_cast %376 : vector<32xf32> to vector<32x1xf32>
    %cst_149 = arith.constant 1.280000e+02 : f32
    %378 = vector.broadcast %cst_149 : f32 to vector<32x1xf32>
    %379 = arith.divf %377, %378 : vector<32x1xf32>
    %cst_150 = arith.constant 9.99999974E-6 : f32
    %380 = vector.broadcast %cst_150 : f32 to vector<32x1xf32>
    %381 = arith.addf %379, %380 : vector<32x1xf32>
    %382 = math.rsqrt %381 : vector<32x1xf32>
    %383 = vector.broadcast %382 : vector<32x1xf32> to vector<32x128xf32>
    %384 = arith.mulf %374, %383 : vector<32x128xf32>
    %385 = vector.broadcast %367 : vector<1x128xf32> to vector<32x128xf32>
    %386 = arith.mulf %384, %385 : vector<32x128xf32>
    %387 = vector.broadcast %368 : vector<1x128xf32> to vector<32x128xf32>
    %388 = arith.addf %386, %387 : vector<32x128xf32>
    %389 = arith.truncf %388 : vector<32x128xf32> to vector<32x128xbf16>
    %c0_151 = arith.constant 0 : index
    %c0_152 = arith.constant 0 : index
    %390 = vector.load %arg17[%c0_151, %c0_152] : memref<128x128xbf16, #tpu.memory_space<vmem>>, vector<128x128xbf16>
    %cst_153 = arith.constant dense<0.000000e+00> : vector<32x128xf32>
    %391 = tpu.matmul %389, %390, %cst_153 {dimension_numbers = #tpu.dot_dimension_numbers<[1], [0], [0], [1], [0, 0, 1, 1], [], []>} : vector<32x128xbf16>, vector<128x128xbf16>, vector<32x128xf32> -> vector<32x128xf32>
    %c0_154 = arith.constant 0 : index
    %c0_155 = arith.constant 0 : index
    %392 = vector.load %arg18[%c0_154, %c0_155] : memref<1x128xf32, #tpu.memory_space<vmem>>, vector<1x128xf32>
    %393 = vector.broadcast %392 : vector<1x128xf32> to vector<32x128xf32>
    %394 = arith.addf %391, %393 : vector<32x128xf32>
    %c0_156 = arith.constant 0 : index
    %c0_157 = arith.constant 0 : index
    %395 = vector.load %arg19[%c0_156, %c0_157] : memref<32x128xf32, #tpu.memory_space<vmem>>, vector<32x128xf32>
    tpu.vector_store %arg19[%c0_156, %c0_157], %394 {strides = array<i32>} : memref<32x128xf32, #tpu.memory_space<vmem>>, vector<32x128xf32>,
    return
  }
  func.func @transform_0(%arg0: i32) -> (i32, i32) {
    %c0_i32 = arith.constant 0 : i32
    %c0_i32_0 = arith.constant 0 : i32
    return %arg0, %c0_i32 : i32, i32
  }
  func.func @transform_1(%arg0: i32) -> (i32, i32) {
    %c0_i32 = arith.constant 0 : i32
    %c0_i32_0 = arith.constant 0 : i32
    %c0_i32_1 = arith.constant 0 : i32
    return %c0_i32, %c0_i32_0 : i32, i32
  }
  func.func @transform_2(%arg0: i32) -> (i32, i32) {
    %c0_i32 = arith.constant 0 : i32
    %c0_i32_0 = arith.constant 0 : i32
    %c0_i32_1 = arith.constant 0 : i32
    return %c0_i32, %c0_i32_0 : i32, i32
  }
  func.func @transform_3(%arg0: i32) -> (i32, i32, i32) {
    %c0_i32 = arith.constant 0 : i32
    %c0_i32_0 = arith.constant 0 : i32
    %c0_i32_1 = arith.constant 0 : i32
    %c0_i32_2 = arith.constant 0 : i32
    return %c0_i32, %c0_i32_0, %c0_i32_1 : i32, i32, i32
  }
  func.func @transform_4(%arg0: i32) -> (i32, i32, i32) {
    %c0_i32 = arith.constant 0 : i32
    %c0_i32_0 = arith.constant 0 : i32
    %c0_i32_1 = arith.constant 0 : i32
    %c0_i32_2 = arith.constant 0 : i32
    return %c0_i32, %c0_i32_0, %c0_i32_1 : i32, i32, i32
  }
  func.func @transform_5(%arg0: i32) -> (i32, i32, i32) {
    %c0_i32 = arith.constant 0 : i32
    %c0_i32_0 = arith.constant 0 : i32
    %c0_i32_1 = arith.constant 0 : i32
    %c0_i32_2 = arith.constant 0 : i32
    return %c0_i32, %c0_i32_0, %c0_i32_1 : i32, i32, i32
  }
  func.func @transform_6(%arg0: i32) -> (i32, i32, i32) {
    %c0_i32 = arith.constant 0 : i32
    %c0_i32_0 = arith.constant 0 : i32
    %c0_i32_1 = arith.constant 0 : i32
    %c0_i32_2 = arith.constant 0 : i32
    return %c0_i32, %c0_i32_0, %c0_i32_1 : i32, i32, i32
  }
  func.func @transform_7(%arg0: i32) -> (i32, i32, i32) {
    %c0_i32 = arith.constant 0 : i32
    %c0_i32_0 = arith.constant 0 : i32
    %c0_i32_1 = arith.constant 0 : i32
    %c0_i32_2 = arith.constant 0 : i32
    return %c0_i32, %c0_i32_0, %c0_i32_1 : i32, i32, i32
  }
  func.func @transform_8(%arg0: i32) -> (i32, i32, i32) {
    %c0_i32 = arith.constant 0 : i32
    %c0_i32_0 = arith.constant 0 : i32
    %c0_i32_1 = arith.constant 0 : i32
    %c0_i32_2 = arith.constant 0 : i32
    return %c0_i32, %c0_i32_0, %c0_i32_1 : i32, i32, i32
  }
  func.func @transform_9(%arg0: i32) -> (i32, i32, i32) {
    %c0_i32 = arith.constant 0 : i32
    %c0_i32_0 = arith.constant 0 : i32
    %c0_i32_1 = arith.constant 0 : i32
    %c0_i32_2 = arith.constant 0 : i32
    return %c0_i32, %c0_i32_0, %c0_i32_1 : i32, i32, i32
  }
  func.func @transform_10(%arg0: i32) -> (i32, i32, i32) {
    %c0_i32 = arith.constant 0 : i32
    %c0_i32_0 = arith.constant 0 : i32
    %c0_i32_1 = arith.constant 0 : i32
    %c0_i32_2 = arith.constant 0 : i32
    return %c0_i32, %c0_i32_0, %c0_i32_1 : i32, i32, i32
  }
  func.func @transform_11(%arg0: i32) -> (i32, i32, i32) {
    %c0_i32 = arith.constant 0 : i32
    %c0_i32_0 = arith.constant 0 : i32
    %c0_i32_1 = arith.constant 0 : i32
    %c0_i32_2 = arith.constant 0 : i32
    return %c0_i32, %c0_i32_0, %c0_i32_1 : i32, i32, i32
  }
  func.func @transform_12(%arg0: i32) -> (i32, i32, i32) {
    %c0_i32 = arith.constant 0 : i32
    %c0_i32_0 = arith.constant 0 : i32
    %c0_i32_1 = arith.constant 0 : i32
    %c0_i32_2 = arith.constant 0 : i32
    return %c0_i32, %c0_i32_0, %c0_i32_1 : i32, i32, i32
  }
  func.func @transform_13(%arg0: i32) -> (i32, i32, i32) {
    %c0_i32 = arith.constant 0 : i32
    %c0_i32_0 = arith.constant 0 : i32
    %c0_i32_1 = arith.constant 0 : i32
    %c0_i32_2 = arith.constant 0 : i32
    return %c0_i32, %c0_i32_0, %c0_i32_1 : i32, i32, i32
  }
  func.func @transform_14(%arg0: i32) -> (i32, i32) {
    %c0_i32 = arith.constant 0 : i32
    %c0_i32_0 = arith.constant 0 : i32
    %c0_i32_1 = arith.constant 0 : i32
    return %c0_i32, %c0_i32_0 : i32, i32
  }
  func.func @transform_15(%arg0: i32) -> (i32, i32) {
    %c0_i32 = arith.constant 0 : i32
    %c0_i32_0 = arith.constant 0 : i32
    %c0_i32_1 = arith.constant 0 : i32
    return %c0_i32, %c0_i32_0 : i32, i32
  }
  func.func @transform_16(%arg0: i32) -> (i32, i32) {
    %c0_i32 = arith.constant 0 : i32
    %c0_i32_0 = arith.constant 0 : i32
    %c0_i32_1 = arith.constant 0 : i32
    return %c0_i32, %c0_i32_0 : i32, i32
  }
  func.func @transform_17(%arg0: i32) -> (i32, i32) {
    %c0_i32 = arith.constant 0 : i32
    %c0_i32_0 = arith.constant 0 : i32
    %c0_i32_1 = arith.constant 0 : i32
    return %c0_i32, %c0_i32_0 : i32, i32
  }
  func.func @transform_18(%arg0: i32) -> (i32, i32) {
    %c0_i32 = arith.constant 0 : i32
    %c0_i32_0 = arith.constant 0 : i32
    return %arg0, %c0_i32 : i32, i32
  }
}

</mosaic_0001>

<llo_original>
// kernel: tpu_custom_call.1
$region0: #{tpu_custom_call.1}
  #allocation0 [shape = 'u32[]', space=smem, size = 0x4, offset = 0x4, fixed_abs, tag = 'smem constant byte address 0x4 - core index']
  #allocation1 [shape = 'u32[144,128]{1,0:T(1,128)}', space=vmem, size = 0x12000, scoped, tag = 'internal scratch']
  %s0 = inlined_call_operand.vmem [shape: s32[64,1], index: 0, kind: input, shape index: {}]
  %s1 = inlined_call_operand.vmem [shape: bf16[128,128], index: 1, kind: input, shape index: {}]
  %s2 = inlined_call_operand.hbm [shape: f32[32,128], index: 2, kind: input, shape index: {}]
  %s3 = inlined_call_operand.hbm [shape: bf16[2,128,384], index: 3, kind: input, shape index: {}]
  %s4 = inlined_call_operand.hbm [shape: bf16[2,128,128], index: 4, kind: input, shape index: {}]
  %s5 = inlined_call_operand.vmem [shape: f32[2,1,128], index: 5, kind: input, shape index: {}]
  %s6 = inlined_call_operand.hbm [shape: f32[2,1,128], index: 6, kind: input, shape index: {}]
  %s7 = inlined_call_operand.vmem [shape: f32[2,1,128], index: 7, kind: input, shape index: {}]
  %s8 = inlined_call_operand.hbm [shape: bf16[2,128,512], index: 8, kind: input, shape index: {}]
  %s9 = inlined_call_operand.vmem [shape: f32[2,1,512], index: 9, kind: input, shape index: {}]
  %s10 = inlined_call_operand.hbm [shape: bf16[2,512,128], index: 10, kind: input, shape index: {}]
  %s11 = inlined_call_operand.vmem [shape: f32[2,1,128], index: 11, kind: input, shape index: {}]
  %s12 = inlined_call_operand.vmem [shape: f32[2,1,128], index: 12, kind: input, shape index: {}]
  %s13 = inlined_call_operand.vmem [shape: f32[2,1,128], index: 13, kind: input, shape index: {}]
  %s14 = inlined_call_operand.vmem [shape: f32[1,128], index: 14, kind: input, shape index: {}]
  %s15 = inlined_call_operand.vmem [shape: f32[1,128], index: 15, kind: input, shape index: {}]
  %s16 = inlined_call_operand.hbm [shape: bf16[128,128], index: 16, kind: input, shape index: {}]
  %s17 = inlined_call_operand.vmem [shape: f32[1,128], index: 17, kind: input, shape index: {}]
  %s18 = inlined_call_operand.hbm [shape: f32[64,128], index: 18, kind: output, shape index: {}]
  %s19 = sld [smem:[#allocation0]]
  $region133: #{tpu_custom_call.1} parent=0
    _
  %s21 = ssub.s32 1, %s19
  %s22 = scalar_select 0, %s21, %s19
  $region1: #{tpu_custom_call.1} parent=0
    #allocation2 [shape = 'u8[16384]{0}', space=vmem, size = 0x4000, scoped, tag = 'input window, operand 2, single buffered']
    #allocation3 [shape = 's32[2]{0}', space=sflag, size = 0x8, scoped, tag = 'scoped memory for tpu_custom_call.1']
    #allocation4 [shape = 's32[2]{0}', space=sflag, size = 0x8, scoped, tag = 'scoped memory for tpu_custom_call.1']
    #allocation5 [shape = 'u8[196608]{0}', space=vmem, size = 0x30000, scoped, tag = 'input window, operand 3, single buffered']
    #allocation6 [shape = 's32[1]{0}', space=sflag, size = 0x4, scoped, tag = 'scoped memory for tpu_custom_call.1']
    #allocation7 [shape = 'u8[65536]{0}', space=vmem, size = 0x10000, scoped, tag = 'input window, operand 4, single buffered']
    #allocation8 [shape = 'u8[1024]{0}', space=vmem, size = 0x400, scoped, tag = 'input window, operand 6, single buffered']
    #allocation9 [shape = 's32[1]{0}', space=sflag, size = 0x4, scoped, tag = 'scoped memory for tpu_custom_call.1']
    #allocation10 [shape = 'u8[262144]{0}', space=vmem, size = 0x40000, scoped, tag = 'input window, operand 8, single buffered']
    #allocation11 [shape = 'u8[262144]{0}', space=vmem, size = 0x40000, scoped, tag = 'input window, operand 10, single buffered']
    #allocation12 [shape = 's32[1]{0}', space=sflag, size = 0x4, scoped, tag = 'scoped memory for tpu_custom_call.1']
    #allocation13 [shape = 'u8[32768]{0}', space=vmem, size = 0x8000, scoped, tag = 'input window, operand 16, single buffered']
    #allocation14 [shape = 'u8[32768]{0}', space=vmem, size = 0x8000, scoped, tag = 'output window, operand 0']
    %23 = vsyncpa [#allocation3], 0
    %24 = vsyncpa [#allocation6], 0
    %25 = vsyncpa [#allocation9], 0
    %26 = vsyncpa [#allocation12], 0
    %27 = vsyncpa [#allocation4], 0
    %s28 = scalar_lea.sflag [#allocation4], 1
    %29 = vsyncpa %s28, 0
    loop: start=0, step=1, limit=4
    $region2: #{tpu_custom_call.1} parent=1 // loop_pre_header
      _
    $region3: #{tpu_custom_call.1} parent=1 // loop_header
      %s31 = sphi 0, %s35
      %p32 = scmp.ge.s32.totalorder %s31, 4
      %s41 = sphi 0, %s43
      %s44 = sphi 0, %s41
      %s45 = sphi 0, %s44
      %s61 = sphi 0, %s45
      %s65 = sphi 0, %s65
      %s67 = sphi 0, %s65
      %s68 = sphi 0, %s67
      %s82 = sphi 0, %s68
      %s86 = sphi 0, %s86
      %s88 = sphi 0, %s86
      %s89 = sphi 0, %s88
      %s103 = sphi 0, %s89
      %s107 = sphi 0, %s107
      %s109 = sphi 0, %s107
      %s110 = sphi 0, %s109
      %s124 = sphi 0, %s110
      %s128 = sphi 0, %s128
      %s130 = sphi 0, %s128
      %s131 = sphi 0, %s130
      %s145 = sphi 0, %s131
      %s149 = sphi 0, %s149
      %s151 = sphi 0, %s149
      %s152 = sphi 0, %s151
      %s166 = sphi 0, %s152
      %s170 = sphi 0, %s170
      %s172 = sphi 0, %s170
      %s173 = sphi 0, %s172
      %s187 = sphi 0, %s173
      %s191 = sphi 0, %s191
      %s193 = sphi 0, %s191
      %s194 = sphi 0, %s193
      %s208 = sphi 0, %s194
      %s212 = sphi 0, %s212
      %s214 = sphi 0, %s212
      %s215 = sphi 0, %s214
      %s229 = sphi 0, %s215
      %s233 = sphi 0, %s233
      %s235 = sphi 0, %s233
      %s236 = sphi 0, %s235
      %s250 = sphi 0, %s236
      %s254 = sphi 0, %s254
      %s256 = sphi 0, %s254
      %s257 = sphi 0, %s256
      %s271 = sphi 0, %s257
      %s275 = sphi 0, %s275
      %s277 = sphi 0, %s275
      %s278 = sphi 0, %s277
      %s292 = sphi 0, %s278
      %s296 = sphi 0, %s296
      %s298 = sphi 0, %s296
      %s299 = sphi 0, %s298
      %s313 = sphi 0, %s299
      %s317 = sphi 0, %s317
      %s319 = sphi 0, %s317
      %s320 = sphi 0, %s319
      %s334 = sphi 0, %s320
      %s338 = sphi 0, %s338
      %s340 = sphi 0, %s338
      %s341 = sphi 0, %s340
      %s355 = sphi 0, %s341
      %s359 = sphi 0, %s359
      %s361 = sphi 0, %s359
      %s362 = sphi 0, %s361
      %s376 = sphi 0, %s362
      %s380 = sphi 0, %s380
      %s382 = sphi 0, %s380
      %s383 = sphi 0, %s382
      %s397 = sphi 0, %s383
      %s401 = sphi 0, %s401
      %s403 = sphi 0, %s401
      %s404 = sphi 0, %s403
      %s418 = sphi 0, %s404
      %s424 = sphi 0, %s426
      %s427 = sphi 0, %s424
      %s428 = sphi 0, %s427
      %s444 = sphi 0, %s428
    $region4: #{tpu_custom_call.1} parent=1 // loop_header_branch
      %34 = sbr.rel (%p32) target = $region8
    $region5: #{tpu_custom_call.1} parent=1 // loop_body
      %s36 = ssub.s32 %s31, 1
      %s37 = ssub.s32 %s31, 2
      %s38 = sadd.s32 %s31, 1
      %s39 = ssub.s32 %s31, %s38
      %p40 = scmp.eq.s32.totalorder %s39, 0
      %s42 = sadd.s32 %s41, 1
      %s43 = scalar_select %p40, %s41, %s42
      %p46 = pneg %p40
      %p47 = scmp.eq.s32.totalorder %s31, 1
      %p48 = por %p46, %p47
      %p49 = scmp.ne.s32.totalorder %s41, %s44
      %p50 = scmp.eq.s32.totalorder %s31, 0
      %p51 = por %p49, %p50
      %p52 = scmp.ne.s32.totalorder %s41, %s44
      %p53 = scmp.eq.s32.totalorder %s36, 1
      %p54 = por %p52, %p53
      %p55 = scmp.ne.s32.totalorder %s44, %s45
      %p56 = scmp.eq.s32.totalorder %s36, 0
      %p57 = por %p55, %p56
      %p58 = scmp.ne.s32.totalorder %s44, %s45
      %p59 = scmp.eq.s32.totalorder %s37, 1
      %p60 = por %p58, %p59
      %p62 = scmp.ne.s32.totalorder %s45, %s61
      %p63 = scmp.eq.s32.totalorder %s37, 0
      %p64 = por %p62, %p63
      %s66 = sadd.s32 %s65, 1
      %p69 = scmp.eq.s32.totalorder %s31, 1
      %p70 = scmp.ne.s32.totalorder %s65, %s67
      %p71 = scmp.eq.s32.totalorder %s31, 0
      %p72 = por %p70, %p71
      %p73 = scmp.ne.s32.totalorder %s65, %s67
      %p74 = scmp.eq.s32.totalorder %s36, 1
      %p75 = por %p73, %p74
      %p76 = scmp.ne.s32.totalorder %s67, %s68
      %p77 = scmp.eq.s32.totalorder %s36, 0
      %p78 = por %p76, %p77
      %p79 = scmp.ne.s32.totalorder %s67, %s68
      %p80 = scmp.eq.s32.totalorder %s37, 1
      %p81 = por %p79, %p80
      %p83 = scmp.ne.s32.totalorder %s68, %s82
      %p84 = scmp.eq.s32.totalorder %s37, 0
      %p85 = por %p83, %p84
      %s87 = sadd.s32 %s86, 1
      %p90 = scmp.eq.s32.totalorder %s31, 1
      %p91 = scmp.ne.s32.totalorder %s86, %s88
      %p92 = scmp.eq.s32.totalorder %s31, 0
      %p93 = por %p91, %p92
      %p94 = scmp.ne.s32.totalorder %s86, %s88
      %p95 = scmp.eq.s32.totalorder %s36, 1
      %p96 = por %p94, %p95
      %p97 = scmp.ne.s32.totalorder %s88, %s89
      %p98 = scmp.eq.s32.totalorder %s36, 0
      %p99 = por %p97, %p98
      %p100 = scmp.ne.s32.totalorder %s88, %s89
      %p101 = scmp.eq.s32.totalorder %s37, 1
      %p102 = por %p100, %p101
      %p104 = scmp.ne.s32.totalorder %s89, %s103
      %p105 = scmp.eq.s32.totalorder %s37, 0
      %p106 = por %p104, %p105
      %s108 = sadd.s32 %s107, 1
      %p111 = scmp.eq.s32.totalorder %s31, 1
      %p112 = scmp.ne.s32.totalorder %s107, %s109
      %p113 = scmp.eq.s32.totalorder %s31, 0
      %p114 = por %p112, %p113
      %p115 = scmp.ne.s32.totalorder %s107, %s109
      %p116 = scmp.eq.s32.totalorder %s36, 1
      %p117 = por %p115, %p116
      %p118 = scmp.ne.s32.totalorder %s109, %s110
      %p119 = scmp.eq.s32.totalorder %s36, 0
      %p120 = por %p118, %p119
      %p121 = scmp.ne.s32.totalorder %s109, %s110
      %p122 = scmp.eq.s32.totalorder %s37, 1
      %p123 = por %p121, %p122
      %p125 = scmp.ne.s32.totalorder %s110, %s124
      %p126 = scmp.eq.s32.totalorder %s37, 0
      %p127 = por %p125, %p126
      %s129 = sadd.s32 %s128, 1
      %p132 = scmp.eq.s32.totalorder %s31, 1
      %p133 = scmp.ne.s32.totalorder %s128, %s130
      %p134 = scmp.eq.s32.totalorder %s31, 0
      %p135 = por %p133, %p134
      %p136 = scmp.ne.s32.totalorder %s128, %s130
      %p137 = scmp.eq.s32.totalorder %s36, 1
      %p138 = por %p136, %p137
      %p139 = scmp.ne.s32.totalorder %s130, %s131
      %p140 = scmp.eq.s32.totalorder %s36, 0
      %p141 = por %p139, %p140
      %p142 = scmp.ne.s32.totalorder %s130, %s131
      %p143 = scmp.eq.s32.totalorder %s37, 1
      %p144 = por %p142, %p143
      %p146 = scmp.ne.s32.totalorder %s131, %s145
      %p147 = scmp.eq.s32.totalorder %s37, 0
      %p148 = por %p146, %p147
      %s150 = sadd.s32 %s149, 1
      %p153 = scmp.eq.s32.totalorder %s31, 1
      %p154 = scmp.ne.s32.totalorder %s149, %s151
      %p155 = scmp.eq.s32.totalorder %s31, 0
      %p156 = por %p154, %p155
      %p157 = scmp.ne.s32.totalorder %s149, %s151
      %p158 = scmp.eq.s32.totalorder %s36, 1
      %p159 = por %p157, %p158
      %p160 = scmp.ne.s32.totalorder %s151, %s152
      %p161 = scmp.eq.s32.totalorder %s36, 0
      %p162 = por %p160, %p161
      %p163 = scmp.ne.s32.totalorder %s151, %s152
      %p164 = scmp.eq.s32.totalorder %s37, 1
      %p165 = por %p163, %p164
      %p167 = scmp.ne.s32.totalorder %s152, %s166
      %p168 = scmp.eq.s32.totalorder %s37, 0
      %p169 = por %p167, %p168
      %s171 = sadd.s32 %s170, 1
      %p174 = scmp.eq.s32.totalorder %s31, 1
      %p175 = scmp.ne.s32.totalorder %s170, %s172
      %p176 = scmp.eq.s32.totalorder %s31, 0
      %p177 = por %p175, %p176
      %p178 = scmp.ne.s32.totalorder %s170, %s172
      %p179 = scmp.eq.s32.totalorder %s36, 1
      %p180 = por %p178, %p179
      %p181 = scmp.ne.s32.totalorder %s172, %s173
      %p182 = scmp.eq.s32.totalorder %s36, 0
      %p183 = por %p181, %p182
      %p184 = scmp.ne.s32.totalorder %s172, %s173
      %p185 = scmp.eq.s32.totalorder %s37, 1
      %p186 = por %p184, %p185
      %p188 = scmp.ne.s32.totalorder %s173, %s187
      %p189 = scmp.eq.s32.totalorder %s37, 0
      %p190 = por %p188, %p189
      %s192 = sadd.s32 %s191, 1
      %p195 = scmp.eq.s32.totalorder %s31, 1
      %p196 = scmp.ne.s32.totalorder %s191, %s193
      %p197 = scmp.eq.s32.totalorder %s31, 0
      %p198 = por %p196, %p197
      %p199 = scmp.ne.s32.totalorder %s191, %s193
      %p200 = scmp.eq.s32.totalorder %s36, 1
      %p201 = por %p199, %p200
      %p202 = scmp.ne.s32.totalorder %s193, %s194
      %p203 = scmp.eq.s32.totalorder %s36, 0
      %p204 = por %p202, %p203
      %p205 = scmp.ne.s32.totalorder %s193, %s194
      %p206 = scmp.eq.s32.totalorder %s37, 1
      %p207 = por %p205, %p206
      %p209 = scmp.ne.s32.totalorder %s194, %s208
      %p210 = scmp.eq.s32.totalorder %s37, 0
      %p211 = por %p209, %p210
      %s213 = sadd.s32 %s212, 1
      %p216 = scmp.eq.s32.totalorder %s31, 1
      %p217 = scmp.ne.s32.totalorder %s212, %s214
      %p218 = scmp.eq.s32.totalorder %s31, 0
      %p219 = por %p217, %p218
      %p220 = scmp.ne.s32.totalorder %s212, %s214
      %p221 = scmp.eq.s32.totalorder %s36, 1
      %p222 = por %p220, %p221
      %p223 = scmp.ne.s32.totalorder %s214, %s215
      %p224 = scmp.eq.s32.totalorder %s36, 0
      %p225 = por %p223, %p224
      %p226 = scmp.ne.s32.totalorder %s214, %s215
      %p227 = scmp.eq.s32.totalorder %s37, 1
      %p228 = por %p226, %p227
      %p230 = scmp.ne.s32.totalorder %s215, %s229
      %p231 = scmp.eq.s32.totalorder %s37, 0
      %p232 = por %p230, %p231
      %s234 = sadd.s32 %s233, 1
      %p237 = scmp.eq.s32.totalorder %s31, 1
      %p238 = scmp.ne.s32.totalorder %s233, %s235
      %p239 = scmp.eq.s32.totalorder %s31, 0
      %p240 = por %p238, %p239
      %p241 = scmp.ne.s32.totalorder %s233, %s235
      %p242 = scmp.eq.s32.totalorder %s36, 1
      %p243 = por %p241, %p242
      %p244 = scmp.ne.s32.totalorder %s235, %s236
      %p245 = scmp.eq.s32.totalorder %s36, 0
      %p246 = por %p244, %p245
      %p247 = scmp.ne.s32.totalorder %s235, %s236
      %p248 = scmp.eq.s32.totalorder %s37, 1
      %p249 = por %p247, %p248
      %p251 = scmp.ne.s32.totalorder %s236, %s250
      %p252 = scmp.eq.s32.totalorder %s37, 0
      %p253 = por %p251, %p252
      %s255 = sadd.s32 %s254, 1
      %p258 = scmp.eq.s32.totalorder %s31, 1
      %p259 = scmp.ne.s32.totalorder %s254, %s256
      %p260 = scmp.eq.s32.totalorder %s31, 0
      %p261 = por %p259, %p260
      %p262 = scmp.ne.s32.totalorder %s254, %s256
      %p263 = scmp.eq.s32.totalorder %s36, 1
      %p264 = por %p262, %p263
      %p265 = scmp.ne.s32.totalorder %s256, %s257
      %p266 = scmp.eq.s32.totalorder %s36, 0
      %p267 = por %p265, %p266
      %p268 = scmp.ne.s32.totalorder %s256, %s257
      %p269 = scmp.eq.s32.totalorder %s37, 1
      %p270 = por %p268, %p269
      %p272 = scmp.ne.s32.totalorder %s257, %s271
      %p273 = scmp.eq.s32.totalorder %s37, 0
      %p274 = por %p272, %p273
      %s276 = sadd.s32 %s275, 1
      %p279 = scmp.eq.s32.totalorder %s31, 1
      %p280 = scmp.ne.s32.totalorder %s275, %s277
      %p281 = scmp.eq.s32.totalorder %s31, 0
      %p282 = por %p280, %p281
      %p283 = scmp.ne.s32.totalorder %s275, %s277
      %p284 = scmp.eq.s32.totalorder %s36, 1
      %p285 = por %p283, %p284
      %p286 = scmp.ne.s32.totalorder %s277, %s278
      %p287 = scmp.eq.s32.totalorder %s36, 0
      %p288 = por %p286, %p287
      %p289 = scmp.ne.s32.totalorder %s277, %s278
      %p290 = scmp.eq.s32.totalorder %s37, 1
      %p291 = por %p289, %p290
      %p293 = scmp.ne.s32.totalorder %s278, %s292
      %p294 = scmp.eq.s32.totalorder %s37, 0
      %p295 = por %p293, %p294
      %s297 = sadd.s32 %s296, 1
      %p300 = scmp.eq.s32.totalorder %s31, 1
      %p301 = scmp.ne.s32.totalorder %s296, %s298
      %p302 = scmp.eq.s32.totalorder %s31, 0
      %p303 = por %p301, %p302
      %p304 = scmp.ne.s32.totalorder %s296, %s298
      %p305 = scmp.eq.s32.totalorder %s36, 1
      %p306 = por %p304, %p305
      %p307 = scmp.ne.s32.totalorder %s298, %s299
      %p308 = scmp.eq.s32.totalorder %s36, 0
      %p309 = por %p307, %p308
      %p310 = scmp.ne.s32.totalorder %s298, %s299
      %p311 = scmp.eq.s32.totalorder %s37, 1
      %p312 = por %p310, %p311
      %p314 = scmp.ne.s32.totalorder %s299, %s313
      %p315 = scmp.eq.s32.totalorder %s37, 0
      %p316 = por %p314, %p315
      %s318 = sadd.s32 %s317, 1
      %p321 = scmp.eq.s32.totalorder %s31, 1
      %p322 = scmp.ne.s32.totalorder %s317, %s319
      %p323 = scmp.eq.s32.totalorder %s31, 0
      %p324 = por %p322, %p323
      %p325 = scmp.ne.s32.totalorder %s317, %s319
      %p326 = scmp.eq.s32.totalorder %s36, 1
      %p327 = por %p325, %p326
      %p328 = scmp.ne.s32.totalorder %s319, %s320
      %p329 = scmp.eq.s32.totalorder %s36, 0
      %p330 = por %p328, %p329
      %p331 = scmp.ne.s32.totalorder %s319, %s320
      %p332 = scmp.eq.s32.totalorder %s37, 1
      %p333 = por %p331, %p332
      %p335 = scmp.ne.s32.totalorder %s320, %s334
      %p336 = scmp.eq.s32.totalorder %s37, 0
      %p337 = por %p335, %p336
      %s339 = sadd.s32 %s338, 1
      %p342 = scmp.eq.s32.totalorder %s31, 1
      %p343 = scmp.ne.s32.totalorder %s338, %s340
      %p344 = scmp.eq.s32.totalorder %s31, 0
      %p345 = por %p343, %p344
      %p346 = scmp.ne.s32.totalorder %s338, %s340
      %p347 = scmp.eq.s32.totalorder %s36, 1
      %p348 = por %p346, %p347
      %p349 = scmp.ne.s32.totalorder %s340, %s341
      %p350 = scmp.eq.s32.totalorder %s36, 0
      %p351 = por %p349, %p350
      %p352 = scmp.ne.s32.totalorder %s340, %s341
      %p353 = scmp.eq.s32.totalorder %s37, 1
      %p354 = por %p352, %p353
      %p356 = scmp.ne.s32.totalorder %s341, %s355
      %p357 = scmp.eq.s32.totalorder %s37, 0
      %p358 = por %p356, %p357
      %s360 = sadd.s32 %s359, 1
      %p363 = scmp.eq.s32.totalorder %s31, 1
      %p364 = scmp.ne.s32.totalorder %s359, %s361
      %p365 = scmp.eq.s32.totalorder %s31, 0
      %p366 = por %p364, %p365
      %p367 = scmp.ne.s32.totalorder %s359, %s361
      %p368 = scmp.eq.s32.totalorder %s36, 1
      %p369 = por %p367, %p368
      %p370 = scmp.ne.s32.totalorder %s361, %s362
      %p371 = scmp.eq.s32.totalorder %s36, 0
      %p372 = por %p370, %p371
      %p373 = scmp.ne.s32.totalorder %s361, %s362
      %p374 = scmp.eq.s32.totalorder %s37, 1
      %p375 = por %p373, %p374
      %p377 = scmp.ne.s32.totalorder %s362, %s376
      %p378 = scmp.eq.s32.totalorder %s37, 0
      %p379 = por %p377, %p378
      %s381 = sadd.s32 %s380, 1
      %p384 = scmp.eq.s32.totalorder %s31, 1
      %p385 = scmp.ne.s32.totalorder %s380, %s382
      %p386 = scmp.eq.s32.totalorder %s31, 0
      %p387 = por %p385, %p386
      %p388 = scmp.ne.s32.totalorder %s380, %s382
      %p389 = scmp.eq.s32.totalorder %s36, 1
      %p390 = por %p388, %p389
      %p391 = scmp.ne.s32.totalorder %s382, %s383
      %p392 = scmp.eq.s32.totalorder %s36, 0
      %p393 = por %p391, %p392
      %p394 = scmp.ne.s32.totalorder %s382, %s383
      %p395 = scmp.eq.s32.totalorder %s37, 1
      %p396 = por %p394, %p395
      %p398 = scmp.ne.s32.totalorder %s383, %s397
      %p399 = scmp.eq.s32.totalorder %s37, 0
      %p400 = por %p398, %p399
      %s402 = sadd.s32 %s401, 1
      %p405 = scmp.eq.s32.totalorder %s31, 1
      %p406 = scmp.ne.s32.totalorder %s401, %s403
      %p407 = scmp.eq.s32.totalorder %s31, 0
      %p408 = por %p406, %p407
      %p409 = scmp.ne.s32.totalorder %s401, %s403
      %p410 = scmp.eq.s32.totalorder %s36, 1
      %p411 = por %p409, %p410
      %p412 = scmp.ne.s32.totalorder %s403, %s404
      %p413 = scmp.eq.s32.totalorder %s36, 0
      %p414 = por %p412, %p413
      %p415 = scmp.ne.s32.totalorder %s403, %s404
      %p416 = scmp.eq.s32.totalorder %s37, 1
      %p417 = por %p415, %p416
      %p419 = scmp.ne.s32.totalorder %s404, %s418
      %p420 = scmp.eq.s32.totalorder %s37, 0
      %p421 = por %p419, %p420
      %s422 = ssub.s32 %s31, %s38
      %p423 = scmp.eq.s32.totalorder %s422, 0
      %s425 = sadd.s32 %s424, 1
      %s426 = scalar_select %p423, %s424, %s425
      %p429 = pneg %p423
      %p430 = scmp.eq.s32.totalorder %s31, 1
      %p431 = por %p429, %p430
      %p432 = scmp.ne.s32.totalorder %s424, %s427
      %p433 = scmp.eq.s32.totalorder %s31, 0
      %p434 = por %p432, %p433
      %p435 = scmp.ne.s32.totalorder %s424, %s427
      %p436 = scmp.eq.s32.totalorder %s36, 1
      %p437 = por %p435, %p436
      %p438 = scmp.ne.s32.totalorder %s427, %s428
      %p439 = scmp.eq.s32.totalorder %s36, 0
      %p440 = por %p438, %p439
      %p441 = scmp.ne.s32.totalorder %s427, %s428
      %p442 = scmp.eq.s32.totalorder %s37, 1
      %p443 = por %p441, %p442
      %p445 = scmp.ne.s32.totalorder %s428, %s444
      %p446 = scmp.eq.s32.totalorder %s37, 0
      %p447 = por %p445, %p446
      %p448 = scmp.le.s32.totalorder 1, %s31
      %p449 = scmp.lt.s32.totalorder %s31, 3
      %p450 = pnand %p448, %p449
      %p451 = pneg %p450
      // Predicated region
      $region9: #{tpu_custom_call.1} parent=5 // pred_check
        _
      $region10: #{tpu_custom_call.1} parent=5 // pred_check_branch
        %453 = sbr.rel (%p450) target = $region12
      $region11: #{tpu_custom_call.1} parent=5 // pred_region
        %s454 = ssub.s32 %s31, 1
        // Predicated region
        $region13: #{tpu_custom_call.1} parent=11 // pred_check
          %p455 = pneg %p78
        $region14: #{tpu_custom_call.1} parent=11 // pred_check_branch
          %457 = sbr.rel (%p455) target = $region16
        $region15: #{tpu_custom_call.1} parent=11 // pred_region
          _
        $region16: #{tpu_custom_call.1} parent=11 // pred_fallthru
          _
        // Predicated region
        $region17: #{tpu_custom_call.1} parent=11 // pred_check
          %p458 = pneg %p99
        $region18: #{tpu_custom_call.1} parent=11 // pred_check_branch
          %460 = sbr.rel (%p458) target = $region20
        $region19: #{tpu_custom_call.1} parent=11 // pred_region
          %s462 = ssub.s32 512, 512
          %463 = vsyncadd [#allocation3], %s462
          %s464 = sshll.u32 [#allocation2], 4
          %s465 = int_to_ptr.vmem [resolvable:$true] %s464
          %470 = dma.hbm_to_vmem [thread:$0]  %s2, 512, %s465, [#allocation3], 128, 128, 8
        $region20: #{tpu_custom_call.1} parent=11 // pred_fallthru
          _
        // Predicated region
        $region21: #{tpu_custom_call.1} parent=11 // pred_check
          %p471 = pneg %p120
        $region22: #{tpu_custom_call.1} parent=11 // pred_check_branch
          %473 = sbr.rel (%p471) target = $region24
        $region23: #{tpu_custom_call.1} parent=11 // pred_region
          %s475 = ssub.s32 6144, 6144
          %476 = vsyncadd [#allocation6], %s475
          %s477 = sshll.u32 [#allocation5], 4
          %s478 = int_to_ptr.vmem [resolvable:$true] %s477
          %483 = dma.hbm_to_vmem [thread:$0]  %s3, 6144, %s478, [#allocation6], 192, 192, 12
        $region24: #{tpu_custom_call.1} parent=11 // pred_fallthru
          _
        // Predicated region
        $region25: #{tpu_custom_call.1} parent=11 // pred_check
          %p484 = pneg %p141
        $region26: #{tpu_custom_call.1} parent=11 // pred_check_branch
          %486 = sbr.rel (%p484) target = $region28
        $region27: #{tpu_custom_call.1} parent=11 // pred_region
          %s488 = ssub.s32 2048, 2048
          %489 = vsyncadd [#allocation6], %s488
          %s490 = sshll.u32 [#allocation7], 4
          %s491 = int_to_ptr.vmem [resolvable:$true] %s490
          %496 = dma.hbm_to_vmem [thread:$0]  %s4, 2048, %s491, [#allocation6], 64, 64, 4
        $region28: #{tpu_custom_call.1} parent=11 // pred_fallthru
          _
        // Predicated region
        $region29: #{tpu_custom_call.1} parent=11 // pred_check
          %p497 = pneg %p162
        $region30: #{tpu_custom_call.1} parent=11 // pred_check_branch
          %499 = sbr.rel (%p497) target = $region32
        $region31: #{tpu_custom_call.1} parent=11 // pred_region
          _
        $region32: #{tpu_custom_call.1} parent=11 // pred_fallthru
          _
        // Predicated region
        $region33: #{tpu_custom_call.1} parent=11 // pred_check
          %p500 = pneg %p183
        $region34: #{tpu_custom_call.1} parent=11 // pred_check_branch
          %502 = sbr.rel (%p500) target = $region36
        $region35: #{tpu_custom_call.1} parent=11 // pred_region
          %s504 = ssub.s32 32, 32
          %505 = vsyncadd [#allocation9], %s504
          %s506 = sshll.u32 [#allocation8], 4
          %s507 = int_to_ptr.vmem [resolvable:$true] %s506
          %512 = dma.hbm_to_vmem [thread:$0]  %s6, 32, %s507, [#allocation9], 16, 16, 1
        $region36: #{tpu_custom_call.1} parent=11 // pred_fallthru
          _
        // Predicated region
        $region37: #{tpu_custom_call.1} parent=11 // pred_check
          %p513 = pneg %p204
        $region38: #{tpu_custom_call.1} parent=11 // pred_check_branch
          %515 = sbr.rel (%p513) target = $region40
        $region39: #{tpu_custom_call.1} parent=11 // pred_region
          _
        $region40: #{tpu_custom_call.1} parent=11 // pred_fallthru
          _
        // Predicated region
        $region41: #{tpu_custom_call.1} parent=11 // pred_check
          %p516 = pneg %p225
        $region42: #{tpu_custom_call.1} parent=11 // pred_check_branch
          %518 = sbr.rel (%p516) target = $region44
        $region43: #{tpu_custom_call.1} parent=11 // pred_region
          %s520 = ssub.s32 8192, 8192
          %521 = vsyncadd [#allocation9], %s520
          %s522 = sshll.u32 [#allocation10], 4
          %s523 = int_to_ptr.vmem [resolvable:$true] %s522
          %528 = dma.hbm_to_vmem [thread:$0]  %s8, 8192, %s523, [#allocation9], 256, 256, 16
        $region44: #{tpu_custom_call.1} parent=11 // pred_fallthru
          _
        // Predicated region
        $region45: #{tpu_custom_call.1} parent=11 // pred_check
          %p529 = pneg %p246
        $region46: #{tpu_custom_call.1} parent=11 // pred_check_branch
          %531 = sbr.rel (%p529) target = $region48
        $region47: #{tpu_custom_call.1} parent=11 // pred_region
          _
        $region48: #{tpu_custom_call.1} parent=11 // pred_fallthru
          _
        // Predicated region
        $region49: #{tpu_custom_call.1} parent=11 // pred_check
          %p532 = pneg %p267
        $region50: #{tpu_custom_call.1} parent=11 // pred_check_branch
          %534 = sbr.rel (%p532) target = $region52
        $region51: #{tpu_custom_call.1} parent=11 // pred_region
          %s536 = ssub.s32 8192, 8192
          %537 = vsyncadd [#allocation12], %s536
          %s538 = sshll.u32 [#allocation11], 4
          %s539 = int_to_ptr.vmem [resolvable:$true] %s538
          %544 = dma.hbm_to_vmem [thread:$0]  %s10, 8192, %s539, [#allocation12], 64, 64, 4
        $region52: #{tpu_custom_call.1} parent=11 // pred_fallthru
          _
        // Predicated region
        $region53: #{tpu_custom_call.1} parent=11 // pred_check
          %p545 = pneg %p288
        $region54: #{tpu_custom_call.1} parent=11 // pred_check_branch
          %547 = sbr.rel (%p545) target = $region56
        $region55: #{tpu_custom_call.1} parent=11 // pred_region
          _
        $region56: #{tpu_custom_call.1} parent=11 // pred_fallthru
          _
        // Predicated region
        $region57: #{tpu_custom_call.1} parent=11 // pred_check
          %p548 = pneg %p309
        $region58: #{tpu_custom_call.1} parent=11 // pred_check_branch
          %550 = sbr.rel (%p548) target = $region60
        $region59: #{tpu_custom_call.1} parent=11 // pred_region
          _
        $region60: #{tpu_custom_call.1} parent=11 // pred_fallthru
          _
        // Predicated region
        $region61: #{tpu_custom_call.1} parent=11 // pred_check
          %p551 = pneg %p330
        $region62: #{tpu_custom_call.1} parent=11 // pred_check_branch
          %553 = sbr.rel (%p551) target = $region64
        $region63: #{tpu_custom_call.1} parent=11 // pred_region
          _
        $region64: #{tpu_custom_call.1} parent=11 // pred_fallthru
          _
        // Predicated region
        $region65: #{tpu_custom_call.1} parent=11 // pred_check
          %p554 = pneg %p351
        $region66: #{tpu_custom_call.1} parent=11 // pred_check_branch
          %556 = sbr.rel (%p554) target = $region68
        $region67: #{tpu_custom_call.1} parent=11 // pred_region
          _
        $region68: #{tpu_custom_call.1} parent=11 // pred_fallthru
          _
        // Predicated region
        $region69: #{tpu_custom_call.1} parent=11 // pred_check
          %p557 = pneg %p372
        $region70: #{tpu_custom_call.1} parent=11 // pred_check_branch
          %559 = sbr.rel (%p557) target = $region72
        $region71: #{tpu_custom_call.1} parent=11 // pred_region
          _
        $region72: #{tpu_custom_call.1} parent=11 // pred_fallthru
          _
        // Predicated region
        $region73: #{tpu_custom_call.1} parent=11 // pred_check
          %p560 = pneg %p393
        $region74: #{tpu_custom_call.1} parent=11 // pred_check_branch
          %562 = sbr.rel (%p560) target = $region76
        $region75: #{tpu_custom_call.1} parent=11 // pred_region
          %s564 = ssub.s32 1024, 1024
          %565 = vsyncadd [#allocation12], %s564
          %s566 = sshll.u32 [#allocation13], 4
          %s567 = int_to_ptr.vmem [resolvable:$true] %s566
          %572 = dma.hbm_to_vmem [thread:$0]  %s16, 1024, %s567, [#allocation12], 64, 64, 4
        $region76: #{tpu_custom_call.1} parent=11 // pred_fallthru
          _
        // Predicated region
        $region77: #{tpu_custom_call.1} parent=11 // pred_check
          %p573 = pneg %p414
        $region78: #{tpu_custom_call.1} parent=11 // pred_check_branch
          %575 = sbr.rel (%p573) target = $region80
        $region79: #{tpu_custom_call.1} parent=11 // pred_region
          _
        $region80: #{tpu_custom_call.1} parent=11 // pred_fallthru
          _
      $region12: #{tpu_custom_call.1} parent=5 // pred_fallthru
        _
      %p576 = scmp.lt.s32.totalorder %s31, 2
      // Predicated region
      $region81: #{tpu_custom_call.1} parent=5 // pred_check
        %p577 = pneg %p576
      $region82: #{tpu_custom_call.1} parent=5 // pred_check_branch
        %579 = sbr.rel (%p577) target = $region84
      $region83: #{tpu_custom_call.1} parent=5 // pred_region
        // Predicated region
        $region85: #{tpu_custom_call.1} parent=83 // pred_check
          %p580 = pneg %p51
        $region86: #{tpu_custom_call.1} parent=83 // pred_check_branch
          %582 = sbr.rel (%p580) target = $region88
        $region87: #{tpu_custom_call.1} parent=83 // pred_region
          %s583 = smul.u32 4, %s31
          %p584 = scmp.lt.s32.totalorder %s583, 7
          %s585 = scalar_select %p584, %s583, 7
          %s586 = smul.addr %s585, 8
          %s587 = scalar_lea.vmem %s0, %s586
          %s588 = smul.u32 4, %s31
        $region88: #{tpu_custom_call.1} parent=83 // pred_fallthru
          _
      $region84: #{tpu_custom_call.1} parent=5 // pred_fallthru
        _
      %p589 = scmp.le.s32.totalorder 1, %s31
      %p590 = scmp.lt.s32.totalorder %s31, 3
      %p591 = pnand %p589, %p590
      %p592 = pneg %p591
      // Predicated region
      $region89: #{tpu_custom_call.1} parent=5 // pred_check
        _
      $region90: #{tpu_custom_call.1} parent=5 // pred_check_branch
        %594 = sbr.rel (%p591) target = $region92
      $region91: #{tpu_custom_call.1} parent=5 // pred_region
        %s595 = ssub.s32 %s31, 1
        // Predicated region
        $region93: #{tpu_custom_call.1} parent=91 // pred_check
          %p596 = pneg %p99
        $region94: #{tpu_custom_call.1} parent=91 // pred_check_branch
          %598 = sbr.rel (%p596) target = $region96
        $region95: #{tpu_custom_call.1} parent=91 // pred_region
          %599 = dma.done [#allocation3], 512
        $region96: #{tpu_custom_call.1} parent=91 // pred_fallthru
          _
        // Predicated region
        $region97: #{tpu_custom_call.1} parent=91 // pred_check
          %p600 = pneg %p120
        $region98: #{tpu_custom_call.1} parent=91 // pred_check_branch
          %602 = sbr.rel (%p600) target = $region100
        $region99: #{tpu_custom_call.1} parent=91 // pred_region
          %603 = dma.done [#allocation6], 6144
        $region100: #{tpu_custom_call.1} parent=91 // pred_fallthru
          _
        // Predicated region
        $region101: #{tpu_custom_call.1} parent=91 // pred_check
          %p604 = pneg %p141
        $region102: #{tpu_custom_call.1} parent=91 // pred_check_branch
          %606 = sbr.rel (%p604) target = $region104
        $region103: #{tpu_custom_call.1} parent=91 // pred_region
          %607 = dma.done [#allocation6], 2048
        $region104: #{tpu_custom_call.1} parent=91 // pred_fallthru
          _
        // Predicated region
        $region105: #{tpu_custom_call.1} parent=91 // pred_check
          %p608 = pneg %p183
        $region106: #{tpu_custom_call.1} parent=91 // pred_check_branch
          %610 = sbr.rel (%p608) target = $region108
        $region107: #{tpu_custom_call.1} parent=91 // pred_region
          %611 = dma.done [#allocation9], 32
        $region108: #{tpu_custom_call.1} parent=91 // pred_fallthru
          _
        // Predicated region
        $region109: #{tpu_custom_call.1} parent=91 // pred_check
          %p612 = pneg %p225
        $region110: #{tpu_custom_call.1} parent=91 // pred_check_branch
          %614 = sbr.rel (%p612) target = $region112
        $region111: #{tpu_custom_call.1} parent=91 // pred_region
          %615 = dma.done [#allocation9], 8192
        $region112: #{tpu_custom_call.1} parent=91 // pred_fallthru
          _
        // Predicated region
        $region113: #{tpu_custom_call.1} parent=91 // pred_check
          %p616 = pneg %p267
        $region114: #{tpu_custom_call.1} parent=91 // pred_check_branch
          %618 = sbr.rel (%p616) target = $region116
        $region115: #{tpu_custom_call.1} parent=91 // pred_region
          %619 = dma.done [#allocation12], 8192
        $region116: #{tpu_custom_call.1} parent=91 // pred_fallthru
          _
        // Predicated region
        $region117: #{tpu_custom_call.1} parent=91 // pred_check
          %p620 = pneg %p393
        $region118: #{tpu_custom_call.1} parent=91 // pred_check_branch
          %622 = sbr.rel (%p620) target = $region120
        $region119: #{tpu_custom_call.1} parent=91 // pred_region
          %623 = dma.done [#allocation12], 1024
        $region120: #{tpu_custom_call.1} parent=91 // pred_fallthru
          _
        %s624 = smul.u32 4, %s36
        %p625 = scmp.lt.s32.totalorder %s624, 7
        %s626 = scalar_select %p625, %s624, 7
        %s627 = smul.addr %s626, 8
        %s628 = scalar_lea.vmem %s0, %s627
        %p629 = pneg %p57
        %p630 = pneg %p54
        %p631 = pneg %p78
        %p632 = pneg %p75
        %p633 = pneg %p99
        %p634 = pneg %p96
        %p635 = pneg %p120
        %p636 = pneg %p117
        %p637 = pneg %p141
        %p638 = pneg %p138
        %p639 = pneg %p162
        %p640 = pneg %p159
        %p641 = pneg %p183
        %p642 = pneg %p180
        %p643 = pneg %p204
        %p644 = pneg %p201
        %p645 = pneg %p225
        %p646 = pneg %p222
        %p647 = pneg %p246
        %p648 = pneg %p243
        %p649 = pneg %p267
        %p650 = pneg %p264
        %p651 = pneg %p288
        %p652 = pneg %p285
        %p653 = pneg %p309
        %p654 = pneg %p306
        %p655 = pneg %p330
        %p656 = pneg %p327
        %p657 = pneg %p351
        %p658 = pneg %p348
        %p659 = pneg %p372
        %p660 = pneg %p369
        %p661 = pneg %p393
        %p662 = pneg %p390
        %p663 = pneg %p414
        %p664 = pneg %p411
        %p665 = pneg %p440
        %p666 = pneg %p437
        %s667 = sand.u32 %s427, 1
        %s668 = scalar_lea.sflag [#allocation4], %s667
        %s669 = sand.u32 %s427, 1
        %s670 = smul.addr %s669, 32
        %s671 = scalar_lea.vmem [#allocation14], %s670
        %s672 = smul.u32 4, %s36
        %p673 = scmp.lt.s32.totalorder %s672, 7
        %s674 = scalar_select %p673, %s672, 7
        %s675 = smul.addr %s674, 8
        %s676 = scalar_lea.vmem %s0, %s675
        %s677 = smul.u32 4, %s36
        %s678 = smul.u32 4, %s36
        %v680 = vld [vmem:[%s676] sm:$0xff]
        %v681 = vld [vmem:[%s676 + $0x8] sm:$0xff]
        %v682 = vld [vmem:[%s676 + $0x10] sm:$0xff]
        %v683 = vld [vmem:[%s676 + $0x18] sm:$0xff]
        %v684 = vlaneseq
        %v685 = vand.u32 %v684, 127
        %686 = vset.pattern.permute.xlu0 0
        %687 = vperm.xlu0 %686, %v680
        %v688 = vpop.permute.xlu0 %687
        %689 = vset.pattern.permute.xlu0 0
        %690 = vperm.xlu0 %689, %v681
        %v691 = vpop.permute.xlu0 %690
        %692 = vset.pattern.permute.xlu0 0
        %693 = vperm.xlu0 %692, %v682
        %v694 = vpop.permute.xlu0 %693
        %695 = vset.pattern.permute.xlu0 0
        %696 = vperm.xlu0 %695, %v683
        %v697 = vpop.permute.xlu0 %696
        %vm698 = vcmp.eq.s32.totalorder %v688, %v685
        %vm699 = vcmp.eq.s32.totalorder %v691, %v685
        %vm700 = vcmp.eq.s32.totalorder %v694, %v685
        %vm701 = vcmp.eq.s32.totalorder %v697, %v685
        %v702 = vsel %vm698, 1, 0
        %v703 = vsel %vm699, 1, 0
        %v704 = vsel %vm700, 1, 0
        %v705 = vsel %vm701, 1, 0
        %v706 = vcvt.s32.f32 %v702
        %v707 = vcvt.s32.f32 %v703
        %v708 = vcvt.s32.f32 %v704
        %v709 = vcvt.s32.f32 %v705
        %v710 = vpack.c.bf16 %v707, %v706
        %v711 = vpack.c.bf16 %v709, %v708
        %v712 = vld [vmem:[%s1] sm:$0xf]
        %v713 = vld [vmem:[%s1 + $0x4] sm:$0xf]
        %v714 = vld [vmem:[%s1 + $0x8] sm:$0xf]
        %v715 = vld [vmem:[%s1 + $0xc] sm:$0xf]
        %v716 = vld [vmem:[%s1 + $0x10] sm:$0xf]
        %v717 = vld [vmem:[%s1 + $0x14] sm:$0xf]
        %v718 = vld [vmem:[%s1 + $0x18] sm:$0xf]
        %v719 = vld [vmem:[%s1 + $0x1c] sm:$0xf]
        %v720 = vld [vmem:[%s1 + $0x20] sm:$0xf]
        %v721 = vld [vmem:[%s1 + $0x24] sm:$0xf]
        %v722 = vld [vmem:[%s1 + $0x28] sm:$0xf]
        %v723 = vld [vmem:[%s1 + $0x2c] sm:$0xf]
        %v724 = vld [vmem:[%s1 + $0x30] sm:$0xf]
        %v725 = vld [vmem:[%s1 + $0x34] sm:$0xf]
        %v726 = vld [vmem:[%s1 + $0x38] sm:$0xf]
        %v727 = vld [vmem:[%s1 + $0x3c] sm:$0xf]
        %v728 = vld [vmem:[#allocation2] sm:$0xff]
        %v729 = vld [vmem:[#allocation2 + $0x8] sm:$0xff]
        %v730 = vld [vmem:[#allocation2 + $0x10] sm:$0xff]
        %v731 = vld [vmem:[#allocation2 + $0x18] sm:$0xff]
        %v748 = vunpack.c.l.b16 %v712
        %v749 = vunpack.c.l.b16 %v713
        %v750 = vunpack.c.l.b16 %v714
        %v751 = vunpack.c.l.b16 %v715
        %v752 = vunpack.c.l.b16 %v716
        %v753 = vunpack.c.l.b16 %v717
        %v754 = vunpack.c.l.b16 %v718
        %v755 = vunpack.c.l.b16 %v719
        %v756 = vunpack.c.l.b16 %v720
        %v757 = vunpack.c.l.b16 %v721
        %v758 = vunpack.c.l.b16 %v722
        %v759 = vunpack.c.l.b16 %v723
        %v760 = vunpack.c.l.b16 %v724
        %v761 = vunpack.c.l.b16 %v725
        %v762 = vunpack.c.l.b16 %v726
        %v763 = vunpack.c.l.b16 %v727
        %v764 = vpack.c.b16 %v749, %v748
        %v765 = vpack.c.b16 %v751, %v750
        %v766 = vpack.c.b16 %v753, %v752
        %v767 = vpack.c.b16 %v755, %v754
        %v768 = vpack.c.b16 %v757, %v756
        %v769 = vpack.c.b16 %v759, %v758
        %v770 = vpack.c.b16 %v761, %v760
        %v771 = vpack.c.b16 %v763, %v762
        %780 = vmatprep.subr.bf16.mxu0 0
        %781 = vmatpush1.bf16.msra.mxu0 %v771
        %782 = vmatprep.subr.bf16.mxu0 0
        %783 = vmatpush1.bf16.msra.mxu0 %v770
        %784 = vmatprep.subr.bf16.mxu0 0
        %785 = vmatpush1.bf16.msra.mxu0 %v769
        %786 = vmatprep.subr.bf16.mxu0 0
        %787 = vmatpush1.bf16.msra.mxu0 %v768
        %788 = vmatprep.subr.bf16.mxu0 0
        %789 = vmatpush1.bf16.msra.mxu0 %v767
        %790 = vmatprep.subr.bf16.mxu0 0
        %791 = vmatpush1.bf16.msra.mxu0 %v766
        %792 = vmatprep.subr.bf16.mxu0 0
        %793 = vmatpush1.bf16.msra.mxu0 %v765
        %794 = vmatprep.subr.bf16.mxu0 0
        %795 = vmatpush1.bf16.msra.mxu0 %v764
        %796 = vmatprep.subr.bf16.mxu0 0
        %797 = vmatpush2.bf16.msra.mxu0 0
        %798 = vmatprep.subr.bf16.mxu0 0
        %799 = vmatpush2.bf16.msra.mxu0 0
        %800 = vmatprep.subr.bf16.mxu0 0
        %801 = vmatpush2.bf16.msra.mxu0 0
        %802 = vmatprep.subr.bf16.mxu0 0
        %803 = vmatpush2.bf16.msra.mxu0 0
        %804 = vmatprep.subr.bf16.mxu0 0
        %805 = vmatpush2.bf16.msra.mxu0 0
        %806 = vmatprep.subr.bf16.mxu0 0
        %807 = vmatpush2.bf16.msra.mxu0 0
        %808 = vmatprep.subr.bf16.mxu0 0
        %809 = vmatpush2.bf16.msra.mxu0 0
        %810 = vmatprep.subr.bf16.mxu0 0
        %811 = vmatpush2.bf16.msra.mxu0 0
        %812 = vmatprep.mubr.bf16.mxu0 0
        %813 = vmatmul.mubr.bf16.gmra.mxu0 %v710
        %v814 = vpop.f32.mrf.mxu0
        %v815 = vadd.f32 %v728, %v814
        %v816 = vpop.f32.mrf.mxu0
        %v817 = vpop.f32.mrf.mxu0
        %v818 = vadd.f32 %v729, %v817
        %v819 = vpop.f32.mrf.mxu0
        %820 = vmatprep.mubr.bf16.mxu0 0
        %821 = vmatmul.mubr.bf16.gmra.mxu0 %v711
        %v822 = vpop.f32.mrf.mxu0
        %v823 = vadd.f32 %v730, %v822
        %v824 = vpop.f32.mrf.mxu0
        %v825 = vpop.f32.mrf.mxu0
        %v826 = vadd.f32 %v731, %v825
        %v827 = vpop.f32.mrf.mxu0
        %828 = vdwg.mxu0
        %v829 = vlaneseq
        %v830 = vshrl.u32 %v829, 7
        %v831 = vadd.s32 %v830, 8
        %v832 = vadd.s32 %v830, 16
        %v833 = vadd.s32 %v830, 24
        %vm834 = vcmp.le.s32.totalorder %v685, %v830
        %vm835 = vcmp.le.s32.totalorder %v685, %v831
        %vm836 = vcmp.le.s32.totalorder %v685, %v832
        %vm837 = vcmp.le.s32.totalorder %v685, %v833
        %v838 = vsel %vm834, 0.0, -1e+30
        %v839 = vsel %vm835, 0.0, -1e+30
        %v840 = vsel %vm836, 0.0, -1e+30
        %v841 = vsel %vm837, 0.0, -1e+30
        %v842 = vpack.c.bf16 %v818, %v815
        %v843 = vpack.c.bf16 %v826, %v823
        %v844 = vld [vmem:[#allocation5] sm:$0xff]
        %v845 = vld [vmem:[#allocation5 + $0x8] sm:$0xf]
        %v846 = vld [vmem:[#allocation5 + $0xc] sm:$0xff]
        %v847 = vld [vmem:[#allocation5 + $0x14] sm:$0xf]
        %v848 = vld [vmem:[#allocation5 + $0x18] sm:$0xff]
        %v849 = vld [vmem:[#allocation5 + $0x20] sm:$0xf]
        %v850 = vld [vmem:[#allocation5 + $0x24] sm:$0xff]
        %v851 = vld [vmem:[#allocation5 + $0x2c] sm:$0xf]
        %v852 = vld [vmem:[#allocation5 + $0x30] sm:$0xff]
        %v853 = vld [vmem:[#allocation5 + $0x38] sm:$0xf]
        %v854 = vld [vmem:[#allocation5 + $0x3c] sm:$0xff]
        %v855 = vld [vmem:[#allocation5 + $0x44] sm:$0xf]
        %v856 = vld [vmem:[#allocation5 + $0x48] sm:$0xff]
        %v857 = vld [vmem:[#allocation5 + $0x50] sm:$0xf]
        %v858 = vld [vmem:[#allocation5 + $0x54] sm:$0xff]
        %v859 = vld [vmem:[#allocation5 + $0x5c] sm:$0xf]
        %v860 = vld [vmem:[#allocation5 + $0x60] sm:$0xff]
        %v861 = vld [vmem:[#allocation5 + $0x68] sm:$0xf]
        %v862 = vld [vmem:[#allocation5 + $0x6c] sm:$0xff]
        %v863 = vld [vmem:[#allocation5 + $0x74] sm:$0xf]
        %v864 = vld [vmem:[#allocation5 + $0x78] sm:$0xff]
        %v865 = vld [vmem:[#allocation5 + $0x80] sm:$0xf]
        %v866 = vld [vmem:[#allocation5 + $0x84] sm:$0xff]
        %v867 = vld [vmem:[#allocation5 + $0x8c] sm:$0xf]
        %v868 = vld [vmem:[#allocation5 + $0x90] sm:$0xff]
        %v869 = vld [vmem:[#allocation5 + $0x98] sm:$0xf]
        %v870 = vld [vmem:[#allocation5 + $0x9c] sm:$0xff]
        %v871 = vld [vmem:[#allocation5 + $0xa4] sm:$0xf]
        %v872 = vld [vmem:[#allocation5 + $0xa8] sm:$0xff]
        %v873 = vld [vmem:[#allocation5 + $0xb0] sm:$0xf]
        %v874 = vld [vmem:[#allocation5 + $0xb4] sm:$0xff]
        %v875 = vld [vmem:[#allocation5 + $0xbc] sm:$0xf]
        %v908 = vunpack.c.l.b16 %v844
        %v909 = vunpack.c.h.b16 %v844
        %v910 = vunpack.c.l.b16 %v845
        %v911 = vunpack.c.l.b16 %v846
        %v912 = vunpack.c.h.b16 %v846
        %v913 = vunpack.c.l.b16 %v847
        %v914 = vunpack.c.l.b16 %v848
        %v915 = vunpack.c.h.b16 %v848
        %v916 = vunpack.c.l.b16 %v849
        %v917 = vunpack.c.l.b16 %v850
        %v918 = vunpack.c.h.b16 %v850
        %v919 = vunpack.c.l.b16 %v851
        %v920 = vunpack.c.l.b16 %v852
        %v921 = vunpack.c.h.b16 %v852
        %v922 = vunpack.c.l.b16 %v853
        %v923 = vunpack.c.l.b16 %v854
        %v924 = vunpack.c.h.b16 %v854
        %v925 = vunpack.c.l.b16 %v855
        %v926 = vunpack.c.l.b16 %v856
        %v927 = vunpack.c.h.b16 %v856
        %v928 = vunpack.c.l.b16 %v857
        %v929 = vunpack.c.l.b16 %v858
        %v930 = vunpack.c.h.b16 %v858
        %v931 = vunpack.c.l.b16 %v859
        %v932 = vunpack.c.l.b16 %v860
        %v933 = vunpack.c.h.b16 %v860
        %v934 = vunpack.c.l.b16 %v861
        %v935 = vunpack.c.l.b16 %v862
        %v936 = vunpack.c.h.b16 %v862
        %v937 = vunpack.c.l.b16 %v863
        %v938 = vunpack.c.l.b16 %v864
        %v939 = vunpack.c.h.b16 %v864
        %v940 = vunpack.c.l.b16 %v865
        %v941 = vunpack.c.l.b16 %v866
        %v942 = vunpack.c.h.b16 %v866
        %v943 = vunpack.c.l.b16 %v867
        %v944 = vunpack.c.l.b16 %v868
        %v945 = vunpack.c.h.b16 %v868
        %v946 = vunpack.c.l.b16 %v869
        %v947 = vunpack.c.l.b16 %v870
        %v948 = vunpack.c.h.b16 %v870
        %v949 = vunpack.c.l.b16 %v871
        %v950 = vunpack.c.l.b16 %v872
        %v951 = vunpack.c.h.b16 %v872
        %v952 = vunpack.c.l.b16 %v873
        %v953 = vunpack.c.l.b16 %v874
        %v954 = vunpack.c.h.b16 %v874
        %v955 = vunpack.c.l.b16 %v875
        %v956 = vpack.c.b16 %v911, %v908
        %v957 = vpack.c.b16 %v912, %v909
        %v958 = vpack.c.b16 %v913, %v910
        %v959 = vpack.c.b16 %v917, %v914
        %v960 = vpack.c.b16 %v918, %v915
        %v961 = vpack.c.b16 %v919, %v916
        %v962 = vpack.c.b16 %v923, %v920
        %v963 = vpack.c.b16 %v924, %v921
        %v964 = vpack.c.b16 %v925, %v922
        %v965 = vpack.c.b16 %v929, %v926
        %v966 = vpack.c.b16 %v930, %v927
        %v967 = vpack.c.b16 %v931, %v928
        %v968 = vpack.c.b16 %v935, %v932
        %v969 = vpack.c.b16 %v936, %v933
        %v970 = vpack.c.b16 %v937, %v934
        %v971 = vpack.c.b16 %v941, %v938
        %v972 = vpack.c.b16 %v942, %v939
        %v973 = vpack.c.b16 %v943, %v940
        %v974 = vpack.c.b16 %v947, %v944
        %v975 = vpack.c.b16 %v948, %v945
        %v976 = vpack.c.b16 %v949, %v946
        %v977 = vpack.c.b16 %v953, %v950
        %v978 = vpack.c.b16 %v954, %v951
        %v979 = vpack.c.b16 %v955, %v952
        %1004 = vmatprep.subr.bf16.mxu0 %v978
        %1005 = vmatpush1.bf16.msra.mxu0 %v977
        %1006 = vmatprep.subr.bf16.mxu0 %v975
        %1007 = vmatpush1.bf16.msra.mxu0 %v974
        %1008 = vmatprep.subr.bf16.mxu0 %v972
        %1009 = vmatpush1.bf16.msra.mxu0 %v971
        %1010 = vmatprep.subr.bf16.mxu0 %v969
        %1011 = vmatpush1.bf16.msra.mxu0 %v968
        %1012 = vmatprep.subr.bf16.mxu0 %v966
        %1013 = vmatpush1.bf16.msra.mxu0 %v965
        %1014 = vmatprep.subr.bf16.mxu0 %v963
        %1015 = vmatpush1.bf16.msra.mxu0 %v962
        %1016 = vmatprep.subr.bf16.mxu0 %v960
        %1017 = vmatpush1.bf16.msra.mxu0 %v959
        %1018 = vmatprep.subr.bf16.mxu0 %v957
        %1019 = vmatpush1.bf16.msra.mxu0 %v956
        %1020 = vmatprep.subr.bf16.mxu0 0
        %1021 = vmatpush2.bf16.msra.mxu0 0
        %1022 = vmatprep.subr.bf16.mxu0 0
        %1023 = vmatpush2.bf16.msra.mxu0 0
        %1024 = vmatprep.subr.bf16.mxu0 0
        %1025 = vmatpush2.bf16.msra.mxu0 0
        %1026 = vmatprep.subr.bf16.mxu0 0
        %1027 = vmatpush2.bf16.msra.mxu0 0
        %1028 = vmatprep.subr.bf16.mxu0 0
        %1029 = vmatpush2.bf16.msra.mxu0 0
        %1030 = vmatprep.subr.bf16.mxu0 0
        %1031 = vmatpush2.bf16.msra.mxu0 0
        %1032 = vmatprep.subr.bf16.mxu0 0
        %1033 = vmatpush2.bf16.msra.mxu0 0
        %1034 = vmatprep.subr.bf16.mxu0 0
        %1035 = vmatpush2.bf16.msra.mxu0 0
        %1036 = vmatprep.mubr.bf16.mxu0 0
        %1037 = vmatmul.mubr.bf16.gmra.mxu0 %v842
        %v1038 = vpop.f32.mrf.mxu0
        %v1039 = vadd.f32 0.0, %v1038
        %v1040 = vpop.f32.mrf.mxu0
        %v1041 = vadd.f32 0.0, %v1040
        %v1042 = vpop.f32.mrf.mxu0
        %v1043 = vadd.f32 0.0, %v1042
        %v1044 = vpop.f32.mrf.mxu0
        %v1045 = vadd.f32 0.0, %v1044
        %1046 = vmatprep.mubr.bf16.mxu0 0
        %1047 = vmatmul.mubr.bf16.gmra.mxu0 %v843
        %v1048 = vpop.f32.mrf.mxu0
        %v1049 = vadd.f32 0.0, %v1048
        %v1050 = vpop.f32.mrf.mxu0
        %v1051 = vadd.f32 0.0, %v1050
        %v1052 = vpop.f32.mrf.mxu0
        %v1053 = vadd.f32 0.0, %v1052
        %v1054 = vpop.f32.mrf.mxu0
        %v1055 = vadd.f32 0.0, %v1054
        %1056 = vdwg.mxu0
        %1057 = vmatprep.subr.bf16.mxu0 0
        %1058 = vmatpush1.bf16.msra.mxu0 %v979
        %1059 = vmatprep.subr.bf16.mxu0 0
        %1060 = vmatpush1.bf16.msra.mxu0 %v976
        %1061 = vmatprep.subr.bf16.mxu0 0
        %1062 = vmatpush1.bf16.msra.mxu0 %v973
        %1063 = vmatprep.subr.bf16.mxu0 0
        %1064 = vmatpush1.bf16.msra.mxu0 %v970
        %1065 = vmatprep.subr.bf16.mxu0 0
        %1066 = vmatpush1.bf16.msra.mxu0 %v967
        %1067 = vmatprep.subr.bf16.mxu0 0
        %1068 = vmatpush1.bf16.msra.mxu0 %v964
        %1069 = vmatprep.subr.bf16.mxu0 0
        %1070 = vmatpush1.bf16.msra.mxu0 %v961
        %1071 = vmatprep.subr.bf16.mxu0 0
        %1072 = vmatpush1.bf16.msra.mxu0 %v958
        %1073 = vmatprep.subr.bf16.mxu0 0
        %1074 = vmatpush2.bf16.msra.mxu0 0
        %1075 = vmatprep.subr.bf16.mxu0 0
        %1076 = vmatpush2.bf16.msra.mxu0 0
        %1077 = vmatprep.subr.bf16.mxu0 0
        %1078 = vmatpush2.bf16.msra.mxu0 0
        %1079 = vmatprep.subr.bf16.mxu0 0
        %1080 = vmatpush2.bf16.msra.mxu0 0
        %1081 = vmatprep.subr.bf16.mxu0 0
        %1082 = vmatpush2.bf16.msra.mxu0 0
        %1083 = vmatprep.subr.bf16.mxu0 0
        %1084 = vmatpush2.bf16.msra.mxu0 0
        %1085 = vmatprep.subr.bf16.mxu0 0
        %1086 = vmatpush2.bf16.msra.mxu0 0
        %1087 = vmatprep.subr.bf16.mxu0 0
        %1088 = vmatpush2.bf16.msra.mxu0 0
        %1089 = vmatprep.mubr.bf16.mxu0 0
        %1090 = vmatmul.mubr.bf16.gmra.mxu0 %v842
        %v1091 = vpop.f32.mrf.mxu0
        %v1092 = vadd.f32 0.0, %v1091
        %v1093 = vpop.f32.mrf.mxu0
        %v1094 = vpop.f32.mrf.mxu0
        %v1095 = vadd.f32 0.0, %v1094
        %v1096 = vpop.f32.mrf.mxu0
        %1097 = vmatprep.mubr.bf16.mxu0 0
        %1098 = vmatmul.mubr.bf16.gmra.mxu0 %v843
        %v1099 = vpop.f32.mrf.mxu0
        %v1100 = vadd.f32 0.0, %v1099
        %v1101 = vpop.f32.mrf.mxu0
        %v1102 = vpop.f32.mrf.mxu0
        %v1103 = vadd.f32 0.0, %v1102
        %v1104 = vpop.f32.mrf.mxu0
        %1105 = vdwg.mxu0
        %v1106 = vld [vmem:[#allocation7] sm:$0xf]
        %v1107 = vld [vmem:[#allocation7 + $0x4] sm:$0xf]
        %v1108 = vld [vmem:[#allocation7 + $0x8] sm:$0xf]
        %v1109 = vld [vmem:[#allocation7 + $0xc] sm:$0xf]
        %v1110 = vld [vmem:[#allocation7 + $0x10] sm:$0xf]
        %v1111 = vld [vmem:[#allocation7 + $0x14] sm:$0xf]
        %v1112 = vld [vmem:[#allocation7 + $0x18] sm:$0xf]
        %v1113 = vld [vmem:[#allocation7 + $0x1c] sm:$0xf]
        %v1114 = vld [vmem:[#allocation7 + $0x20] sm:$0xf]
        %v1115 = vld [vmem:[#allocation7 + $0x24] sm:$0xf]
        %v1116 = vld [vmem:[#allocation7 + $0x28] sm:$0xf]
        %v1117 = vld [vmem:[#allocation7 + $0x2c] sm:$0xf]
        %v1118 = vld [vmem:[#allocation7 + $0x30] sm:$0xf]
        %v1119 = vld [vmem:[#allocation7 + $0x34] sm:$0xf]
        %v1120 = vld [vmem:[#allocation7 + $0x38] sm:$0xf]
        %v1121 = vld [vmem:[#allocation7 + $0x3c] sm:$0xf]
        %v1122 = vpack.c.bf16 %v1043, %v1039
        %v1123 = vpack.c.bf16 %v1053, %v1049
        %v1124 = vpack.c.bf16 %v1045, %v1041
        %v1125 = vpack.c.bf16 %v1055, %v1051
        %v1126 = vpack.c.bf16 %v1095, %v1092
        %v1127 = vpack.c.bf16 %v1103, %v1100
        %vm1128 = vcmask 261120
        %v1130 = vsel %vm1128, %v1122, 0
        %v1133 = vsel %vm1128, %v1123, 0
        %v1136 = vsel %vm1128, %v1124, 0
        %v1139 = vsel %vm1128, %v1125, 0
        %1141 = vmatprep.subr.bf16.mxu0 0
        %1142 = vmatpush1.bf16.xpose.msra.mxu0 0
        %1143 = vmatprep.subr.bf16.mxu0 0
        %1144 = vmatpush1.bf16.xpose.msra.mxu0 0
        %1145 = vmatprep.subr.bf16.mxu0 0
        %1146 = vmatpush1.bf16.xpose.msra.mxu0 0
        %1147 = vmatprep.subr.bf16.mxu0 0
        %1148 = vmatpush1.bf16.xpose.msra.mxu0 0
        %1149 = vmatprep.subr.bf16.mxu0 0
        %1150 = vmatpush1.bf16.xpose.msra.mxu0 0
        %1151 = vmatprep.subr.bf16.mxu0 0
        %1152 = vmatpush1.bf16.xpose.msra.mxu0 0
        %1153 = vmatprep.subr.bf16.mxu0 0
        %1154 = vmatpush1.bf16.xpose.msra.mxu0 %v1139
        %1155 = vmatprep.subr.bf16.mxu0 0
        %1156 = vmatpush1.bf16.xpose.msra.mxu0 %v1136
        %1157 = vmatprep.subr.bf16.mxu0 0
        %1158 = vmatpush2.bf16.xpose.msra.mxu0 0
        %1159 = vmatprep.subr.bf16.mxu0 0
        %1160 = vmatpush2.bf16.xpose.msra.mxu0 0
        %1161 = vmatprep.subr.bf16.mxu0 0
        %1162 = vmatpush2.bf16.xpose.msra.mxu0 0
        %1163 = vmatprep.subr.bf16.mxu0 0
        %1164 = vmatpush2.bf16.xpose.msra.mxu0 0
        %1165 = vmatprep.subr.bf16.mxu0 0
        %1166 = vmatpush2.bf16.xpose.msra.mxu0 0
        %1167 = vmatprep.subr.bf16.mxu0 0
        %1168 = vmatpush2.bf16.xpose.msra.mxu0 0
        %1169 = vmatprep.subr.bf16.mxu0 0
        %1170 = vmatpush2.bf16.xpose.msra.mxu0 0
        %1171 = vmatprep.subr.bf16.mxu0 0
        %1172 = vmatpush2.bf16.xpose.msra.mxu0 0
        %1173 = vmatprep.mubr.bf16.mxu0 0
        %1174 = vmatmul.mubr.bf16.gmra.mxu0 %v1130
        %v1175 = vpop.f32.mrf.mxu0
        %v1176 = vadd.f32 %v838, %v1175
        %v1177 = vpop.f32.mrf.mxu0
        %v1178 = vpop.f32.mrf.mxu0
        %v1179 = vadd.f32 %v839, %v1178
        %v1180 = vpop.f32.mrf.mxu0
        %1181 = vmatprep.mubr.bf16.mxu0 0
        %1182 = vmatmul.mubr.bf16.gmra.mxu0 %v1133
        %v1183 = vpop.f32.mrf.mxu0
        %v1184 = vadd.f32 %v840, %v1183
        %v1185 = vpop.f32.mrf.mxu0
        %v1186 = vpop.f32.mrf.mxu0
        %v1187 = vadd.f32 %v841, %v1186
        %v1188 = vpop.f32.mrf.mxu0
        %1189 = vdwg.mxu0
        %v1190 = vsel %vm1128, %v1176, -inf
        %1191 = vmax.xlane.f32.xlu0 %v1190
        %v1192 = vpop.xlane.xlu0 %1191
        %v1193 = vsel %vm1128, %v1179, -inf
        %1194 = vmax.xlane.f32.xlu0 %v1193
        %v1195 = vpop.xlane.xlu0 %1194
        %v1196 = vsel %vm1128, %v1184, -inf
        %1197 = vmax.xlane.f32.xlu0 %v1196
        %v1198 = vpop.xlane.xlu0 %1197
        %v1199 = vsel %vm1128, %v1187, -inf
        %1200 = vmax.xlane.f32.xlu0 %v1199
        %v1201 = vpop.xlane.xlu0 %1200
        %v1202 = vsub.f32 %v1176, %v1192
        %v1203 = vsub.f32 %v1179, %v1195
        %v1204 = vsub.f32 %v1184, %v1198
        %v1205 = vsub.f32 %v1187, %v1201
        %v1206 = vmul.f32 %v1202, 1.442695
        %v1207 = vpow.pop %v1206
        %v1208 = vmul.f32 %v1203, 1.442695
        %v1209 = vpow.pop %v1208
        %v1210 = vmul.f32 %v1204, 1.442695
        %v1211 = vpow.pop %v1210
        %v1212 = vmul.f32 %v1205, 1.442695
        %v1213 = vpow.pop %v1212
        %v1214 = vsel %vm1128, %v1207, 0.0
        %1215 = vadd.xlane.f32.xlu0 %v1214
        %v1216 = vpop.xlane.xlu0 %1215
        %v1217 = vsel %vm1128, %v1209, 0.0
        %1218 = vadd.xlane.f32.xlu0 %v1217
        %v1219 = vpop.xlane.xlu0 %1218
        %v1220 = vsel %vm1128, %v1211, 0.0
        %1221 = vadd.xlane.f32.xlu0 %v1220
        %v1222 = vpop.xlane.xlu0 %1221
        %v1223 = vsel %vm1128, %v1213, 0.0
        %1224 = vadd.xlane.f32.xlu0 %v1223
        %v1225 = vpop.xlane.xlu0 %1224
        %v1226 = vrcp.pop %v1216
        %v1227 = vrcp.pop %v1219
        %v1228 = vrcp.pop %v1222
        %v1229 = vrcp.pop %v1225
        %v1230 = vmul.f32 %v1207, %v1226
        %v1231 = vmul.f32 %v1209, %v1227
        %v1232 = vmul.f32 %v1211, %v1228
        %v1233 = vmul.f32 %v1213, %v1229
        %v1234 = vpack.c.bf16 %v1231, %v1230
        %v1235 = vpack.c.bf16 %v1233, %v1232
        %v1237 = vsel %vm1128, %v1234, 0
        %v1240 = vsel %vm1128, %v1235, 0
        %1242 = vmatprep.subr.bf16.mxu0 0
        %1243 = vmatpush1.bf16.msra.mxu0 0
        %1244 = vmatprep.subr.bf16.mxu0 0
        %1245 = vmatpush1.bf16.msra.mxu0 0
        %1246 = vmatprep.subr.bf16.mxu0 0
        %1247 = vmatpush1.bf16.msra.mxu0 0
        %1248 = vmatprep.subr.bf16.mxu0 0
        %1249 = vmatpush1.bf16.msra.mxu0 0
        %1250 = vmatprep.subr.bf16.mxu0 0
        %1251 = vmatpush1.bf16.msra.mxu0 0
        %1252 = vmatprep.subr.bf16.mxu0 0
        %1253 = vmatpush1.bf16.msra.mxu0 0
        %1254 = vmatprep.subr.bf16.mxu0 0
        %1255 = vmatpush1.bf16.msra.mxu0 %v1127
        %1256 = vmatprep.subr.bf16.mxu0 0
        %1257 = vmatpush1.bf16.msra.mxu0 %v1126
        %1258 = vmatprep.subr.bf16.mxu0 0
        %1259 = vmatpush2.bf16.msra.mxu0 0
        %1260 = vmatprep.subr.bf16.mxu0 0
        %1261 = vmatpush2.bf16.msra.mxu0 0
        %1262 = vmatprep.subr.bf16.mxu0 0
        %1263 = vmatpush2.bf16.msra.mxu0 0
        %1264 = vmatprep.subr.bf16.mxu0 0
        %1265 = vmatpush2.bf16.msra.mxu0 0
        %1266 = vmatprep.subr.bf16.mxu0 0
        %1267 = vmatpush2.bf16.msra.mxu0 0
        %1268 = vmatprep.subr.bf16.mxu0 0
        %1269 = vmatpush2.bf16.msra.mxu0 0
        %1270 = vmatprep.subr.bf16.mxu0 0
        %1271 = vmatpush2.bf16.msra.mxu0 0
        %1272 = vmatprep.subr.bf16.mxu0 0
        %1273 = vmatpush2.bf16.msra.mxu0 0
        %1274 = vmatprep.mubr.bf16.mxu0 0
        %1275 = vmatmul.mubr.bf16.gmra.mxu0 %v1237
        %v1276 = vpop.f32.mrf.mxu0
        %v1277 = vadd.f32 0.0, %v1276
        %v1278 = vpop.f32.mrf.mxu0
        %v1279 = vpop.f32.mrf.mxu0
        %v1280 = vadd.f32 0.0, %v1279
        %v1281 = vpop.f32.mrf.mxu0
        %1282 = vmatprep.mubr.bf16.mxu0 0
        %1283 = vmatmul.mubr.bf16.gmra.mxu0 %v1240
        %v1284 = vpop.f32.mrf.mxu0
        %v1285 = vadd.f32 0.0, %v1284
        %v1286 = vpop.f32.mrf.mxu0
        %v1287 = vpop.f32.mrf.mxu0
        %v1288 = vadd.f32 0.0, %v1287
        %v1289 = vpop.f32.mrf.mxu0
        %1290 = vdwg.mxu0
        %v1291 = vpack.c.bf16 %v1280, %v1277
        %v1292 = vpack.c.bf16 %v1288, %v1285
        %1295 = vrot.lane.b32.xlu0 %v1122, 96
        %v1296 = vpop.permute.xlu0 %1295
        %1297 = vrot.lane.b32.xlu0 %v1123, 96
        %v1298 = vpop.permute.xlu0 %1297
        %1301 = vrot.lane.b32.xlu0 %v1124, 96
        %v1302 = vpop.permute.xlu0 %1301
        %1303 = vrot.lane.b32.xlu0 %v1125, 96
        %v1304 = vpop.permute.xlu0 %1303
        %v1306 = vsel %vm1128, %v1296, 0
        %v1309 = vsel %vm1128, %v1298, 0
        %v1312 = vsel %vm1128, %v1302, 0
        %v1315 = vsel %vm1128, %v1304, 0
        %1317 = vmatprep.subr.bf16.mxu0 0
        %1318 = vmatpush1.bf16.xpose.msra.mxu0 0
        %1319 = vmatprep.subr.bf16.mxu0 0
        %1320 = vmatpush1.bf16.xpose.msra.mxu0 0
        %1321 = vmatprep.subr.bf16.mxu0 0
        %1322 = vmatpush1.bf16.xpose.msra.mxu0 0
        %1323 = vmatprep.subr.bf16.mxu0 0
        %1324 = vmatpush1.bf16.xpose.msra.mxu0 0
        %1325 = vmatprep.subr.bf16.mxu0 0
        %1326 = vmatpush1.bf16.xpose.msra.mxu0 0
        %1327 = vmatprep.subr.bf16.mxu0 0
        %1328 = vmatpush1.bf16.xpose.msra.mxu0 0
        %1329 = vmatprep.subr.bf16.mxu0 0
        %1330 = vmatpush1.bf16.xpose.msra.mxu0 %v1315
        %1331 = vmatprep.subr.bf16.mxu0 0
        %1332 = vmatpush1.bf16.xpose.msra.mxu0 %v1312
        %1333 = vmatprep.subr.bf16.mxu0 0
        %1334 = vmatpush2.bf16.xpose.msra.mxu0 0
        %1335 = vmatprep.subr.bf16.mxu0 0
        %1336 = vmatpush2.bf16.xpose.msra.mxu0 0
        %1337 = vmatprep.subr.bf16.mxu0 0
        %1338 = vmatpush2.bf16.xpose.msra.mxu0 0
        %1339 = vmatprep.subr.bf16.mxu0 0
        %1340 = vmatpush2.bf16.xpose.msra.mxu0 0
        %1341 = vmatprep.subr.bf16.mxu0 0
        %1342 = vmatpush2.bf16.xpose.msra.mxu0 0
        %1343 = vmatprep.subr.bf16.mxu0 0
        %1344 = vmatpush2.bf16.xpose.msra.mxu0 0
        %1345 = vmatprep.subr.bf16.mxu0 0
        %1346 = vmatpush2.bf16.xpose.msra.mxu0 0
        %1347 = vmatprep.subr.bf16.mxu0 0
        %1348 = vmatpush2.bf16.xpose.msra.mxu0 0
        %1349 = vmatprep.mubr.bf16.mxu0 0
        %1350 = vmatmul.mubr.bf16.gmra.mxu0 %v1306
        %v1351 = vpop.f32.mrf.mxu0
        %v1352 = vadd.f32 %v838, %v1351
        %v1353 = vpop.f32.mrf.mxu0
        %v1354 = vpop.f32.mrf.mxu0
        %v1355 = vadd.f32 %v839, %v1354
        %v1356 = vpop.f32.mrf.mxu0
        %1357 = vmatprep.mubr.bf16.mxu0 0
        %1358 = vmatmul.mubr.bf16.gmra.mxu0 %v1309
        %v1359 = vpop.f32.mrf.mxu0
        %v1360 = vadd.f32 %v840, %v1359
        %v1361 = vpop.f32.mrf.mxu0
        %v1362 = vpop.f32.mrf.mxu0
        %v1363 = vadd.f32 %v841, %v1362
        %v1364 = vpop.f32.mrf.mxu0
        %1365 = vdwg.mxu0
        %v1366 = vsel %vm1128, %v1352, -inf
        %1367 = vmax.xlane.f32.xlu0 %v1366
        %v1368 = vpop.xlane.xlu0 %1367
        %v1369 = vsel %vm1128, %v1355, -inf
        %1370 = vmax.xlane.f32.xlu0 %v1369
        %v1371 = vpop.xlane.xlu0 %1370
        %v1372 = vsel %vm1128, %v1360, -inf
        %1373 = vmax.xlane.f32.xlu0 %v1372
        %v1374 = vpop.xlane.xlu0 %1373
        %v1375 = vsel %vm1128, %v1363, -inf
        %1376 = vmax.xlane.f32.xlu0 %v1375
        %v1377 = vpop.xlane.xlu0 %1376
        %v1378 = vsub.f32 %v1352, %v1368
        %v1379 = vsub.f32 %v1355, %v1371
        %v1380 = vsub.f32 %v1360, %v1374
        %v1381 = vsub.f32 %v1363, %v1377
        %v1382 = vmul.f32 %v1378, 1.442695
        %v1383 = vpow.pop %v1382
        %v1384 = vmul.f32 %v1379, 1.442695
        %v1385 = vpow.pop %v1384
        %v1386 = vmul.f32 %v1380, 1.442695
        %v1387 = vpow.pop %v1386
        %v1388 = vmul.f32 %v1381, 1.442695
        %v1389 = vpow.pop %v1388
        %v1390 = vsel %vm1128, %v1383, 0.0
        %1391 = vadd.xlane.f32.xlu0 %v1390
        %v1392 = vpop.xlane.xlu0 %1391
        %v1393 = vsel %vm1128, %v1385, 0.0
        %1394 = vadd.xlane.f32.xlu0 %v1393
        %v1395 = vpop.xlane.xlu0 %1394
        %v1396 = vsel %vm1128, %v1387, 0.0
        %1397 = vadd.xlane.f32.xlu0 %v1396
        %v1398 = vpop.xlane.xlu0 %1397
        %v1399 = vsel %vm1128, %v1389, 0.0
        %1400 = vadd.xlane.f32.xlu0 %v1399
        %v1401 = vpop.xlane.xlu0 %1400
        %v1402 = vrcp.pop %v1392
        %v1403 = vrcp.pop %v1395
        %v1404 = vrcp.pop %v1398
        %v1405 = vrcp.pop %v1401
        %v1406 = vmul.f32 %v1383, %v1402
        %v1407 = vmul.f32 %v1385, %v1403
        %v1408 = vmul.f32 %v1387, %v1404
        %v1409 = vmul.f32 %v1389, %v1405
        %v1410 = vpack.c.bf16 %v1407, %v1406
        %v1411 = vpack.c.bf16 %v1409, %v1408
        %1414 = vrot.lane.b32.xlu0 %v1126, 96
        %v1415 = vpop.permute.xlu0 %1414
        %1416 = vrot.lane.b32.xlu0 %v1127, 96
        %v1417 = vpop.permute.xlu0 %1416
        %v1421 = vsel %vm1128, %v1410, 0
        %v1424 = vsel %vm1128, %v1411, 0
        %1426 = vmatprep.subr.bf16.mxu0 0
        %1427 = vmatpush1.bf16.msra.mxu0 0
        %1428 = vmatprep.subr.bf16.mxu0 0
        %1429 = vmatpush1.bf16.msra.mxu0 0
        %1430 = vmatprep.subr.bf16.mxu0 0
        %1431 = vmatpush1.bf16.msra.mxu0 0
        %1432 = vmatprep.subr.bf16.mxu0 0
        %1433 = vmatpush1.bf16.msra.mxu0 0
        %1434 = vmatprep.subr.bf16.mxu0 0
        %1435 = vmatpush1.bf16.msra.mxu0 0
        %1436 = vmatprep.subr.bf16.mxu0 0
        %1437 = vmatpush1.bf16.msra.mxu0 0
        %1438 = vmatprep.subr.bf16.mxu0 0
        %1439 = vmatpush1.bf16.msra.mxu0 %v1417
        %1440 = vmatprep.subr.bf16.mxu0 0
        %1441 = vmatpush1.bf16.msra.mxu0 %v1415
        %1442 = vmatprep.subr.bf16.mxu0 0
        %1443 = vmatpush2.bf16.msra.mxu0 0
        %1444 = vmatprep.subr.bf16.mxu0 0
        %1445 = vmatpush2.bf16.msra.mxu0 0
        %1446 = vmatprep.subr.bf16.mxu0 0
        %1447 = vmatpush2.bf16.msra.mxu0 0
        %1448 = vmatprep.subr.bf16.mxu0 0
        %1449 = vmatpush2.bf16.msra.mxu0 0
        %1450 = vmatprep.subr.bf16.mxu0 0
        %1451 = vmatpush2.bf16.msra.mxu0 0
        %1452 = vmatprep.subr.bf16.mxu0 0
        %1453 = vmatpush2.bf16.msra.mxu0 0
        %1454 = vmatprep.subr.bf16.mxu0 0
        %1455 = vmatpush2.bf16.msra.mxu0 0
        %1456 = vmatprep.subr.bf16.mxu0 0
        %1457 = vmatpush2.bf16.msra.mxu0 0
        %1458 = vmatprep.mubr.bf16.mxu0 0
        %1459 = vmatmul.mubr.bf16.gmra.mxu0 %v1421
        %v1460 = vpop.f32.mrf.mxu0
        %v1461 = vadd.f32 0.0, %v1460
        %v1462 = vpop.f32.mrf.mxu0
        %v1463 = vpop.f32.mrf.mxu0
        %v1464 = vadd.f32 0.0, %v1463
        %v1465 = vpop.f32.mrf.mxu0
        %1466 = vmatprep.mubr.bf16.mxu0 0
        %1467 = vmatmul.mubr.bf16.gmra.mxu0 %v1424
        %v1468 = vpop.f32.mrf.mxu0
        %v1469 = vadd.f32 0.0, %v1468
        %v1470 = vpop.f32.mrf.mxu0
        %v1471 = vpop.f32.mrf.mxu0
        %v1472 = vadd.f32 0.0, %v1471
        %v1473 = vpop.f32.mrf.mxu0
        %1474 = vdwg.mxu0
        %v1475 = vpack.c.bf16 %v1464, %v1461
        %v1476 = vpack.c.bf16 %v1472, %v1469
        %v1481 = vunpack.c.l.b16 %v1110
        %v1482 = vunpack.c.l.b16 %v1111
        %v1483 = vunpack.c.l.b16 %v1112
        %v1484 = vunpack.c.l.b16 %v1113
        %v1485 = vpack.c.b16 %v1482, %v1481
        %v1486 = vpack.c.b16 %v1484, %v1483
        %v1490 = vsel %vm1128, %v1475, 0
        %v1493 = vsel %vm1128, %v1476, 0
        %1495 = vmatprep.subr.bf16.mxu0 0
        %1496 = vmatpush1.bf16.msra.mxu0 0
        %1497 = vmatprep.subr.bf16.mxu0 0
        %1498 = vmatpush1.bf16.msra.mxu0 0
        %1499 = vmatprep.subr.bf16.mxu0 0
        %1500 = vmatpush1.bf16.msra.mxu0 0
        %1501 = vmatprep.subr.bf16.mxu0 0
        %1502 = vmatpush1.bf16.msra.mxu0 0
        %1503 = vmatprep.subr.bf16.mxu0 0
        %1504 = vmatpush1.bf16.msra.mxu0 0
        %1505 = vmatprep.subr.bf16.mxu0 0
        %1506 = vmatpush1.bf16.msra.mxu0 0
        %1507 = vmatprep.subr.bf16.mxu0 0
        %1508 = vmatpush1.bf16.msra.mxu0 %v1486
        %1509 = vmatprep.subr.bf16.mxu0 0
        %1510 = vmatpush1.bf16.msra.mxu0 %v1485
        %1511 = vmatprep.subr.bf16.mxu0 0
        %1512 = vmatpush2.bf16.msra.mxu0 0
        %1513 = vmatprep.subr.bf16.mxu0 0
        %1514 = vmatpush2.bf16.msra.mxu0 0
        %1515 = vmatprep.subr.bf16.mxu0 0
        %1516 = vmatpush2.bf16.msra.mxu0 0
        %1517 = vmatprep.subr.bf16.mxu0 0
        %1518 = vmatpush2.bf16.msra.mxu0 0
        %1519 = vmatprep.subr.bf16.mxu0 0
        %1520 = vmatpush2.bf16.msra.mxu0 0
        %1521 = vmatprep.subr.bf16.mxu0 0
        %1522 = vmatpush2.bf16.msra.mxu0 0
        %1523 = vmatprep.subr.bf16.mxu0 0
        %1524 = vmatpush2.bf16.msra.mxu0 0
        %1525 = vmatprep.subr.bf16.mxu0 0
        %1526 = vmatpush2.bf16.msra.mxu0 0
        %1527 = vmatprep.mubr.bf16.mxu0 0
        %1528 = vmatmul.mubr.bf16.gmra.mxu0 %v1490
        %v1529 = vpop.f32.mrf.mxu0
        %v1530 = vadd.f32 0.0, %v1529
        %v1531 = vpop.f32.mrf.mxu0
        %v1532 = vpop.f32.mrf.mxu0
        %v1533 = vadd.f32 0.0, %v1532
        %v1534 = vpop.f32.mrf.mxu0
        %1535 = vmatprep.mubr.bf16.mxu0 0
        %1536 = vmatmul.mubr.bf16.gmra.mxu0 %v1493
        %v1537 = vpop.f32.mrf.mxu0
        %v1538 = vadd.f32 0.0, %v1537
        %v1539 = vpop.f32.mrf.mxu0
        %v1540 = vpop.f32.mrf.mxu0
        %v1541 = vadd.f32 0.0, %v1540
        %v1542 = vpop.f32.mrf.mxu0
        %1543 = vdwg.mxu0
        %v1548 = vunpack.c.l.b16 %v1106
        %v1549 = vunpack.c.l.b16 %v1107
        %v1550 = vunpack.c.l.b16 %v1108
        %v1551 = vunpack.c.l.b16 %v1109
        %v1552 = vpack.c.b16 %v1549, %v1548
        %v1553 = vpack.c.b16 %v1551, %v1550
        %v1557 = vsel %vm1128, %v1291, 0
        %v1560 = vsel %vm1128, %v1292, 0
        %1562 = vmatprep.subr.bf16.mxu0 0
        %1563 = vmatpush1.bf16.msra.mxu0 0
        %1564 = vmatprep.subr.bf16.mxu0 0
        %1565 = vmatpush1.bf16.msra.mxu0 0
        %1566 = vmatprep.subr.bf16.mxu0 0
        %1567 = vmatpush1.bf16.msra.mxu0 0
        %1568 = vmatprep.subr.bf16.mxu0 0
        %1569 = vmatpush1.bf16.msra.mxu0 0
        %1570 = vmatprep.subr.bf16.mxu0 0
        %1571 = vmatpush1.bf16.msra.mxu0 0
        %1572 = vmatprep.subr.bf16.mxu0 0
        %1573 = vmatpush1.bf16.msra.mxu0 0
        %1574 = vmatprep.subr.bf16.mxu0 0
        %1575 = vmatpush1.bf16.msra.mxu0 %v1553
        %1576 = vmatprep.subr.bf16.mxu0 0
        %1577 = vmatpush1.bf16.msra.mxu0 %v1552
        %1578 = vmatprep.subr.bf16.mxu0 0
        %1579 = vmatpush2.bf16.msra.mxu0 0
        %1580 = vmatprep.subr.bf16.mxu0 0
        %1581 = vmatpush2.bf16.msra.mxu0 0
        %1582 = vmatprep.subr.bf16.mxu0 0
        %1583 = vmatpush2.bf16.msra.mxu0 0
        %1584 = vmatprep.subr.bf16.mxu0 0
        %1585 = vmatpush2.bf16.msra.mxu0 0
        %1586 = vmatprep.subr.bf16.mxu0 0
        %1587 = vmatpush2.bf16.msra.mxu0 0
        %1588 = vmatprep.subr.bf16.mxu0 0
        %1589 = vmatpush2.bf16.msra.mxu0 0
        %1590 = vmatprep.subr.bf16.mxu0 0
        %1591 = vmatpush2.bf16.msra.mxu0 0
        %1592 = vmatprep.subr.bf16.mxu0 0
        %1593 = vmatpush2.bf16.msra.mxu0 0
        %1594 = vmatprep.mubr.bf16.mxu0 0
        %1595 = vmatmul.mubr.bf16.gmra.mxu0 %v1557
        %v1596 = vpop.f32.mrf.mxu0
        %v1597 = vadd.f32 %v1530, %v1596
        %v1598 = vpop.f32.mrf.mxu0
        %v1599 = vpop.f32.mrf.mxu0
        %v1600 = vadd.f32 %v1533, %v1599
        %v1601 = vpop.f32.mrf.mxu0
        %1602 = vmatprep.mubr.bf16.mxu0 0
        %1603 = vmatmul.mubr.bf16.gmra.mxu0 %v1560
        %v1604 = vpop.f32.mrf.mxu0
        %v1605 = vadd.f32 %v1538, %v1604
        %v1606 = vpop.f32.mrf.mxu0
        %v1607 = vpop.f32.mrf.mxu0
        %v1608 = vadd.f32 %v1541, %v1607
        %v1609 = vpop.f32.mrf.mxu0
        %1610 = vdwg.mxu0
        %1611 = vrot.lane.b32.xlu0 %v1122, 64
        %v1612 = vpop.permute.xlu0 %1611
        %1613 = vrot.lane.b32.xlu0 %v1123, 64
        %v1614 = vpop.permute.xlu0 %1613
        %1615 = vrot.lane.b32.xlu0 %v1124, 64
        %v1616 = vpop.permute.xlu0 %1615
        %1617 = vrot.lane.b32.xlu0 %v1125, 64
        %v1618 = vpop.permute.xlu0 %1617
        %v1620 = vsel %vm1128, %v1612, 0
        %v1623 = vsel %vm1128, %v1614, 0
        %v1626 = vsel %vm1128, %v1616, 0
        %v1629 = vsel %vm1128, %v1618, 0
        %1631 = vmatprep.subr.bf16.mxu0 0
        %1632 = vmatpush1.bf16.xpose.msra.mxu0 0
        %1633 = vmatprep.subr.bf16.mxu0 0
        %1634 = vmatpush1.bf16.xpose.msra.mxu0 0
        %1635 = vmatprep.subr.bf16.mxu0 0
        %1636 = vmatpush1.bf16.xpose.msra.mxu0 0
        %1637 = vmatprep.subr.bf16.mxu0 0
        %1638 = vmatpush1.bf16.xpose.msra.mxu0 0
        %1639 = vmatprep.subr.bf16.mxu0 0
        %1640 = vmatpush1.bf16.xpose.msra.mxu0 0
        %1641 = vmatprep.subr.bf16.mxu0 0
        %1642 = vmatpush1.bf16.xpose.msra.mxu0 0
        %1643 = vmatprep.subr.bf16.mxu0 0
        %1644 = vmatpush1.bf16.xpose.msra.mxu0 %v1629
        %1645 = vmatprep.subr.bf16.mxu0 0
        %1646 = vmatpush1.bf16.xpose.msra.mxu0 %v1626
        %1647 = vmatprep.subr.bf16.mxu0 0
        %1648 = vmatpush2.bf16.xpose.msra.mxu0 0
        %1649 = vmatprep.subr.bf16.mxu0 0
        %1650 = vmatpush2.bf16.xpose.msra.mxu0 0
        %1651 = vmatprep.subr.bf16.mxu0 0
        %1652 = vmatpush2.bf16.xpose.msra.mxu0 0
        %1653 = vmatprep.subr.bf16.mxu0 0
        %1654 = vmatpush2.bf16.xpose.msra.mxu0 0
        %1655 = vmatprep.subr.bf16.mxu0 0
        %1656 = vmatpush2.bf16.xpose.msra.mxu0 0
        %1657 = vmatprep.subr.bf16.mxu0 0
        %1658 = vmatpush2.bf16.xpose.msra.mxu0 0
        %1659 = vmatprep.subr.bf16.mxu0 0
        %1660 = vmatpush2.bf16.xpose.msra.mxu0 0
        %1661 = vmatprep.subr.bf16.mxu0 0
        %1662 = vmatpush2.bf16.xpose.msra.mxu0 0
        %1663 = vmatprep.mubr.bf16.mxu0 0
        %1664 = vmatmul.mubr.bf16.gmra.mxu0 %v1620
        %v1665 = vpop.f32.mrf.mxu0
        %v1666 = vadd.f32 %v838, %v1665
        %v1667 = vpop.f32.mrf.mxu0
        %v1668 = vpop.f32.mrf.mxu0
        %v1669 = vadd.f32 %v839, %v1668
        %v1670 = vpop.f32.mrf.mxu0
        %1671 = vmatprep.mubr.bf16.mxu0 0
        %1672 = vmatmul.mubr.bf16.gmra.mxu0 %v1623
        %v1673 = vpop.f32.mrf.mxu0
        %v1674 = vadd.f32 %v840, %v1673
        %v1675 = vpop.f32.mrf.mxu0
        %v1676 = vpop.f32.mrf.mxu0
        %v1677 = vadd.f32 %v841, %v1676
        %v1678 = vpop.f32.mrf.mxu0
        %1679 = vdwg.mxu0
        %v1680 = vsel %vm1128, %v1666, -inf
        %1681 = vmax.xlane.f32.xlu0 %v1680
        %v1682 = vpop.xlane.xlu0 %1681
        %v1683 = vsel %vm1128, %v1669, -inf
        %1684 = vmax.xlane.f32.xlu0 %v1683
        %v1685 = vpop.xlane.xlu0 %1684
        %v1686 = vsel %vm1128, %v1674, -inf
        %1687 = vmax.xlane.f32.xlu0 %v1686
        %v1688 = vpop.xlane.xlu0 %1687
        %v1689 = vsel %vm1128, %v1677, -inf
        %1690 = vmax.xlane.f32.xlu0 %v1689
        %v1691 = vpop.xlane.xlu0 %1690
        %v1692 = vsub.f32 %v1666, %v1682
        %v1693 = vsub.f32 %v1669, %v1685
        %v1694 = vsub.f32 %v1674, %v1688
        %v1695 = vsub.f32 %v1677, %v1691
        %v1696 = vmul.f32 %v1692, 1.442695
        %v1697 = vpow.pop %v1696
        %v1698 = vmul.f32 %v1693, 1.442695
        %v1699 = vpow.pop %v1698
        %v1700 = vmul.f32 %v1694, 1.442695
        %v1701 = vpow.pop %v1700
        %v1702 = vmul.f32 %v1695, 1.442695
        %v1703 = vpow.pop %v1702
        %v1704 = vsel %vm1128, %v1697, 0.0
        %1705 = vadd.xlane.f32.xlu0 %v1704
        %v1706 = vpop.xlane.xlu0 %1705
        %v1707 = vsel %vm1128, %v1699, 0.0
        %1708 = vadd.xlane.f32.xlu0 %v1707
        %v1709 = vpop.xlane.xlu0 %1708
        %v1710 = vsel %vm1128, %v1701, 0.0
        %1711 = vadd.xlane.f32.xlu0 %v1710
        %v1712 = vpop.xlane.xlu0 %1711
        %v1713 = vsel %vm1128, %v1703, 0.0
        %1714 = vadd.xlane.f32.xlu0 %v1713
        %v1715 = vpop.xlane.xlu0 %1714
        %v1716 = vrcp.pop %v1706
        %v1717 = vrcp.pop %v1709
        %v1718 = vrcp.pop %v1712
        %v1719 = vrcp.pop %v1715
        %v1720 = vmul.f32 %v1697, %v1716
        %v1721 = vmul.f32 %v1699, %v1717
        %v1722 = vmul.f32 %v1701, %v1718
        %v1723 = vmul.f32 %v1703, %v1719
        %v1724 = vpack.c.bf16 %v1721, %v1720
        %v1725 = vpack.c.bf16 %v1723, %v1722
        %1726 = vrot.lane.b32.xlu0 %v1126, 64
        %v1727 = vpop.permute.xlu0 %1726
        %1728 = vrot.lane.b32.xlu0 %v1127, 64
        %v1729 = vpop.permute.xlu0 %1728
        %v1733 = vsel %vm1128, %v1724, 0
        %v1736 = vsel %vm1128, %v1725, 0
        %1738 = vmatprep.subr.bf16.mxu0 0
        %1739 = vmatpush1.bf16.msra.mxu0 0
        %1740 = vmatprep.subr.bf16.mxu0 0
        %1741 = vmatpush1.bf16.msra.mxu0 0
        %1742 = vmatprep.subr.bf16.mxu0 0
        %1743 = vmatpush1.bf16.msra.mxu0 0
        %1744 = vmatprep.subr.bf16.mxu0 0
        %1745 = vmatpush1.bf16.msra.mxu0 0
        %1746 = vmatprep.subr.bf16.mxu0 0
        %1747 = vmatpush1.bf16.msra.mxu0 0
        %1748 = vmatprep.subr.bf16.mxu0 0
        %1749 = vmatpush1.bf16.msra.mxu0 0
        %1750 = vmatprep.subr.bf16.mxu0 0
        %1751 = vmatpush1.bf16.msra.mxu0 %v1729
        %1752 = vmatprep.subr.bf16.mxu0 0
        %1753 = vmatpush1.bf16.msra.mxu0 %v1727
        %1754 = vmatprep.subr.bf16.mxu0 0
        %1755 = vmatpush2.bf16.msra.mxu0 0
        %1756 = vmatprep.subr.bf16.mxu0 0
        %1757 = vmatpush2.bf16.msra.mxu0 0
        %1758 = vmatprep.subr.bf16.mxu0 0
        %1759 = vmatpush2.bf16.msra.mxu0 0
        %1760 = vmatprep.subr.bf16.mxu0 0
        %1761 = vmatpush2.bf16.msra.mxu0 0
        %1762 = vmatprep.subr.bf16.mxu0 0
        %1763 = vmatpush2.bf16.msra.mxu0 0
        %1764 = vmatprep.subr.bf16.mxu0 0
        %1765 = vmatpush2.bf16.msra.mxu0 0
        %1766 = vmatprep.subr.bf16.mxu0 0
        %1767 = vmatpush2.bf16.msra.mxu0 0
        %1768 = vmatprep.subr.bf16.mxu0 0
        %1769 = vmatpush2.bf16.msra.mxu0 0
        %1770 = vmatprep.mubr.bf16.mxu0 0
        %1771 = vmatmul.mubr.bf16.gmra.mxu0 %v1733
        %v1772 = vpop.f32.mrf.mxu0
        %v1773 = vadd.f32 0.0, %v1772
        %v1774 = vpop.f32.mrf.mxu0
        %v1775 = vpop.f32.mrf.mxu0
        %v1776 = vadd.f32 0.0, %v1775
        %v1777 = vpop.f32.mrf.mxu0
        %1778 = vmatprep.mubr.bf16.mxu0 0
        %1779 = vmatmul.mubr.bf16.gmra.mxu0 %v1736
        %v1780 = vpop.f32.mrf.mxu0
        %v1781 = vadd.f32 0.0, %v1780
        %v1782 = vpop.f32.mrf.mxu0
        %v1783 = vpop.f32.mrf.mxu0
        %v1784 = vadd.f32 0.0, %v1783
        %v1785 = vpop.f32.mrf.mxu0
        %1786 = vdwg.mxu0
        %v1787 = vpack.c.bf16 %v1776, %v1773
        %v1788 = vpack.c.bf16 %v1784, %v1781
        %v1793 = vunpack.c.l.b16 %v1114
        %v1794 = vunpack.c.l.b16 %v1115
        %v1795 = vunpack.c.l.b16 %v1116
        %v1796 = vunpack.c.l.b16 %v1117
        %v1797 = vpack.c.b16 %v1794, %v1793
        %v1798 = vpack.c.b16 %v1796, %v1795
        %v1802 = vsel %vm1128, %v1787, 0
        %v1805 = vsel %vm1128, %v1788, 0
        %1807 = vmatprep.subr.bf16.mxu0 0
        %1808 = vmatpush1.bf16.msra.mxu0 0
        %1809 = vmatprep.subr.bf16.mxu0 0
        %1810 = vmatpush1.bf16.msra.mxu0 0
        %1811 = vmatprep.subr.bf16.mxu0 0
        %1812 = vmatpush1.bf16.msra.mxu0 0
        %1813 = vmatprep.subr.bf16.mxu0 0
        %1814 = vmatpush1.bf16.msra.mxu0 0
        %1815 = vmatprep.subr.bf16.mxu0 0
        %1816 = vmatpush1.bf16.msra.mxu0 0
        %1817 = vmatprep.subr.bf16.mxu0 0
        %1818 = vmatpush1.bf16.msra.mxu0 0
        %1819 = vmatprep.subr.bf16.mxu0 0
        %1820 = vmatpush1.bf16.msra.mxu0 %v1798
        %1821 = vmatprep.subr.bf16.mxu0 0
        %1822 = vmatpush1.bf16.msra.mxu0 %v1797
        %1823 = vmatprep.subr.bf16.mxu0 0
        %1824 = vmatpush2.bf16.msra.mxu0 0
        %1825 = vmatprep.subr.bf16.mxu0 0
        %1826 = vmatpush2.bf16.msra.mxu0 0
        %1827 = vmatprep.subr.bf16.mxu0 0
        %1828 = vmatpush2.bf16.msra.mxu0 0
        %1829 = vmatprep.subr.bf16.mxu0 0
        %1830 = vmatpush2.bf16.msra.mxu0 0
        %1831 = vmatprep.subr.bf16.mxu0 0
        %1832 = vmatpush2.bf16.msra.mxu0 0
        %1833 = vmatprep.subr.bf16.mxu0 0
        %1834 = vmatpush2.bf16.msra.mxu0 0
        %1835 = vmatprep.subr.bf16.mxu0 0
        %1836 = vmatpush2.bf16.msra.mxu0 0
        %1837 = vmatprep.subr.bf16.mxu0 0
        %1838 = vmatpush2.bf16.msra.mxu0 0
        %1839 = vmatprep.mubr.bf16.mxu0 0
        %1840 = vmatmul.mubr.bf16.gmra.mxu0 %v1802
        %v1841 = vpop.f32.mrf.mxu0
        %v1842 = vadd.f32 0.0, %v1841
        %v1843 = vpop.f32.mrf.mxu0
        %v1844 = vpop.f32.mrf.mxu0
        %v1845 = vadd.f32 0.0, %v1844
        %v1846 = vpop.f32.mrf.mxu0
        %1847 = vmatprep.mubr.bf16.mxu0 0
        %1848 = vmatmul.mubr.bf16.gmra.mxu0 %v1805
        %v1849 = vpop.f32.mrf.mxu0
        %v1850 = vadd.f32 0.0, %v1849
        %v1851 = vpop.f32.mrf.mxu0
        %v1852 = vpop.f32.mrf.mxu0
        %v1853 = vadd.f32 0.0, %v1852
        %v1854 = vpop.f32.mrf.mxu0
        %1855 = vdwg.mxu0
        %v1856 = vadd.f32 %v1597, %v1842
        %v1857 = vadd.f32 %v1600, %v1845
        %v1858 = vadd.f32 %v1605, %v1850
        %v1859 = vadd.f32 %v1608, %v1853
        %1860 = vrot.lane.b32.xlu0 %v1122, 32
        %v1861 = vpop.permute.xlu0 %1860
        %1862 = vrot.lane.b32.xlu0 %v1123, 32
        %v1863 = vpop.permute.xlu0 %1862
        %1864 = vrot.lane.b32.xlu0 %v1124, 32
        %v1865 = vpop.permute.xlu0 %1864
        %1866 = vrot.lane.b32.xlu0 %v1125, 32
        %v1867 = vpop.permute.xlu0 %1866
        %v1869 = vsel %vm1128, %v1861, 0
        %v1872 = vsel %vm1128, %v1863, 0
        %v1875 = vsel %vm1128, %v1865, 0
        %v1878 = vsel %vm1128, %v1867, 0
        %1880 = vmatprep.subr.bf16.mxu0 0
        %1881 = vmatpush1.bf16.xpose.msra.mxu0 0
        %1882 = vmatprep.subr.bf16.mxu0 0
        %1883 = vmatpush1.bf16.xpose.msra.mxu0 0
        %1884 = vmatprep.subr.bf16.mxu0 0
        %1885 = vmatpush1.bf16.xpose.msra.mxu0 0
        %1886 = vmatprep.subr.bf16.mxu0 0
        %1887 = vmatpush1.bf16.xpose.msra.mxu0 0
        %1888 = vmatprep.subr.bf16.mxu0 0
        %1889 = vmatpush1.bf16.xpose.msra.mxu0 0
        %1890 = vmatprep.subr.bf16.mxu0 0
        %1891 = vmatpush1.bf16.xpose.msra.mxu0 0
        %1892 = vmatprep.subr.bf16.mxu0 0
        %1893 = vmatpush1.bf16.xpose.msra.mxu0 %v1878
        %1894 = vmatprep.subr.bf16.mxu0 0
        %1895 = vmatpush1.bf16.xpose.msra.mxu0 %v1875
        %1896 = vmatprep.subr.bf16.mxu0 0
        %1897 = vmatpush2.bf16.xpose.msra.mxu0 0
        %1898 = vmatprep.subr.bf16.mxu0 0
        %1899 = vmatpush2.bf16.xpose.msra.mxu0 0
        %1900 = vmatprep.subr.bf16.mxu0 0
        %1901 = vmatpush2.bf16.xpose.msra.mxu0 0
        %1902 = vmatprep.subr.bf16.mxu0 0
        %1903 = vmatpush2.bf16.xpose.msra.mxu0 0
        %1904 = vmatprep.subr.bf16.mxu0 0
        %1905 = vmatpush2.bf16.xpose.msra.mxu0 0
        %1906 = vmatprep.subr.bf16.mxu0 0
        %1907 = vmatpush2.bf16.xpose.msra.mxu0 0
        %1908 = vmatprep.subr.bf16.mxu0 0
        %1909 = vmatpush2.bf16.xpose.msra.mxu0 0
        %1910 = vmatprep.subr.bf16.mxu0 0
        %1911 = vmatpush2.bf16.xpose.msra.mxu0 0
        %1912 = vmatprep.mubr.bf16.mxu0 0
        %1913 = vmatmul.mubr.bf16.gmra.mxu0 %v1869
        %v1914 = vpop.f32.mrf.mxu0
        %v1915 = vadd.f32 %v838, %v1914
        %v1916 = vpop.f32.mrf.mxu0
        %v1917 = vpop.f32.mrf.mxu0
        %v1918 = vadd.f32 %v839, %v1917
        %v1919 = vpop.f32.mrf.mxu0
        %1920 = vmatprep.mubr.bf16.mxu0 0
        %1921 = vmatmul.mubr.bf16.gmra.mxu0 %v1872
        %v1922 = vpop.f32.mrf.mxu0
        %v1923 = vadd.f32 %v840, %v1922
        %v1924 = vpop.f32.mrf.mxu0
        %v1925 = vpop.f32.mrf.mxu0
        %v1926 = vadd.f32 %v841, %v1925
        %v1927 = vpop.f32.mrf.mxu0
        %1928 = vdwg.mxu0
        %v1929 = vsel %vm1128, %v1915, -inf
        %1930 = vmax.xlane.f32.xlu0 %v1929
        %v1931 = vpop.xlane.xlu0 %1930
        %v1932 = vsel %vm1128, %v1918, -inf
        %1933 = vmax.xlane.f32.xlu0 %v1932
        %v1934 = vpop.xlane.xlu0 %1933
        %v1935 = vsel %vm1128, %v1923, -inf
        %1936 = vmax.xlane.f32.xlu0 %v1935
        %v1937 = vpop.xlane.xlu0 %1936
        %v1938 = vsel %vm1128, %v1926, -inf
        %1939 = vmax.xlane.f32.xlu0 %v1938
        %v1940 = vpop.xlane.xlu0 %1939
        %v1941 = vsub.f32 %v1915, %v1931
        %v1942 = vsub.f32 %v1918, %v1934
        %v1943 = vsub.f32 %v1923, %v1937
        %v1944 = vsub.f32 %v1926, %v1940
        %v1945 = vmul.f32 %v1941, 1.442695
        %v1946 = vpow.pop %v1945
        %v1947 = vmul.f32 %v1942, 1.442695
        %v1948 = vpow.pop %v1947
        %v1949 = vmul.f32 %v1943, 1.442695
        %v1950 = vpow.pop %v1949
        %v1951 = vmul.f32 %v1944, 1.442695
        %v1952 = vpow.pop %v1951
        %v1953 = vsel %vm1128, %v1946, 0.0
        %1954 = vadd.xlane.f32.xlu0 %v1953
        %v1955 = vpop.xlane.xlu0 %1954
        %v1956 = vsel %vm1128, %v1948, 0.0
        %1957 = vadd.xlane.f32.xlu0 %v1956
        %v1958 = vpop.xlane.xlu0 %1957
        %v1959 = vsel %vm1128, %v1950, 0.0
        %1960 = vadd.xlane.f32.xlu0 %v1959
        %v1961 = vpop.xlane.xlu0 %1960
        %v1962 = vsel %vm1128, %v1952, 0.0
        %1963 = vadd.xlane.f32.xlu0 %v1962
        %v1964 = vpop.xlane.xlu0 %1963
        %v1965 = vrcp.pop %v1955
        %v1966 = vrcp.pop %v1958
        %v1967 = vrcp.pop %v1961
        %v1968 = vrcp.pop %v1964
        %v1969 = vmul.f32 %v1946, %v1965
        %v1970 = vmul.f32 %v1948, %v1966
        %v1971 = vmul.f32 %v1950, %v1967
        %v1972 = vmul.f32 %v1952, %v1968
        %v1973 = vpack.c.bf16 %v1970, %v1969
        %v1974 = vpack.c.bf16 %v1972, %v1971
        %1975 = vrot.lane.b32.xlu0 %v1126, 32
        %v1976 = vpop.permute.xlu0 %1975
        %1977 = vrot.lane.b32.xlu0 %v1127, 32
        %v1978 = vpop.permute.xlu0 %1977
        %v1982 = vsel %vm1128, %v1973, 0
        %v1985 = vsel %vm1128, %v1974, 0
        %1987 = vmatprep.subr.bf16.mxu0 0
        %1988 = vmatpush1.bf16.msra.mxu0 0
        %1989 = vmatprep.subr.bf16.mxu0 0
        %1990 = vmatpush1.bf16.msra.mxu0 0
        %1991 = vmatprep.subr.bf16.mxu0 0
        %1992 = vmatpush1.bf16.msra.mxu0 0
        %1993 = vmatprep.subr.bf16.mxu0 0
        %1994 = vmatpush1.bf16.msra.mxu0 0
        %1995 = vmatprep.subr.bf16.mxu0 0
        %1996 = vmatpush1.bf16.msra.mxu0 0
        %1997 = vmatprep.subr.bf16.mxu0 0
        %1998 = vmatpush1.bf16.msra.mxu0 0
        %1999 = vmatprep.subr.bf16.mxu0 0
        %2000 = vmatpush1.bf16.msra.mxu0 %v1978
        %2001 = vmatprep.subr.bf16.mxu0 0
        %2002 = vmatpush1.bf16.msra.mxu0 %v1976
        %2003 = vmatprep.subr.bf16.mxu0 0
        %2004 = vmatpush2.bf16.msra.mxu0 0
        %2005 = vmatprep.subr.bf16.mxu0 0
        %2006 = vmatpush2.bf16.msra.mxu0 0
        %2007 = vmatprep.subr.bf16.mxu0 0
        %2008 = vmatpush2.bf16.msra.mxu0 0
        %2009 = vmatprep.subr.bf16.mxu0 0
        %2010 = vmatpush2.bf16.msra.mxu0 0
        %2011 = vmatprep.subr.bf16.mxu0 0
        %2012 = vmatpush2.bf16.msra.mxu0 0
        %2013 = vmatprep.subr.bf16.mxu0 0
        %2014 = vmatpush2.bf16.msra.mxu0 0
        %2015 = vmatprep.subr.bf16.mxu0 0
        %2016 = vmatpush2.bf16.msra.mxu0 0
        %2017 = vmatprep.subr.bf16.mxu0 0
        %2018 = vmatpush2.bf16.msra.mxu0 0
        %2019 = vmatprep.mubr.bf16.mxu0 0
        %2020 = vmatmul.mubr.bf16.gmra.mxu0 %v1982
        %v2021 = vpop.f32.mrf.mxu0
        %v2022 = vadd.f32 0.0, %v2021
        %v2023 = vpop.f32.mrf.mxu0
        %v2024 = vpop.f32.mrf.mxu0
        %v2025 = vadd.f32 0.0, %v2024
        %v2026 = vpop.f32.mrf.mxu0
        %2027 = vmatprep.mubr.bf16.mxu0 0
        %2028 = vmatmul.mubr.bf16.gmra.mxu0 %v1985
        %v2029 = vpop.f32.mrf.mxu0
        %v2030 = vadd.f32 0.0, %v2029
        %v2031 = vpop.f32.mrf.mxu0
        %v2032 = vpop.f32.mrf.mxu0
        %v2033 = vadd.f32 0.0, %v2032
        %v2034 = vpop.f32.mrf.mxu0
        %2035 = vdwg.mxu0
        %v2036 = vpack.c.bf16 %v2025, %v2022
        %v2037 = vpack.c.bf16 %v2033, %v2030
        %v2042 = vunpack.c.l.b16 %v1118
        %v2043 = vunpack.c.l.b16 %v1119
        %v2044 = vunpack.c.l.b16 %v1120
        %v2045 = vunpack.c.l.b16 %v1121
        %v2046 = vpack.c.b16 %v2043, %v2042
        %v2047 = vpack.c.b16 %v2045, %v2044
        %v2051 = vsel %vm1128, %v2036, 0
        %v2054 = vsel %vm1128, %v2037, 0
        %2056 = vmatprep.subr.bf16.mxu0 0
        %2057 = vmatpush1.bf16.msra.mxu0 0
        %2058 = vmatprep.subr.bf16.mxu0 0
        %2059 = vmatpush1.bf16.msra.mxu0 0
        %2060 = vmatprep.subr.bf16.mxu0 0
        %2061 = vmatpush1.bf16.msra.mxu0 0
        %2062 = vmatprep.subr.bf16.mxu0 0
        %2063 = vmatpush1.bf16.msra.mxu0 0
        %2064 = vmatprep.subr.bf16.mxu0 0
        %2065 = vmatpush1.bf16.msra.mxu0 0
        %2066 = vmatprep.subr.bf16.mxu0 0
        %2067 = vmatpush1.bf16.msra.mxu0 0
        %2068 = vmatprep.subr.bf16.mxu0 0
        %2069 = vmatpush1.bf16.msra.mxu0 %v2047
        %2070 = vmatprep.subr.bf16.mxu0 0
        %2071 = vmatpush1.bf16.msra.mxu0 %v2046
        %2072 = vmatprep.subr.bf16.mxu0 0
        %2073 = vmatpush2.bf16.msra.mxu0 0
        %2074 = vmatprep.subr.bf16.mxu0 0
        %2075 = vmatpush2.bf16.msra.mxu0 0
        %2076 = vmatprep.subr.bf16.mxu0 0
        %2077 = vmatpush2.bf16.msra.mxu0 0
        %2078 = vmatprep.subr.bf16.mxu0 0
        %2079 = vmatpush2.bf16.msra.mxu0 0
        %2080 = vmatprep.subr.bf16.mxu0 0
        %2081 = vmatpush2.bf16.msra.mxu0 0
        %2082 = vmatprep.subr.bf16.mxu0 0
        %2083 = vmatpush2.bf16.msra.mxu0 0
        %2084 = vmatprep.subr.bf16.mxu0 0
        %2085 = vmatpush2.bf16.msra.mxu0 0
        %2086 = vmatprep.subr.bf16.mxu0 0
        %2087 = vmatpush2.bf16.msra.mxu0 0
        %2088 = vmatprep.mubr.bf16.mxu0 0
        %2089 = vmatmul.mubr.bf16.gmra.mxu0 %v2051
        %v2090 = vpop.f32.mrf.mxu0
        %v2091 = vadd.f32 0.0, %v2090
        %v2092 = vpop.f32.mrf.mxu0
        %v2093 = vpop.f32.mrf.mxu0
        %v2094 = vadd.f32 0.0, %v2093
        %v2095 = vpop.f32.mrf.mxu0
        %2096 = vmatprep.mubr.bf16.mxu0 0
        %2097 = vmatmul.mubr.bf16.gmra.mxu0 %v2054
        %v2098 = vpop.f32.mrf.mxu0
        %v2099 = vadd.f32 0.0, %v2098
        %v2100 = vpop.f32.mrf.mxu0
        %v2101 = vpop.f32.mrf.mxu0
        %v2102 = vadd.f32 0.0, %v2101
        %v2103 = vpop.f32.mrf.mxu0
        %2104 = vdwg.mxu0
        %v2105 = vadd.f32 %v1856, %v2091
        %v2106 = vadd.f32 %v1857, %v2094
        %v2107 = vadd.f32 %v1858, %v2099
        %v2108 = vadd.f32 %v1859, %v2102
        %v2109 = vadd.f32 %v815, %v2105
        %v2110 = vadd.f32 %v818, %v2106
        %v2111 = vadd.f32 %v823, %v2107
        %v2112 = vadd.f32 %v826, %v2108
        %v2113 = vld [vmem:[%s5] sm:$0x1]
        %v2115 = vlaneseq
        %v2116 = vshrl.u32 %v2115, 7
        %v2117 = vsub.s32 0, %v2116
        %v2118 = vrot.slane %v2113, %v2117
        %v2120 = vadd.f32 %v2109, %v2118
        %v2121 = vadd.f32 %v2110, %v2118
        %v2122 = vadd.f32 %v2111, %v2118
        %v2123 = vadd.f32 %v2112, %v2118
        %v2124 = vld [vmem:[#allocation8] sm:$0x1]
        %v2125 = vld [vmem:[%s7] sm:$0x1]
        %2126 = vadd.xlane.f32.xlu0 %v2120
        %v2127 = vpop.xlane.xlu0 %2126
        %2128 = vadd.xlane.f32.xlu0 %v2121
        %v2129 = vpop.xlane.xlu0 %2128
        %2130 = vadd.xlane.f32.xlu0 %v2122
        %v2131 = vpop.xlane.xlu0 %2130
        %2132 = vadd.xlane.f32.xlu0 %v2123
        %v2133 = vpop.xlane.xlu0 %2132
        %v2134 = vrcp.pop 128.0
        %v2135 = vmul.f32 %v2127, %v2134
        %v2136 = vmul.f32 %v2129, %v2134
        %v2137 = vmul.f32 %v2131, %v2134
        %v2138 = vmul.f32 %v2133, %v2134
        %v2139 = vsub.f32 %v2120, %v2135
        %v2140 = vsub.f32 %v2121, %v2136
        %v2141 = vsub.f32 %v2122, %v2137
        %v2142 = vsub.f32 %v2123, %v2138
        %v2143 = vmul.f32 %v2139, %v2139
        %v2144 = vmul.f32 %v2140, %v2140
        %v2145 = vmul.f32 %v2141, %v2141
        %v2146 = vmul.f32 %v2142, %v2142
        %2147 = vadd.xlane.f32.xlu0 %v2143
        %v2148 = vpop.xlane.xlu0 %2147
        %2149 = vadd.xlane.f32.xlu0 %v2144
        %v2150 = vpop.xlane.xlu0 %2149
        %2151 = vadd.xlane.f32.xlu0 %v2145
        %v2152 = vpop.xlane.xlu0 %2151
        %2153 = vadd.xlane.f32.xlu0 %v2146
        %v2154 = vpop.xlane.xlu0 %2153
        %v2155 = vmul.f32 %v2148, %v2134
        %v2156 = vmul.f32 %v2150, %v2134
        %v2157 = vmul.f32 %v2152, %v2134
        %v2158 = vmul.f32 %v2154, %v2134
        %v2159 = vadd.f32 %v2155, 1e-05
        %v2160 = vadd.f32 %v2156, 1e-05
        %v2161 = vadd.f32 %v2157, 1e-05
        %v2162 = vadd.f32 %v2158, 1e-05
        %v2163 = vrsqrt.pop %v2159
        %v2164 = vrsqrt.pop %v2160
        %v2165 = vrsqrt.pop %v2161
        %v2166 = vrsqrt.pop %v2162
        %v2167 = vmul.f32 %v2139, %v2163
        %v2168 = vmul.f32 %v2140, %v2164
        %v2169 = vmul.f32 %v2141, %v2165
        %v2170 = vmul.f32 %v2142, %v2166
        %v2172 = vlaneseq
        %v2173 = vshrl.u32 %v2172, 7
        %v2174 = vsub.s32 0, %v2173
        %v2175 = vrot.slane %v2124, %v2174
        %v2177 = vmul.f32 %v2167, %v2175
        %v2178 = vmul.f32 %v2168, %v2175
        %v2179 = vmul.f32 %v2169, %v2175
        %v2180 = vmul.f32 %v2170, %v2175
        %v2182 = vlaneseq
        %v2183 = vshrl.u32 %v2182, 7
        %v2184 = vsub.s32 0, %v2183
        %v2185 = vrot.slane %v2125, %v2184
        %v2187 = vadd.f32 %v2177, %v2185
        %v2188 = vadd.f32 %v2178, %v2185
        %v2189 = vadd.f32 %v2179, %v2185
        %v2190 = vadd.f32 %v2180, %v2185
        %v2191 = vpack.c.bf16 %v2188, %v2187
        %v2192 = vpack.c.bf16 %v2190, %v2189
        %v2193 = vld [vmem:[#allocation10] sm:$0xff]
        %v2194 = vld [vmem:[#allocation10 + $0x8] sm:$0xff]
        %v2195 = vld [vmem:[#allocation10 + $0x10] sm:$0xff]
        %v2196 = vld [vmem:[#allocation10 + $0x18] sm:$0xff]
        %v2197 = vld [vmem:[#allocation10 + $0x20] sm:$0xff]
        %v2198 = vld [vmem:[#allocation10 + $0x28] sm:$0xff]
        %v2199 = vld [vmem:[#allocation10 + $0x30] sm:$0xff]
        %v2200 = vld [vmem:[#allocation10 + $0x38] sm:$0xff]
        %v2201 = vld [vmem:[#allocation10 + $0x40] sm:$0xff]
        %v2202 = vld [vmem:[#allocation10 + $0x48] sm:$0xff]
        %v2203 = vld [vmem:[#allocation10 + $0x50] sm:$0xff]
        %v2204 = vld [vmem:[#allocation10 + $0x58] sm:$0xff]
        %v2205 = vld [vmem:[#allocation10 + $0x60] sm:$0xff]
        %v2206 = vld [vmem:[#allocation10 + $0x68] sm:$0xff]
        %v2207 = vld [vmem:[#allocation10 + $0x70] sm:$0xff]
        %v2208 = vld [vmem:[#allocation10 + $0x78] sm:$0xff]
        %v2209 = vld [vmem:[#allocation10 + $0x80] sm:$0xff]
        %v2210 = vld [vmem:[#allocation10 + $0x88] sm:$0xff]
        %v2211 = vld [vmem:[#allocation10 + $0x90] sm:$0xff]
        %v2212 = vld [vmem:[#allocation10 + $0x98] sm:$0xff]
        %v2213 = vld [vmem:[#allocation10 + $0xa0] sm:$0xff]
        %v2214 = vld [vmem:[#allocation10 + $0xa8] sm:$0xff]
        %v2215 = vld [vmem:[#allocation10 + $0xb0] sm:$0xff]
        %v2216 = vld [vmem:[#allocation10 + $0xb8] sm:$0xff]
        %v2217 = vld [vmem:[#allocation10 + $0xc0] sm:$0xff]
        %v2218 = vld [vmem:[#allocation10 + $0xc8] sm:$0xff]
        %v2219 = vld [vmem:[#allocation10 + $0xd0] sm:$0xff]
        %v2220 = vld [vmem:[#allocation10 + $0xd8] sm:$0xff]
        %v2221 = vld [vmem:[#allocation10 + $0xe0] sm:$0xff]
        %v2222 = vld [vmem:[#allocation10 + $0xe8] sm:$0xff]
        %v2223 = vld [vmem:[#allocation10 + $0xf0] sm:$0xff]
        %v2224 = vld [vmem:[#allocation10 + $0xf8] sm:$0xff]
        %v2225 = vld [vmem:[%s9] sm:$0xf]
        %v2227 = vlaneseq
        %v2228 = vshrl.u32 %v2227, 7
        %v2229 = vsub.s32 0, %v2228
        %v2230 = vrot.slane %v2225, %v2229
        %v2231 = vlaneseq
        %v2232 = vshrl.u32 %v2231, 7
        %v2233 = vsub.s32 1, %v2232
        %v2234 = vrot.slane %v2225, %v2233
        %v2235 = vlaneseq
        %v2236 = vshrl.u32 %v2235, 7
        %v2237 = vsub.s32 2, %v2236
        %v2238 = vrot.slane %v2225, %v2237
        %v2239 = vlaneseq
        %v2240 = vshrl.u32 %v2239, 7
        %v2241 = vsub.s32 3, %v2240
        %v2242 = vrot.slane %v2225, %v2241
        %v2279 = vunpack.c.l.b16 %v2193
        %v2280 = vunpack.c.h.b16 %v2193
        %v2281 = vunpack.c.l.b16 %v2194
        %v2282 = vunpack.c.h.b16 %v2194
        %v2283 = vunpack.c.l.b16 %v2195
        %v2284 = vunpack.c.h.b16 %v2195
        %v2285 = vunpack.c.l.b16 %v2196
        %v2286 = vunpack.c.h.b16 %v2196
        %v2287 = vunpack.c.l.b16 %v2197
        %v2288 = vunpack.c.h.b16 %v2197
        %v2289 = vunpack.c.l.b16 %v2198
        %v2290 = vunpack.c.h.b16 %v2198
        %v2291 = vunpack.c.l.b16 %v2199
        %v2292 = vunpack.c.h.b16 %v2199
        %v2293 = vunpack.c.l.b16 %v2200
        %v2294 = vunpack.c.h.b16 %v2200
        %v2295 = vunpack.c.l.b16 %v2201
        %v2296 = vunpack.c.h.b16 %v2201
        %v2297 = vunpack.c.l.b16 %v2202
        %v2298 = vunpack.c.h.b16 %v2202
        %v2299 = vunpack.c.l.b16 %v2203
        %v2300 = vunpack.c.h.b16 %v2203
        %v2301 = vunpack.c.l.b16 %v2204
        %v2302 = vunpack.c.h.b16 %v2204
        %v2303 = vunpack.c.l.b16 %v2205
        %v2304 = vunpack.c.h.b16 %v2205
        %v2305 = vunpack.c.l.b16 %v2206
        %v2306 = vunpack.c.h.b16 %v2206
        %v2307 = vunpack.c.l.b16 %v2207
        %v2308 = vunpack.c.h.b16 %v2207
        %v2309 = vunpack.c.l.b16 %v2208
        %v2310 = vunpack.c.h.b16 %v2208
        %v2311 = vunpack.c.l.b16 %v2209
        %v2312 = vunpack.c.h.b16 %v2209
        %v2313 = vunpack.c.l.b16 %v2210
        %v2314 = vunpack.c.h.b16 %v2210
        %v2315 = vunpack.c.l.b16 %v2211
        %v2316 = vunpack.c.h.b16 %v2211
        %v2317 = vunpack.c.l.b16 %v2212
        %v2318 = vunpack.c.h.b16 %v2212
        %v2319 = vunpack.c.l.b16 %v2213
        %v2320 = vunpack.c.h.b16 %v2213
        %v2321 = vunpack.c.l.b16 %v2214
        %v2322 = vunpack.c.h.b16 %v2214
        %v2323 = vunpack.c.l.b16 %v2215
        %v2324 = vunpack.c.h.b16 %v2215
        %v2325 = vunpack.c.l.b16 %v2216
        %v2326 = vunpack.c.h.b16 %v2216
        %v2327 = vunpack.c.l.b16 %v2217
        %v2328 = vunpack.c.h.b16 %v2217
        %v2329 = vunpack.c.l.b16 %v2218
        %v2330 = vunpack.c.h.b16 %v2218
        %v2331 = vunpack.c.l.b16 %v2219
        %v2332 = vunpack.c.h.b16 %v2219
        %v2333 = vunpack.c.l.b16 %v2220
        %v2334 = vunpack.c.h.b16 %v2220
        %v2335 = vunpack.c.l.b16 %v2221
        %v2336 = vunpack.c.h.b16 %v2221
        %v2337 = vunpack.c.l.b16 %v2222
        %v2338 = vunpack.c.h.b16 %v2222
        %v2339 = vunpack.c.l.b16 %v2223
        %v2340 = vunpack.c.h.b16 %v2223
        %v2341 = vunpack.c.l.b16 %v2224
        %v2342 = vunpack.c.h.b16 %v2224
        %v2343 = vpack.c.b16 %v2283, %v2279
        %v2344 = vpack.c.b16 %v2284, %v2280
        %v2345 = vpack.c.b16 %v2285, %v2281
        %v2346 = vpack.c.b16 %v2286, %v2282
        %v2347 = vpack.c.b16 %v2291, %v2287
        %v2348 = vpack.c.b16 %v2292, %v2288
        %v2349 = vpack.c.b16 %v2293, %v2289
        %v2350 = vpack.c.b16 %v2294, %v2290
        %v2351 = vpack.c.b16 %v2299, %v2295
        %v2352 = vpack.c.b16 %v2300, %v2296
        %v2353 = vpack.c.b16 %v2301, %v2297
        %v2354 = vpack.c.b16 %v2302, %v2298
        %v2355 = vpack.c.b16 %v2307, %v2303
        %v2356 = vpack.c.b16 %v2308, %v2304
        %v2357 = vpack.c.b16 %v2309, %v2305
        %v2358 = vpack.c.b16 %v2310, %v2306
        %v2359 = vpack.c.b16 %v2315, %v2311
        %v2360 = vpack.c.b16 %v2316, %v2312
        %v2361 = vpack.c.b16 %v2317, %v2313
        %v2362 = vpack.c.b16 %v2318, %v2314
        %v2363 = vpack.c.b16 %v2323, %v2319
        %v2364 = vpack.c.b16 %v2324, %v2320
        %v2365 = vpack.c.b16 %v2325, %v2321
        %v2366 = vpack.c.b16 %v2326, %v2322
        %v2367 = vpack.c.b16 %v2331, %v2327
        %v2368 = vpack.c.b16 %v2332, %v2328
        %v2369 = vpack.c.b16 %v2333, %v2329
        %v2370 = vpack.c.b16 %v2334, %v2330
        %v2371 = vpack.c.b16 %v2339, %v2335
        %v2372 = vpack.c.b16 %v2340, %v2336
        %v2373 = vpack.c.b16 %v2341, %v2337
        %v2374 = vpack.c.b16 %v2342, %v2338
        %2407 = vmatprep.subr.bf16.mxu0 %v2372
        %2408 = vmatpush1.bf16.msra.mxu0 %v2371
        %2409 = vmatprep.subr.bf16.mxu0 %v2368
        %2410 = vmatpush1.bf16.msra.mxu0 %v2367
        %2411 = vmatprep.subr.bf16.mxu0 %v2364
        %2412 = vmatpush1.bf16.msra.mxu0 %v2363
        %2413 = vmatprep.subr.bf16.mxu0 %v2360
        %2414 = vmatpush1.bf16.msra.mxu0 %v2359
        %2415 = vmatprep.subr.bf16.mxu0 %v2356
        %2416 = vmatpush1.bf16.msra.mxu0 %v2355
        %2417 = vmatprep.subr.bf16.mxu0 %v2352
        %2418 = vmatpush1.bf16.msra.mxu0 %v2351
        %2419 = vmatprep.subr.bf16.mxu0 %v2348
        %2420 = vmatpush1.bf16.msra.mxu0 %v2347
        %2421 = vmatprep.subr.bf16.mxu0 %v2344
        %2422 = vmatpush1.bf16.msra.mxu0 %v2343
        %2423 = vmatprep.subr.bf16.mxu0 0
        %2424 = vmatpush2.bf16.msra.mxu0 0
        %2425 = vmatprep.subr.bf16.mxu0 0
        %2426 = vmatpush2.bf16.msra.mxu0 0
        %2427 = vmatprep.subr.bf16.mxu0 0
        %2428 = vmatpush2.bf16.msra.mxu0 0
        %2429 = vmatprep.subr.bf16.mxu0 0
        %2430 = vmatpush2.bf16.msra.mxu0 0
        %2431 = vmatprep.subr.bf16.mxu0 0
        %2432 = vmatpush2.bf16.msra.mxu0 0
        %2433 = vmatprep.subr.bf16.mxu0 0
        %2434 = vmatpush2.bf16.msra.mxu0 0
        %2435 = vmatprep.subr.bf16.mxu0 0
        %2436 = vmatpush2.bf16.msra.mxu0 0
        %2437 = vmatprep.subr.bf16.mxu0 0
        %2438 = vmatpush2.bf16.msra.mxu0 0
        %2439 = vmatprep.mubr.bf16.mxu0 0
        %2440 = vmatmul.mubr.bf16.gmra.mxu0 %v2191
        %v2441 = vpop.f32.mrf.mxu0
        %v2442 = vadd.f32 %v2230, %v2441
        %v2443 = vpop.f32.mrf.mxu0
        %v2444 = vadd.f32 %v2234, %v2443
        %v2445 = vpop.f32.mrf.mxu0
        %v2446 = vadd.f32 %v2230, %v2445
        %v2447 = vpop.f32.mrf.mxu0
        %v2448 = vadd.f32 %v2234, %v2447
        %2449 = vmatprep.mubr.bf16.mxu0 0
        %2450 = vmatmul.mubr.bf16.gmra.mxu0 %v2192
        %v2451 = vpop.f32.mrf.mxu0
        %v2452 = vadd.f32 %v2230, %v2451
        %v2453 = vpop.f32.mrf.mxu0
        %v2454 = vadd.f32 %v2234, %v2453
        %v2455 = vpop.f32.mrf.mxu0
        %v2456 = vadd.f32 %v2230, %v2455
        %v2457 = vpop.f32.mrf.mxu0
        %v2458 = vadd.f32 %v2234, %v2457
        %2459 = vdwg.mxu0
        %2460 = vmatprep.subr.bf16.mxu0 %v2374
        %2461 = vmatpush1.bf16.msra.mxu0 %v2373
        %2462 = vmatprep.subr.bf16.mxu0 %v2370
        %2463 = vmatpush1.bf16.msra.mxu0 %v2369
        %2464 = vmatprep.subr.bf16.mxu0 %v2366
        %2465 = vmatpush1.bf16.msra.mxu0 %v2365
        %2466 = vmatprep.subr.bf16.mxu0 %v2362
        %2467 = vmatpush1.bf16.msra.mxu0 %v2361
        %2468 = vmatprep.subr.bf16.mxu0 %v2358
        %2469 = vmatpush1.bf16.msra.mxu0 %v2357
        %2470 = vmatprep.subr.bf16.mxu0 %v2354
        %2471 = vmatpush1.bf16.msra.mxu0 %v2353
        %2472 = vmatprep.subr.bf16.mxu0 %v2350
        %2473 = vmatpush1.bf16.msra.mxu0 %v2349
        %2474 = vmatprep.subr.bf16.mxu0 %v2346
        %2475 = vmatpush1.bf16.msra.mxu0 %v2345
        %2476 = vmatprep.subr.bf16.mxu0 0
        %2477 = vmatpush2.bf16.msra.mxu0 0
        %2478 = vmatprep.subr.bf16.mxu0 0
        %2479 = vmatpush2.bf16.msra.mxu0 0
        %2480 = vmatprep.subr.bf16.mxu0 0
        %2481 = vmatpush2.bf16.msra.mxu0 0
        %2482 = vmatprep.subr.bf16.mxu0 0
        %2483 = vmatpush2.bf16.msra.mxu0 0
        %2484 = vmatprep.subr.bf16.mxu0 0
        %2485 = vmatpush2.bf16.msra.mxu0 0
        %2486 = vmatprep.subr.bf16.mxu0 0
        %2487 = vmatpush2.bf16.msra.mxu0 0
        %2488 = vmatprep.subr.bf16.mxu0 0
        %2489 = vmatpush2.bf16.msra.mxu0 0
        %2490 = vmatprep.subr.bf16.mxu0 0
        %2491 = vmatpush2.bf16.msra.mxu0 0
        %2492 = vmatprep.mubr.bf16.mxu0 0
        %2493 = vmatmul.mubr.bf16.gmra.mxu0 %v2191
        %v2494 = vpop.f32.mrf.mxu0
        %v2495 = vadd.f32 %v2238, %v2494
        %v2496 = vpop.f32.mrf.mxu0
        %v2497 = vadd.f32 %v2242, %v2496
        %v2498 = vpop.f32.mrf.mxu0
        %v2499 = vadd.f32 %v2238, %v2498
        %v2500 = vpop.f32.mrf.mxu0
        %v2501 = vadd.f32 %v2242, %v2500
        %2502 = vmatprep.mubr.bf16.mxu0 0
        %2503 = vmatmul.mubr.bf16.gmra.mxu0 %v2192
        %v2504 = vpop.f32.mrf.mxu0
        %v2505 = vadd.f32 %v2238, %v2504
        %v2506 = vpop.f32.mrf.mxu0
        %v2507 = vadd.f32 %v2242, %v2506
        %v2508 = vpop.f32.mrf.mxu0
        %v2509 = vadd.f32 %v2238, %v2508
        %v2510 = vpop.f32.mrf.mxu0
        %v2511 = vadd.f32 %v2242, %v2510
        %2512 = vdwg.mxu0
        %v2513 = vmax.f32 %v2442, 0.0
        %v2514 = vmax.f32 %v2444, 0.0
        %v2515 = vmax.f32 %v2495, 0.0
        %v2516 = vmax.f32 %v2497, 0.0
        %v2517 = vmax.f32 %v2446, 0.0
        %v2518 = vmax.f32 %v2448, 0.0
        %v2519 = vmax.f32 %v2499, 0.0
        %v2520 = vmax.f32 %v2501, 0.0
        %v2521 = vmax.f32 %v2452, 0.0
        %v2522 = vmax.f32 %v2454, 0.0
        %v2523 = vmax.f32 %v2505, 0.0
        %v2524 = vmax.f32 %v2507, 0.0
        %v2525 = vmax.f32 %v2456, 0.0
        %v2526 = vmax.f32 %v2458, 0.0
        %v2527 = vmax.f32 %v2509, 0.0
        %v2528 = vmax.f32 %v2511, 0.0
        %v2529 = vpack.c.bf16 %v2517, %v2513
        %v2530 = vpack.c.bf16 %v2518, %v2514
        %v2531 = vpack.c.bf16 %v2519, %v2515
        %v2532 = vpack.c.bf16 %v2520, %v2516
        %v2533 = vpack.c.bf16 %v2525, %v2521
        %v2534 = vpack.c.bf16 %v2526, %v2522
        %v2535 = vpack.c.bf16 %v2527, %v2523
        %v2536 = vpack.c.bf16 %v2528, %v2524
        %v2537 = vld [vmem:[#allocation11] sm:$0xf]
        %v2538 = vld [vmem:[#allocation11 + $0x4] sm:$0xf]
        %v2539 = vld [vmem:[#allocation11 + $0x8] sm:$0xf]
        %v2540 = vld [vmem:[#allocation11 + $0xc] sm:$0xf]
        %v2541 = vld [vmem:[#allocation11 + $0x10] sm:$0xf]
        %v2542 = vld [vmem:[#allocation11 + $0x14] sm:$0xf]
        %v2543 = vld [vmem:[#allocation11 + $0x18] sm:$0xf]
        %v2544 = vld [vmem:[#allocation11 + $0x1c] sm:$0xf]
        %v2545 = vld [vmem:[#allocation11 + $0x20] sm:$0xf]
        %v2546 = vld [vmem:[#allocation11 + $0x24] sm:$0xf]
        %v2547 = vld [vmem:[#allocation11 + $0x28] sm:$0xf]
        %v2548 = vld [vmem:[#allocation11 + $0x2c] sm:$0xf]
        %v2549 = vld [vmem:[#allocation11 + $0x30] sm:$0xf]
        %v2550 = vld [vmem:[#allocation11 + $0x34] sm:$0xf]
        %v2551 = vld [vmem:[#allocation11 + $0x38] sm:$0xf]
        %v2552 = vld [vmem:[#allocation11 + $0x3c] sm:$0xf]
        %v2553 = vld [vmem:[#allocation11 + $0x40] sm:$0xf]
        %v2554 = vld [vmem:[#allocation11 + $0x44] sm:$0xf]
        %v2555 = vld [vmem:[#allocation11 + $0x48] sm:$0xf]
        %v2556 = vld [vmem:[#allocation11 + $0x4c] sm:$0xf]
        %v2557 = vld [vmem:[#allocation11 + $0x50] sm:$0xf]
        %v2558 = vld [vmem:[#allocation11 + $0x54] sm:$0xf]
        %v2559 = vld [vmem:[#allocation11 + $0x58] sm:$0xf]
        %v2560 = vld [vmem:[#allocation11 + $0x5c] sm:$0xf]
        %v2561 = vld [vmem:[#allocation11 + $0x60] sm:$0xf]
        %v2562 = vld [vmem:[#allocation11 + $0x64] sm:$0xf]
        %v2563 = vld [vmem:[#allocation11 + $0x68] sm:$0xf]
        %v2564 = vld [vmem:[#allocation11 + $0x6c] sm:$0xf]
        %v2565 = vld [vmem:[#allocation11 + $0x70] sm:$0xf]
        %v2566 = vld [vmem:[#allocation11 + $0x74] sm:$0xf]
        %v2567 = vld [vmem:[#allocation11 + $0x78] sm:$0xf]
        %v2568 = vld [vmem:[#allocation11 + $0x7c] sm:$0xf]
        %v2569 = vld [vmem:[#allocation11 + $0x80] sm:$0xf]
        %v2570 = vld [vmem:[#allocation11 + $0x84] sm:$0xf]
        %v2571 = vld [vmem:[#allocation11 + $0x88] sm:$0xf]
        %v2572 = vld [vmem:[#allocation11 + $0x8c] sm:$0xf]
        %v2573 = vld [vmem:[#allocation11 + $0x90] sm:$0xf]
        %v2574 = vld [vmem:[#allocation11 + $0x94] sm:$0xf]
        %v2575 = vld [vmem:[#allocation11 + $0x98] sm:$0xf]
        %v2576 = vld [vmem:[#allocation11 + $0x9c] sm:$0xf]
        %v2577 = vld [vmem:[#allocation11 + $0xa0] sm:$0xf]
        %v2578 = vld [vmem:[#allocation11 + $0xa4] sm:$0xf]
        %v2579 = vld [vmem:[#allocation11 + $0xa8] sm:$0xf]
        %v2580 = vld [vmem:[#allocation11 + $0xac] sm:$0xf]
        %v2581 = vld [vmem:[#allocation11 + $0xb0] sm:$0xf]
        %v2582 = vld [vmem:[#allocation11 + $0xb4] sm:$0xf]
        %v2583 = vld [vmem:[#allocation11 + $0xb8] sm:$0xf]
        %v2584 = vld [vmem:[#allocation11 + $0xbc] sm:$0xf]
        %v2585 = vld [vmem:[#allocation11 + $0xc0] sm:$0xf]
        %v2586 = vld [vmem:[#allocation11 + $0xc4] sm:$0xf]
        %v2587 = vld [vmem:[#allocation11 + $0xc8] sm:$0xf]
        %v2588 = vld [vmem:[#allocation11 + $0xcc] sm:$0xf]
        %v2589 = vld [vmem:[#allocation11 + $0xd0] sm:$0xf]
        %v2590 = vld [vmem:[#allocation11 + $0xd4] sm:$0xf]
        %v2591 = vld [vmem:[#allocation11 + $0xd8] sm:$0xf]
        %v2592 = vld [vmem:[#allocation11 + $0xdc] sm:$0xf]
        %v2593 = vld [vmem:[#allocation11 + $0xe0] sm:$0xf]
        %v2594 = vld [vmem:[#allocation11 + $0xe4] sm:$0xf]
        %v2595 = vld [vmem:[#allocation11 + $0xe8] sm:$0xf]
        %v2596 = vld [vmem:[#allocation11 + $0xec] sm:$0xf]
        %v2597 = vld [vmem:[#allocation11 + $0xf0] sm:$0xf]
        %v2598 = vld [vmem:[#allocation11 + $0xf4] sm:$0xf]
        %v2599 = vld [vmem:[#allocation11 + $0xf8] sm:$0xf]
        %v2600 = vld [vmem:[#allocation11 + $0xfc] sm:$0xf]
        %v2601 = vld [vmem:[%s11] sm:$0x1]
        %v2603 = vlaneseq
        %v2604 = vshrl.u32 %v2603, 7
        %v2605 = vsub.s32 0, %v2604
        %v2606 = vrot.slane %v2601, %v2605
        %v2672 = vunpack.c.l.b16 %v2537
        %v2673 = vunpack.c.l.b16 %v2538
        %v2674 = vunpack.c.l.b16 %v2539
        %v2675 = vunpack.c.l.b16 %v2540
        %v2676 = vunpack.c.l.b16 %v2541
        %v2677 = vunpack.c.l.b16 %v2542
        %v2678 = vunpack.c.l.b16 %v2543
        %v2679 = vunpack.c.l.b16 %v2544
        %v2680 = vunpack.c.l.b16 %v2545
        %v2681 = vunpack.c.l.b16 %v2546
        %v2682 = vunpack.c.l.b16 %v2547
        %v2683 = vunpack.c.l.b16 %v2548
        %v2684 = vunpack.c.l.b16 %v2549
        %v2685 = vunpack.c.l.b16 %v2550
        %v2686 = vunpack.c.l.b16 %v2551
        %v2687 = vunpack.c.l.b16 %v2552
        %v2688 = vunpack.c.l.b16 %v2553
        %v2689 = vunpack.c.l.b16 %v2554
        %v2690 = vunpack.c.l.b16 %v2555
        %v2691 = vunpack.c.l.b16 %v2556
        %v2692 = vunpack.c.l.b16 %v2557
        %v2693 = vunpack.c.l.b16 %v2558
        %v2694 = vunpack.c.l.b16 %v2559
        %v2695 = vunpack.c.l.b16 %v2560
        %v2696 = vunpack.c.l.b16 %v2561
        %v2697 = vunpack.c.l.b16 %v2562
        %v2698 = vunpack.c.l.b16 %v2563
        %v2699 = vunpack.c.l.b16 %v2564
        %v2700 = vunpack.c.l.b16 %v2565
        %v2701 = vunpack.c.l.b16 %v2566
        %v2702 = vunpack.c.l.b16 %v2567
        %v2703 = vunpack.c.l.b16 %v2568
        %v2704 = vunpack.c.l.b16 %v2569
        %v2705 = vunpack.c.l.b16 %v2570
        %v2706 = vunpack.c.l.b16 %v2571
        %v2707 = vunpack.c.l.b16 %v2572
        %v2708 = vunpack.c.l.b16 %v2573
        %v2709 = vunpack.c.l.b16 %v2574
        %v2710 = vunpack.c.l.b16 %v2575
        %v2711 = vunpack.c.l.b16 %v2576
        %v2712 = vunpack.c.l.b16 %v2577
        %v2713 = vunpack.c.l.b16 %v2578
        %v2714 = vunpack.c.l.b16 %v2579
        %v2715 = vunpack.c.l.b16 %v2580
        %v2716 = vunpack.c.l.b16 %v2581
        %v2717 = vunpack.c.l.b16 %v2582
        %v2718 = vunpack.c.l.b16 %v2583
        %v2719 = vunpack.c.l.b16 %v2584
        %v2720 = vunpack.c.l.b16 %v2585
        %v2721 = vunpack.c.l.b16 %v2586
        %v2722 = vunpack.c.l.b16 %v2587
        %v2723 = vunpack.c.l.b16 %v2588
        %v2724 = vunpack.c.l.b16 %v2589
        %v2725 = vunpack.c.l.b16 %v2590
        %v2726 = vunpack.c.l.b16 %v2591
        %v2727 = vunpack.c.l.b16 %v2592
        %v2728 = vunpack.c.l.b16 %v2593
        %v2729 = vunpack.c.l.b16 %v2594
        %v2730 = vunpack.c.l.b16 %v2595
        %v2731 = vunpack.c.l.b16 %v2596
        %v2732 = vunpack.c.l.b16 %v2597
        %v2733 = vunpack.c.l.b16 %v2598
        %v2734 = vunpack.c.l.b16 %v2599
        %v2735 = vunpack.c.l.b16 %v2600
        %v2736 = vpack.c.b16 %v2673, %v2672
        %v2737 = vpack.c.b16 %v2675, %v2674
        %v2738 = vpack.c.b16 %v2677, %v2676
        %v2739 = vpack.c.b16 %v2679, %v2678
        %v2740 = vpack.c.b16 %v2681, %v2680
        %v2741 = vpack.c.b16 %v2683, %v2682
        %v2742 = vpack.c.b16 %v2685, %v2684
        %v2743 = vpack.c.b16 %v2687, %v2686
        %v2744 = vpack.c.b16 %v2689, %v2688
        %v2745 = vpack.c.b16 %v2691, %v2690
        %v2746 = vpack.c.b16 %v2693, %v2692
        %v2747 = vpack.c.b16 %v2695, %v2694
        %v2748 = vpack.c.b16 %v2697, %v2696
        %v2749 = vpack.c.b16 %v2699, %v2698
        %v2750 = vpack.c.b16 %v2701, %v2700
        %v2751 = vpack.c.b16 %v2703, %v2702
        %v2752 = vpack.c.b16 %v2705, %v2704
        %v2753 = vpack.c.b16 %v2707, %v2706
        %v2754 = vpack.c.b16 %v2709, %v2708
        %v2755 = vpack.c.b16 %v2711, %v2710
        %v2756 = vpack.c.b16 %v2713, %v2712
        %v2757 = vpack.c.b16 %v2715, %v2714
        %v2758 = vpack.c.b16 %v2717, %v2716
        %v2759 = vpack.c.b16 %v2719, %v2718
        %v2760 = vpack.c.b16 %v2721, %v2720
        %v2761 = vpack.c.b16 %v2723, %v2722
        %v2762 = vpack.c.b16 %v2725, %v2724
        %v2763 = vpack.c.b16 %v2727, %v2726
        %v2764 = vpack.c.b16 %v2729, %v2728
        %v2765 = vpack.c.b16 %v2731, %v2730
        %v2766 = vpack.c.b16 %v2733, %v2732
        %v2767 = vpack.c.b16 %v2735, %v2734
        %2800 = vmatprep.subr.bf16.mxu0 0
        %2801 = vmatpush1.bf16.msra.mxu0 %v2743
        %2802 = vmatprep.subr.bf16.mxu0 0
        %2803 = vmatpush1.bf16.msra.mxu0 %v2742
        %2804 = vmatprep.subr.bf16.mxu0 0
        %2805 = vmatpush1.bf16.msra.mxu0 %v2741
        %2806 = vmatprep.subr.bf16.mxu0 0
        %2807 = vmatpush1.bf16.msra.mxu0 %v2740
        %2808 = vmatprep.subr.bf16.mxu0 0
        %2809 = vmatpush1.bf16.msra.mxu0 %v2739
        %2810 = vmatprep.subr.bf16.mxu0 0
        %2811 = vmatpush1.bf16.msra.mxu0 %v2738
        %2812 = vmatprep.subr.bf16.mxu0 0
        %2813 = vmatpush1.bf16.msra.mxu0 %v2737
        %2814 = vmatprep.subr.bf16.mxu0 0
        %2815 = vmatpush1.bf16.msra.mxu0 %v2736
        %2816 = vmatprep.subr.bf16.mxu0 0
        %2817 = vmatpush2.bf16.msra.mxu0 %v2751
        %2818 = vmatprep.subr.bf16.mxu0 0
        %2819 = vmatpush2.bf16.msra.mxu0 %v2750
        %2820 = vmatprep.subr.bf16.mxu0 0
        %2821 = vmatpush2.bf16.msra.mxu0 %v2749
        %2822 = vmatprep.subr.bf16.mxu0 0
        %2823 = vmatpush2.bf16.msra.mxu0 %v2748
        %2824 = vmatprep.subr.bf16.mxu0 0
        %2825 = vmatpush2.bf16.msra.mxu0 %v2747
        %2826 = vmatprep.subr.bf16.mxu0 0
        %2827 = vmatpush2.bf16.msra.mxu0 %v2746
        %2828 = vmatprep.subr.bf16.mxu0 0
        %2829 = vmatpush2.bf16.msra.mxu0 %v2745
        %2830 = vmatprep.subr.bf16.mxu0 0
        %2831 = vmatpush2.bf16.msra.mxu0 %v2744
        %2832 = vmatprep.mubr.bf16.mxu0 %v2530
        %2833 = vmatmul.mubr.bf16.gmra.mxu0 %v2529
        %v2834 = vpop.f32.mrf.mxu0
        %v2835 = vadd.f32 %v2606, %v2834
        %v2836 = vpop.f32.mrf.mxu0
        %v2837 = vpop.f32.mrf.mxu0
        %v2838 = vadd.f32 %v2606, %v2837
        %v2839 = vpop.f32.mrf.mxu0
        %2840 = vmatprep.mubr.bf16.mxu0 %v2534
        %2841 = vmatmul.mubr.bf16.gmra.mxu0 %v2533
        %v2842 = vpop.f32.mrf.mxu0
        %v2843 = vadd.f32 %v2606, %v2842
        %v2844 = vpop.f32.mrf.mxu0
        %v2845 = vpop.f32.mrf.mxu0
        %v2846 = vadd.f32 %v2606, %v2845
        %v2847 = vpop.f32.mrf.mxu0
        %2848 = vdwg.mxu0
        %2849 = vmatprep.subr.bf16.mxu0 0
        %2850 = vmatpush1.bf16.msra.mxu0 %v2759
        %2851 = vmatprep.subr.bf16.mxu0 0
        %2852 = vmatpush1.bf16.msra.mxu0 %v2758
        %2853 = vmatprep.subr.bf16.mxu0 0
        %2854 = vmatpush1.bf16.msra.mxu0 %v2757
        %2855 = vmatprep.subr.bf16.mxu0 0
        %2856 = vmatpush1.bf16.msra.mxu0 %v2756
        %2857 = vmatprep.subr.bf16.mxu0 0
        %2858 = vmatpush1.bf16.msra.mxu0 %v2755
        %2859 = vmatprep.subr.bf16.mxu0 0
        %2860 = vmatpush1.bf16.msra.mxu0 %v2754
        %2861 = vmatprep.subr.bf16.mxu0 0
        %2862 = vmatpush1.bf16.msra.mxu0 %v2753
        %2863 = vmatprep.subr.bf16.mxu0 0
        %2864 = vmatpush1.bf16.msra.mxu0 %v2752
        %2865 = vmatprep.subr.bf16.mxu0 0
        %2866 = vmatpush2.bf16.msra.mxu0 %v2767
        %2867 = vmatprep.subr.bf16.mxu0 0
        %2868 = vmatpush2.bf16.msra.mxu0 %v2766
        %2869 = vmatprep.subr.bf16.mxu0 0
        %2870 = vmatpush2.bf16.msra.mxu0 %v2765
        %2871 = vmatprep.subr.bf16.mxu0 0
        %2872 = vmatpush2.bf16.msra.mxu0 %v2764
        %2873 = vmatprep.subr.bf16.mxu0 0
        %2874 = vmatpush2.bf16.msra.mxu0 %v2763
        %2875 = vmatprep.subr.bf16.mxu0 0
        %2876 = vmatpush2.bf16.msra.mxu0 %v2762
        %2877 = vmatprep.subr.bf16.mxu0 0
        %2878 = vmatpush2.bf16.msra.mxu0 %v2761
        %2879 = vmatprep.subr.bf16.mxu0 0
        %2880 = vmatpush2.bf16.msra.mxu0 %v2760
        %2881 = vmatprep.mubr.bf16.mxu0 %v2532
        %2882 = vmatmul.mubr.bf16.gmra.mxu0 %v2531
        %v2883 = vpop.f32.mrf.mxu0
        %v2884 = vadd.f32 %v2835, %v2883
        %v2885 = vpop.f32.mrf.mxu0
        %v2886 = vpop.f32.mrf.mxu0
        %v2887 = vadd.f32 %v2838, %v2886
        %v2888 = vpop.f32.mrf.mxu0
        %2889 = vmatprep.mubr.bf16.mxu0 %v2536
        %2890 = vmatmul.mubr.bf16.gmra.mxu0 %v2535
        %v2891 = vpop.f32.mrf.mxu0
        %v2892 = vadd.f32 %v2843, %v2891
        %v2893 = vpop.f32.mrf.mxu0
        %v2894 = vpop.f32.mrf.mxu0
        %v2895 = vadd.f32 %v2846, %v2894
        %v2896 = vpop.f32.mrf.mxu0
        %2897 = vdwg.mxu0
        %v2898 = vadd.f32 %v2187, %v2884
        %v2899 = vadd.f32 %v2188, %v2887
        %v2900 = vadd.f32 %v2189, %v2892
        %v2901 = vadd.f32 %v2190, %v2895
        %v2902 = vld [vmem:[%s12] sm:$0x1]
        %v2903 = vld [vmem:[%s13] sm:$0x1]
        %2904 = vadd.xlane.f32.xlu0 %v2898
        %v2905 = vpop.xlane.xlu0 %2904
        %2906 = vadd.xlane.f32.xlu0 %v2899
        %v2907 = vpop.xlane.xlu0 %2906
        %2908 = vadd.xlane.f32.xlu0 %v2900
        %v2909 = vpop.xlane.xlu0 %2908
        %2910 = vadd.xlane.f32.xlu0 %v2901
        %v2911 = vpop.xlane.xlu0 %2910
        %v2912 = vmul.f32 %v2905, %v2134
        %v2913 = vmul.f32 %v2907, %v2134
        %v2914 = vmul.f32 %v2909, %v2134
        %v2915 = vmul.f32 %v2911, %v2134
        %v2916 = vsub.f32 %v2898, %v2912
        %v2917 = vsub.f32 %v2899, %v2913
        %v2918 = vsub.f32 %v2900, %v2914
        %v2919 = vsub.f32 %v2901, %v2915
        %v2920 = vmul.f32 %v2916, %v2916
        %v2921 = vmul.f32 %v2917, %v2917
        %v2922 = vmul.f32 %v2918, %v2918
        %v2923 = vmul.f32 %v2919, %v2919
        %2924 = vadd.xlane.f32.xlu0 %v2920
        %v2925 = vpop.xlane.xlu0 %2924
        %2926 = vadd.xlane.f32.xlu0 %v2921
        %v2927 = vpop.xlane.xlu0 %2926
        %2928 = vadd.xlane.f32.xlu0 %v2922
        %v2929 = vpop.xlane.xlu0 %2928
        %2930 = vadd.xlane.f32.xlu0 %v2923
        %v2931 = vpop.xlane.xlu0 %2930
        %v2932 = vmul.f32 %v2925, %v2134
        %v2933 = vmul.f32 %v2927, %v2134
        %v2934 = vmul.f32 %v2929, %v2134
        %v2935 = vmul.f32 %v2931, %v2134
        %v2936 = vadd.f32 %v2932, 1e-05
        %v2937 = vadd.f32 %v2933, 1e-05
        %v2938 = vadd.f32 %v2934, 1e-05
        %v2939 = vadd.f32 %v2935, 1e-05
        %v2940 = vrsqrt.pop %v2936
        %v2941 = vrsqrt.pop %v2937
        %v2942 = vrsqrt.pop %v2938
        %v2943 = vrsqrt.pop %v2939
        %v2944 = vmul.f32 %v2916, %v2940
        %v2945 = vmul.f32 %v2917, %v2941
        %v2946 = vmul.f32 %v2918, %v2942
        %v2947 = vmul.f32 %v2919, %v2943
        %v2949 = vlaneseq
        %v2950 = vshrl.u32 %v2949, 7
        %v2951 = vsub.s32 0, %v2950
        %v2952 = vrot.slane %v2902, %v2951
        %v2954 = vmul.f32 %v2944, %v2952
        %v2955 = vmul.f32 %v2945, %v2952
        %v2956 = vmul.f32 %v2946, %v2952
        %v2957 = vmul.f32 %v2947, %v2952
        %v2959 = vlaneseq
        %v2960 = vshrl.u32 %v2959, 7
        %v2961 = vsub.s32 0, %v2960
        %v2962 = vrot.slane %v2903, %v2961
        %v2964 = vadd.f32 %v2954, %v2962
        %v2965 = vadd.f32 %v2955, %v2962
        %v2966 = vadd.f32 %v2956, %v2962
        %v2967 = vadd.f32 %v2957, %v2962
        %v2968 = vpack.c.bf16 %v2965, %v2964
        %v2969 = vpack.c.bf16 %v2967, %v2966
        %s2970 = scalar_lea.vmem [#allocation5], 192
        %v2971 = vld [vmem:[%s2970] sm:$0xff]
        %v2972 = vld [vmem:[%s2970 + $0x8] sm:$0xf]
        %v2973 = vld [vmem:[%s2970 + $0xc] sm:$0xff]
        %v2974 = vld [vmem:[%s2970 + $0x14] sm:$0xf]
        %v2975 = vld [vmem:[%s2970 + $0x18] sm:$0xff]
        %v2976 = vld [vmem:[%s2970 + $0x20] sm:$0xf]
        %v2977 = vld [vmem:[%s2970 + $0x24] sm:$0xff]
        %v2978 = vld [vmem:[%s2970 + $0x2c] sm:$0xf]
        %v2979 = vld [vmem:[%s2970 + $0x30] sm:$0xff]
        %v2980 = vld [vmem:[%s2970 + $0x38] sm:$0xf]
        %v2981 = vld [vmem:[%s2970 + $0x3c] sm:$0xff]
        %v2982 = vld [vmem:[%s2970 + $0x44] sm:$0xf]
        %v2983 = vld [vmem:[%s2970 + $0x48] sm:$0xff]
        %v2984 = vld [vmem:[%s2970 + $0x50] sm:$0xf]
        %v2985 = vld [vmem:[%s2970 + $0x54] sm:$0xff]
        %v2986 = vld [vmem:[%s2970 + $0x5c] sm:$0xf]
        %v2987 = vld [vmem:[%s2970 + $0x60] sm:$0xff]
        %v2988 = vld [vmem:[%s2970 + $0x68] sm:$0xf]
        %v2989 = vld [vmem:[%s2970 + $0x6c] sm:$0xff]
        %v2990 = vld [vmem:[%s2970 + $0x74] sm:$0xf]
        %v2991 = vld [vmem:[%s2970 + $0x78] sm:$0xff]
        %v2992 = vld [vmem:[%s2970 + $0x80] sm:$0xf]
        %v2993 = vld [vmem:[%s2970 + $0x84] sm:$0xff]
        %v2994 = vld [vmem:[%s2970 + $0x8c] sm:$0xf]
        %v2995 = vld [vmem:[%s2970 + $0x90] sm:$0xff]
        %v2996 = vld [vmem:[%s2970 + $0x98] sm:$0xf]
        %v2997 = vld [vmem:[%s2970 + $0x9c] sm:$0xff]
        %v2998 = vld [vmem:[%s2970 + $0xa4] sm:$0xf]
        %v2999 = vld [vmem:[%s2970 + $0xa8] sm:$0xff]
        %v3000 = vld [vmem:[%s2970 + $0xb0] sm:$0xf]
        %v3001 = vld [vmem:[%s2970 + $0xb4] sm:$0xff]
        %v3002 = vld [vmem:[%s2970 + $0xbc] sm:$0xf]
        %v3035 = vunpack.c.l.b16 %v2971
        %v3036 = vunpack.c.h.b16 %v2971
        %v3037 = vunpack.c.l.b16 %v2972
        %v3038 = vunpack.c.l.b16 %v2973
        %v3039 = vunpack.c.h.b16 %v2973
        %v3040 = vunpack.c.l.b16 %v2974
        %v3041 = vunpack.c.l.b16 %v2975
        %v3042 = vunpack.c.h.b16 %v2975
        %v3043 = vunpack.c.l.b16 %v2976
        %v3044 = vunpack.c.l.b16 %v2977
        %v3045 = vunpack.c.h.b16 %v2977
        %v3046 = vunpack.c.l.b16 %v2978
        %v3047 = vunpack.c.l.b16 %v2979
        %v3048 = vunpack.c.h.b16 %v2979
        %v3049 = vunpack.c.l.b16 %v2980
        %v3050 = vunpack.c.l.b16 %v2981
        %v3051 = vunpack.c.h.b16 %v2981
        %v3052 = vunpack.c.l.b16 %v2982
        %v3053 = vunpack.c.l.b16 %v2983
        %v3054 = vunpack.c.h.b16 %v2983
        %v3055 = vunpack.c.l.b16 %v2984
        %v3056 = vunpack.c.l.b16 %v2985
        %v3057 = vunpack.c.h.b16 %v2985
        %v3058 = vunpack.c.l.b16 %v2986
        %v3059 = vunpack.c.l.b16 %v2987
        %v3060 = vunpack.c.h.b16 %v2987
        %v3061 = vunpack.c.l.b16 %v2988
        %v3062 = vunpack.c.l.b16 %v2989
        %v3063 = vunpack.c.h.b16 %v2989
        %v3064 = vunpack.c.l.b16 %v2990
        %v3065 = vunpack.c.l.b16 %v2991
        %v3066 = vunpack.c.h.b16 %v2991
        %v3067 = vunpack.c.l.b16 %v2992
        %v3068 = vunpack.c.l.b16 %v2993
        %v3069 = vunpack.c.h.b16 %v2993
        %v3070 = vunpack.c.l.b16 %v2994
        %v3071 = vunpack.c.l.b16 %v2995
        %v3072 = vunpack.c.h.b16 %v2995
        %v3073 = vunpack.c.l.b16 %v2996
        %v3074 = vunpack.c.l.b16 %v2997
        %v3075 = vunpack.c.h.b16 %v2997
        %v3076 = vunpack.c.l.b16 %v2998
        %v3077 = vunpack.c.l.b16 %v2999
        %v3078 = vunpack.c.h.b16 %v2999
        %v3079 = vunpack.c.l.b16 %v3000
        %v3080 = vunpack.c.l.b16 %v3001
        %v3081 = vunpack.c.h.b16 %v3001
        %v3082 = vunpack.c.l.b16 %v3002
        %v3083 = vpack.c.b16 %v3038, %v3035
        %v3084 = vpack.c.b16 %v3039, %v3036
        %v3085 = vpack.c.b16 %v3040, %v3037
        %v3086 = vpack.c.b16 %v3044, %v3041
        %v3087 = vpack.c.b16 %v3045, %v3042
        %v3088 = vpack.c.b16 %v3046, %v3043
        %v3089 = vpack.c.b16 %v3050, %v3047
        %v3090 = vpack.c.b16 %v3051, %v3048
        %v3091 = vpack.c.b16 %v3052, %v3049
        %v3092 = vpack.c.b16 %v3056, %v3053
        %v3093 = vpack.c.b16 %v3057, %v3054
        %v3094 = vpack.c.b16 %v3058, %v3055
        %v3095 = vpack.c.b16 %v3062, %v3059
        %v3096 = vpack.c.b16 %v3063, %v3060
        %v3097 = vpack.c.b16 %v3064, %v3061
        %v3098 = vpack.c.b16 %v3068, %v3065
        %v3099 = vpack.c.b16 %v3069, %v3066
        %v3100 = vpack.c.b16 %v3070, %v3067
        %v3101 = vpack.c.b16 %v3074, %v3071
        %v3102 = vpack.c.b16 %v3075, %v3072
        %v3103 = vpack.c.b16 %v3076, %v3073
        %v3104 = vpack.c.b16 %v3080, %v3077
        %v3105 = vpack.c.b16 %v3081, %v3078
        %v3106 = vpack.c.b16 %v3082, %v3079
        %3131 = vmatprep.subr.bf16.mxu0 %v3105
        %3132 = vmatpush1.bf16.msra.mxu0 %v3104
        %3133 = vmatprep.subr.bf16.mxu0 %v3102
        %3134 = vmatpush1.bf16.msra.mxu0 %v3101
        %3135 = vmatprep.subr.bf16.mxu0 %v3099
        %3136 = vmatpush1.bf16.msra.mxu0 %v3098
        %3137 = vmatprep.subr.bf16.mxu0 %v3096
        %3138 = vmatpush1.bf16.msra.mxu0 %v3095
        %3139 = vmatprep.subr.bf16.mxu0 %v3093
        %3140 = vmatpush1.bf16.msra.mxu0 %v3092
        %3141 = vmatprep.subr.bf16.mxu0 %v3090
        %3142 = vmatpush1.bf16.msra.mxu0 %v3089
        %3143 = vmatprep.subr.bf16.mxu0 %v3087
        %3144 = vmatpush1.bf16.msra.mxu0 %v3086
        %3145 = vmatprep.subr.bf16.mxu0 %v3084
        %3146 = vmatpush1.bf16.msra.mxu0 %v3083
        %3147 = vmatprep.subr.bf16.mxu0 0
        %3148 = vmatpush2.bf16.msra.mxu0 0
        %3149 = vmatprep.subr.bf16.mxu0 0
        %3150 = vmatpush2.bf16.msra.mxu0 0
        %3151 = vmatprep.subr.bf16.mxu0 0
        %3152 = vmatpush2.bf16.msra.mxu0 0
        %3153 = vmatprep.subr.bf16.mxu0 0
        %3154 = vmatpush2.bf16.msra.mxu0 0
        %3155 = vmatprep.subr.bf16.mxu0 0
        %3156 = vmatpush2.bf16.msra.mxu0 0
        %3157 = vmatprep.subr.bf16.mxu0 0
        %3158 = vmatpush2.bf16.msra.mxu0 0
        %3159 = vmatprep.subr.bf16.mxu0 0
        %3160 = vmatpush2.bf16.msra.mxu0 0
        %3161 = vmatprep.subr.bf16.mxu0 0
        %3162 = vmatpush2.bf16.msra.mxu0 0
        %3163 = vmatprep.mubr.bf16.mxu0 0
        %3164 = vmatmul.mubr.bf16.gmra.mxu0 %v2968
        %v3165 = vpop.f32.mrf.mxu0
        %v3166 = vadd.f32 0.0, %v3165
        %v3167 = vpop.f32.mrf.mxu0
        %v3168 = vadd.f32 0.0, %v3167
        %v3169 = vpop.f32.mrf.mxu0
        %v3170 = vadd.f32 0.0, %v3169
        %v3171 = vpop.f32.mrf.mxu0
        %v3172 = vadd.f32 0.0, %v3171
        %3173 = vmatprep.mubr.bf16.mxu0 0
        %3174 = vmatmul.mubr.bf16.gmra.mxu0 %v2969
        %v3175 = vpop.f32.mrf.mxu0
        %v3176 = vadd.f32 0.0, %v3175
        %v3177 = vpop.f32.mrf.mxu0
        %v3178 = vadd.f32 0.0, %v3177
        %v3179 = vpop.f32.mrf.mxu0
        %v3180 = vadd.f32 0.0, %v3179
        %v3181 = vpop.f32.mrf.mxu0
        %v3182 = vadd.f32 0.0, %v3181
        %3183 = vdwg.mxu0
        %3184 = vmatprep.subr.bf16.mxu0 0
        %3185 = vmatpush1.bf16.msra.mxu0 %v3106
        %3186 = vmatprep.subr.bf16.mxu0 0
        %3187 = vmatpush1.bf16.msra.mxu0 %v3103
        %3188 = vmatprep.subr.bf16.mxu0 0
        %3189 = vmatpush1.bf16.msra.mxu0 %v3100
        %3190 = vmatprep.subr.bf16.mxu0 0
        %3191 = vmatpush1.bf16.msra.mxu0 %v3097
        %3192 = vmatprep.subr.bf16.mxu0 0
        %3193 = vmatpush1.bf16.msra.mxu0 %v3094
        %3194 = vmatprep.subr.bf16.mxu0 0
        %3195 = vmatpush1.bf16.msra.mxu0 %v3091
        %3196 = vmatprep.subr.bf16.mxu0 0
        %3197 = vmatpush1.bf16.msra.mxu0 %v3088
        %3198 = vmatprep.subr.bf16.mxu0 0
        %3199 = vmatpush1.bf16.msra.mxu0 %v3085
        %3200 = vmatprep.subr.bf16.mxu0 0
        %3201 = vmatpush2.bf16.msra.mxu0 0
        %3202 = vmatprep.subr.bf16.mxu0 0
        %3203 = vmatpush2.bf16.msra.mxu0 0
        %3204 = vmatprep.subr.bf16.mxu0 0
        %3205 = vmatpush2.bf16.msra.mxu0 0
        %3206 = vmatprep.subr.bf16.mxu0 0
        %3207 = vmatpush2.bf16.msra.mxu0 0
        %3208 = vmatprep.subr.bf16.mxu0 0
        %3209 = vmatpush2.bf16.msra.mxu0 0
        %3210 = vmatprep.subr.bf16.mxu0 0
        %3211 = vmatpush2.bf16.msra.mxu0 0
        %3212 = vmatprep.subr.bf16.mxu0 0
        %3213 = vmatpush2.bf16.msra.mxu0 0
        %3214 = vmatprep.subr.bf16.mxu0 0
        %3215 = vmatpush2.bf16.msra.mxu0 0
        %3216 = vmatprep.mubr.bf16.mxu0 0
        %3217 = vmatmul.mubr.bf16.gmra.mxu0 %v2968
        %v3218 = vpop.f32.mrf.mxu0
        %v3219 = vadd.f32 0.0, %v3218
        %v3220 = vpop.f32.mrf.mxu0
        %v3221 = vpop.f32.mrf.mxu0
        %v3222 = vadd.f32 0.0, %v3221
        %v3223 = vpop.f32.mrf.mxu0
        %3224 = vmatprep.mubr.bf16.mxu0 0
        %3225 = vmatmul.mubr.bf16.gmra.mxu0 %v2969
        %v3226 = vpop.f32.mrf.mxu0
        %v3227 = vadd.f32 0.0, %v3226
        %v3228 = vpop.f32.mrf.mxu0
        %v3229 = vpop.f32.mrf.mxu0
        %v3230 = vadd.f32 0.0, %v3229
        %v3231 = vpop.f32.mrf.mxu0
        %3232 = vdwg.mxu0
        %s3233 = scalar_lea.vmem [#allocation7], 64
        %v3234 = vld [vmem:[%s3233] sm:$0xf]
        %v3235 = vld [vmem:[%s3233 + $0x4] sm:$0xf]
        %v3236 = vld [vmem:[%s3233 + $0x8] sm:$0xf]
        %v3237 = vld [vmem:[%s3233 + $0xc] sm:$0xf]
        %v3238 = vld [vmem:[%s3233 + $0x10] sm:$0xf]
        %v3239 = vld [vmem:[%s3233 + $0x14] sm:$0xf]
        %v3240 = vld [vmem:[%s3233 + $0x18] sm:$0xf]
        %v3241 = vld [vmem:[%s3233 + $0x1c] sm:$0xf]
        %v3242 = vld [vmem:[%s3233 + $0x20] sm:$0xf]
        %v3243 = vld [vmem:[%s3233 + $0x24] sm:$0xf]
        %v3244 = vld [vmem:[%s3233 + $0x28] sm:$0xf]
        %v3245 = vld [vmem:[%s3233 + $0x2c] sm:$0xf]
        %v3246 = vld [vmem:[%s3233 + $0x30] sm:$0xf]
        %v3247 = vld [vmem:[%s3233 + $0x34] sm:$0xf]
        %v3248 = vld [vmem:[%s3233 + $0x38] sm:$0xf]
        %v3249 = vld [vmem:[%s3233 + $0x3c] sm:$0xf]
        %v3250 = vpack.c.bf16 %v3170, %v3166
        %v3251 = vpack.c.bf16 %v3180, %v3176
        %v3252 = vpack.c.bf16 %v3172, %v3168
        %v3253 = vpack.c.bf16 %v3182, %v3178
        %v3254 = vpack.c.bf16 %v3222, %v3219
        %v3255 = vpack.c.bf16 %v3230, %v3227
        %v3257 = vsel %vm1128, %v3250, 0
        %v3260 = vsel %vm1128, %v3251, 0
        %v3263 = vsel %vm1128, %v3252, 0
        %v3266 = vsel %vm1128, %v3253, 0
        %3268 = vmatprep.subr.bf16.mxu0 0
        %3269 = vmatpush1.bf16.xpose.msra.mxu0 0
        %3270 = vmatprep.subr.bf16.mxu0 0
        %3271 = vmatpush1.bf16.xpose.msra.mxu0 0
        %3272 = vmatprep.subr.bf16.mxu0 0
        %3273 = vmatpush1.bf16.xpose.msra.mxu0 0
        %3274 = vmatprep.subr.bf16.mxu0 0
        %3275 = vmatpush1.bf16.xpose.msra.mxu0 0
        %3276 = vmatprep.subr.bf16.mxu0 0
        %3277 = vmatpush1.bf16.xpose.msra.mxu0 0
        %3278 = vmatprep.subr.bf16.mxu0 0
        %3279 = vmatpush1.bf16.xpose.msra.mxu0 0
        %3280 = vmatprep.subr.bf16.mxu0 0
        %3281 = vmatpush1.bf16.xpose.msra.mxu0 %v3266
        %3282 = vmatprep.subr.bf16.mxu0 0
        %3283 = vmatpush1.bf16.xpose.msra.mxu0 %v3263
        %3284 = vmatprep.subr.bf16.mxu0 0
        %3285 = vmatpush2.bf16.xpose.msra.mxu0 0
        %3286 = vmatprep.subr.bf16.mxu0 0
        %3287 = vmatpush2.bf16.xpose.msra.mxu0 0
        %3288 = vmatprep.subr.bf16.mxu0 0
        %3289 = vmatpush2.bf16.xpose.msra.mxu0 0
        %3290 = vmatprep.subr.bf16.mxu0 0
        %3291 = vmatpush2.bf16.xpose.msra.mxu0 0
        %3292 = vmatprep.subr.bf16.mxu0 0
        %3293 = vmatpush2.bf16.xpose.msra.mxu0 0
        %3294 = vmatprep.subr.bf16.mxu0 0
        %3295 = vmatpush2.bf16.xpose.msra.mxu0 0
        %3296 = vmatprep.subr.bf16.mxu0 0
        %3297 = vmatpush2.bf16.xpose.msra.mxu0 0
        %3298 = vmatprep.subr.bf16.mxu0 0
        %3299 = vmatpush2.bf16.xpose.msra.mxu0 0
        %3300 = vmatprep.mubr.bf16.mxu0 0
        %3301 = vmatmul.mubr.bf16.gmra.mxu0 %v3257
        %v3302 = vpop.f32.mrf.mxu0
        %v3303 = vadd.f32 %v838, %v3302
        %v3304 = vpop.f32.mrf.mxu0
        %v3305 = vpop.f32.mrf.mxu0
        %v3306 = vadd.f32 %v839, %v3305
        %v3307 = vpop.f32.mrf.mxu0
        %3308 = vmatprep.mubr.bf16.mxu0 0
        %3309 = vmatmul.mubr.bf16.gmra.mxu0 %v3260
        %v3310 = vpop.f32.mrf.mxu0
        %v3311 = vadd.f32 %v840, %v3310
        %v3312 = vpop.f32.mrf.mxu0
        %v3313 = vpop.f32.mrf.mxu0
        %v3314 = vadd.f32 %v841, %v3313
        %v3315 = vpop.f32.mrf.mxu0
        %3316 = vdwg.mxu0
        %v3317 = vsel %vm1128, %v3303, -inf
        %3318 = vmax.xlane.f32.xlu0 %v3317
        %v3319 = vpop.xlane.xlu0 %3318
        %v3320 = vsel %vm1128, %v3306, -inf
        %3321 = vmax.xlane.f32.xlu0 %v3320
        %v3322 = vpop.xlane.xlu0 %3321
        %v3323 = vsel %vm1128, %v3311, -inf
        %3324 = vmax.xlane.f32.xlu0 %v3323
        %v3325 = vpop.xlane.xlu0 %3324
        %v3326 = vsel %vm1128, %v3314, -inf
        %3327 = vmax.xlane.f32.xlu0 %v3326
        %v3328 = vpop.xlane.xlu0 %3327
        %v3329 = vsub.f32 %v3303, %v3319
        %v3330 = vsub.f32 %v3306, %v3322
        %v3331 = vsub.f32 %v3311, %v3325
        %v3332 = vsub.f32 %v3314, %v3328
        %v3333 = vmul.f32 %v3329, 1.442695
        %v3334 = vpow.pop %v3333
        %v3335 = vmul.f32 %v3330, 1.442695
        %v3336 = vpow.pop %v3335
        %v3337 = vmul.f32 %v3331, 1.442695
        %v3338 = vpow.pop %v3337
        %v3339 = vmul.f32 %v3332, 1.442695
        %v3340 = vpow.pop %v3339
        %v3341 = vsel %vm1128, %v3334, 0.0
        %3342 = vadd.xlane.f32.xlu0 %v3341
        %v3343 = vpop.xlane.xlu0 %3342
        %v3344 = vsel %vm1128, %v3336, 0.0
        %3345 = vadd.xlane.f32.xlu0 %v3344
        %v3346 = vpop.xlane.xlu0 %3345
        %v3347 = vsel %vm1128, %v3338, 0.0
        %3348 = vadd.xlane.f32.xlu0 %v3347
        %v3349 = vpop.xlane.xlu0 %3348
        %v3350 = vsel %vm1128, %v3340, 0.0
        %3351 = vadd.xlane.f32.xlu0 %v3350
        %v3352 = vpop.xlane.xlu0 %3351
        %v3353 = vrcp.pop %v3343
        %v3354 = vrcp.pop %v3346
        %v3355 = vrcp.pop %v3349
        %v3356 = vrcp.pop %v3352
        %v3357 = vmul.f32 %v3334, %v3353
        %v3358 = vmul.f32 %v3336, %v3354
        %v3359 = vmul.f32 %v3338, %v3355
        %v3360 = vmul.f32 %v3340, %v3356
        %v3361 = vpack.c.bf16 %v3358, %v3357
        %v3362 = vpack.c.bf16 %v3360, %v3359
        %v3364 = vsel %vm1128, %v3361, 0
        %v3367 = vsel %vm1128, %v3362, 0
        %3369 = vmatprep.subr.bf16.mxu0 0
        %3370 = vmatpush1.bf16.msra.mxu0 0
        %3371 = vmatprep.subr.bf16.mxu0 0
        %3372 = vmatpush1.bf16.msra.mxu0 0
        %3373 = vmatprep.subr.bf16.mxu0 0
        %3374 = vmatpush1.bf16.msra.mxu0 0
        %3375 = vmatprep.subr.bf16.mxu0 0
        %3376 = vmatpush1.bf16.msra.mxu0 0
        %3377 = vmatprep.subr.bf16.mxu0 0
        %3378 = vmatpush1.bf16.msra.mxu0 0
        %3379 = vmatprep.subr.bf16.mxu0 0
        %3380 = vmatpush1.bf16.msra.mxu0 0
        %3381 = vmatprep.subr.bf16.mxu0 0
        %3382 = vmatpush1.bf16.msra.mxu0 %v3255
        %3383 = vmatprep.subr.bf16.mxu0 0
        %3384 = vmatpush1.bf16.msra.mxu0 %v3254
        %3385 = vmatprep.subr.bf16.mxu0 0
        %3386 = vmatpush2.bf16.msra.mxu0 0
        %3387 = vmatprep.subr.bf16.mxu0 0
        %3388 = vmatpush2.bf16.msra.mxu0 0
        %3389 = vmatprep.subr.bf16.mxu0 0
        %3390 = vmatpush2.bf16.msra.mxu0 0
        %3391 = vmatprep.subr.bf16.mxu0 0
        %3392 = vmatpush2.bf16.msra.mxu0 0
        %3393 = vmatprep.subr.bf16.mxu0 0
        %3394 = vmatpush2.bf16.msra.mxu0 0
        %3395 = vmatprep.subr.bf16.mxu0 0
        %3396 = vmatpush2.bf16.msra.mxu0 0
        %3397 = vmatprep.subr.bf16.mxu0 0
        %3398 = vmatpush2.bf16.msra.mxu0 0
        %3399 = vmatprep.subr.bf16.mxu0 0
        %3400 = vmatpush2.bf16.msra.mxu0 0
        %3401 = vmatprep.mubr.bf16.mxu0 0
        %3402 = vmatmul.mubr.bf16.gmra.mxu0 %v3364
        %v3403 = vpop.f32.mrf.mxu0
        %v3404 = vadd.f32 0.0, %v3403
        %v3405 = vpop.f32.mrf.mxu0
        %v3406 = vpop.f32.mrf.mxu0
        %v3407 = vadd.f32 0.0, %v3406
        %v3408 = vpop.f32.mrf.mxu0
        %3409 = vmatprep.mubr.bf16.mxu0 0
        %3410 = vmatmul.mubr.bf16.gmra.mxu0 %v3367
        %v3411 = vpop.f32.mrf.mxu0
        %v3412 = vadd.f32 0.0, %v3411
        %v3413 = vpop.f32.mrf.mxu0
        %v3414 = vpop.f32.mrf.mxu0
        %v3415 = vadd.f32 0.0, %v3414
        %v3416 = vpop.f32.mrf.mxu0
        %3417 = vdwg.mxu0
        %v3418 = vpack.c.bf16 %v3407, %v3404
        %v3419 = vpack.c.bf16 %v3415, %v3412
        %3422 = vrot.lane.b32.xlu0 %v3250, 96
        %v3423 = vpop.permute.xlu0 %3422
        %3424 = vrot.lane.b32.xlu0 %v3251, 96
        %v3425 = vpop.permute.xlu0 %3424
        %3428 = vrot.lane.b32.xlu0 %v3252, 96
        %v3429 = vpop.permute.xlu0 %3428
        %3430 = vrot.lane.b32.xlu0 %v3253, 96
        %v3431 = vpop.permute.xlu0 %3430
        %v3433 = vsel %vm1128, %v3423, 0
        %v3436 = vsel %vm1128, %v3425, 0
        %v3439 = vsel %vm1128, %v3429, 0
        %v3442 = vsel %vm1128, %v3431, 0
        %3444 = vmatprep.subr.bf16.mxu0 0
        %3445 = vmatpush1.bf16.xpose.msra.mxu0 0
        %3446 = vmatprep.subr.bf16.mxu0 0
        %3447 = vmatpush1.bf16.xpose.msra.mxu0 0
        %3448 = vmatprep.subr.bf16.mxu0 0
        %3449 = vmatpush1.bf16.xpose.msra.mxu0 0
        %3450 = vmatprep.subr.bf16.mxu0 0
        %3451 = vmatpush1.bf16.xpose.msra.mxu0 0
        %3452 = vmatprep.subr.bf16.mxu0 0
        %3453 = vmatpush1.bf16.xpose.msra.mxu0 0
        %3454 = vmatprep.subr.bf16.mxu0 0
        %3455 = vmatpush1.bf16.xpose.msra.mxu0 0
        %3456 = vmatprep.subr.bf16.mxu0 0
        %3457 = vmatpush1.bf16.xpose.msra.mxu0 %v3442
        %3458 = vmatprep.subr.bf16.mxu0 0
        %3459 = vmatpush1.bf16.xpose.msra.mxu0 %v3439
        %3460 = vmatprep.subr.bf16.mxu0 0
        %3461 = vmatpush2.bf16.xpose.msra.mxu0 0
        %3462 = vmatprep.subr.bf16.mxu0 0
        %3463 = vmatpush2.bf16.xpose.msra.mxu0 0
        %3464 = vmatprep.subr.bf16.mxu0 0
        %3465 = vmatpush2.bf16.xpose.msra.mxu0 0
        %3466 = vmatprep.subr.bf16.mxu0 0
        %3467 = vmatpush2.bf16.xpose.msra.mxu0 0
        %3468 = vmatprep.subr.bf16.mxu0 0
        %3469 = vmatpush2.bf16.xpose.msra.mxu0 0
        %3470 = vmatprep.subr.bf16.mxu0 0
        %3471 = vmatpush2.bf16.xpose.msra.mxu0 0
        %3472 = vmatprep.subr.bf16.mxu0 0
        %3473 = vmatpush2.bf16.xpose.msra.mxu0 0
        %3474 = vmatprep.subr.bf16.mxu0 0
        %3475 = vmatpush2.bf16.xpose.msra.mxu0 0
        %3476 = vmatprep.mubr.bf16.mxu0 0
        %3477 = vmatmul.mubr.bf16.gmra.mxu0 %v3433
        %v3478 = vpop.f32.mrf.mxu0
        %v3479 = vadd.f32 %v838, %v3478
        %v3480 = vpop.f32.mrf.mxu0
        %v3481 = vpop.f32.mrf.mxu0
        %v3482 = vadd.f32 %v839, %v3481
        %v3483 = vpop.f32.mrf.mxu0
        %3484 = vmatprep.mubr.bf16.mxu0 0
        %3485 = vmatmul.mubr.bf16.gmra.mxu0 %v3436
        %v3486 = vpop.f32.mrf.mxu0
        %v3487 = vadd.f32 %v840, %v3486
        %v3488 = vpop.f32.mrf.mxu0
        %v3489 = vpop.f32.mrf.mxu0
        %v3490 = vadd.f32 %v841, %v3489
        %v3491 = vpop.f32.mrf.mxu0
        %3492 = vdwg.mxu0
        %v3493 = vsel %vm1128, %v3479, -inf
        %3494 = vmax.xlane.f32.xlu0 %v3493
        %v3495 = vpop.xlane.xlu0 %3494
        %v3496 = vsel %vm1128, %v3482, -inf
        %3497 = vmax.xlane.f32.xlu0 %v3496
        %v3498 = vpop.xlane.xlu0 %3497
        %v3499 = vsel %vm1128, %v3487, -inf
        %3500 = vmax.xlane.f32.xlu0 %v3499
        %v3501 = vpop.xlane.xlu0 %3500
        %v3502 = vsel %vm1128, %v3490, -inf
        %3503 = vmax.xlane.f32.xlu0 %v3502
        %v3504 = vpop.xlane.xlu0 %3503
        %v3505 = vsub.f32 %v3479, %v3495
        %v3506 = vsub.f32 %v3482, %v3498
        %v3507 = vsub.f32 %v3487, %v3501
        %v3508 = vsub.f32 %v3490, %v3504
        %v3509 = vmul.f32 %v3505, 1.442695
        %v3510 = vpow.pop %v3509
        %v3511 = vmul.f32 %v3506, 1.442695
        %v3512 = vpow.pop %v3511
        %v3513 = vmul.f32 %v3507, 1.442695
        %v3514 = vpow.pop %v3513
        %v3515 = vmul.f32 %v3508, 1.442695
        %v3516 = vpow.pop %v3515
        %v3517 = vsel %vm1128, %v3510, 0.0
        %3518 = vadd.xlane.f32.xlu0 %v3517
        %v3519 = vpop.xlane.xlu0 %3518
        %v3520 = vsel %vm1128, %v3512, 0.0
        %3521 = vadd.xlane.f32.xlu0 %v3520
        %v3522 = vpop.xlane.xlu0 %3521
        %v3523 = vsel %vm1128, %v3514, 0.0
        %3524 = vadd.xlane.f32.xlu0 %v3523
        %v3525 = vpop.xlane.xlu0 %3524
        %v3526 = vsel %vm1128, %v3516, 0.0
        %3527 = vadd.xlane.f32.xlu0 %v3526
        %v3528 = vpop.xlane.xlu0 %3527
        %v3529 = vrcp.pop %v3519
        %v3530 = vrcp.pop %v3522
        %v3531 = vrcp.pop %v3525
        %v3532 = vrcp.pop %v3528
        %v3533 = vmul.f32 %v3510, %v3529
        %v3534 = vmul.f32 %v3512, %v3530
        %v3535 = vmul.f32 %v3514, %v3531
        %v3536 = vmul.f32 %v3516, %v3532
        %v3537 = vpack.c.bf16 %v3534, %v3533
        %v3538 = vpack.c.bf16 %v3536, %v3535
        %3541 = vrot.lane.b32.xlu0 %v3254, 96
        %v3542 = vpop.permute.xlu0 %3541
        %3543 = vrot.lane.b32.xlu0 %v3255, 96
        %v3544 = vpop.permute.xlu0 %3543
        %v3548 = vsel %vm1128, %v3537, 0
        %v3551 = vsel %vm1128, %v3538, 0
        %3553 = vmatprep.subr.bf16.mxu0 0
        %3554 = vmatpush1.bf16.msra.mxu0 0
        %3555 = vmatprep.subr.bf16.mxu0 0
        %3556 = vmatpush1.bf16.msra.mxu0 0
        %3557 = vmatprep.subr.bf16.mxu0 0
        %3558 = vmatpush1.bf16.msra.mxu0 0
        %3559 = vmatprep.subr.bf16.mxu0 0
        %3560 = vmatpush1.bf16.msra.mxu0 0
        %3561 = vmatprep.subr.bf16.mxu0 0
        %3562 = vmatpush1.bf16.msra.mxu0 0
        %3563 = vmatprep.subr.bf16.mxu0 0
        %3564 = vmatpush1.bf16.msra.mxu0 0
        %3565 = vmatprep.subr.bf16.mxu0 0
        %3566 = vmatpush1.bf16.msra.mxu0 %v3544
        %3567 = vmatprep.subr.bf16.mxu0 0
        %3568 = vmatpush1.bf16.msra.mxu0 %v3542
        %3569 = vmatprep.subr.bf16.mxu0 0
        %3570 = vmatpush2.bf16.msra.mxu0 0
        %3571 = vmatprep.subr.bf16.mxu0 0
        %3572 = vmatpush2.bf16.msra.mxu0 0
        %3573 = vmatprep.subr.bf16.mxu0 0
        %3574 = vmatpush2.bf16.msra.mxu0 0
        %3575 = vmatprep.subr.bf16.mxu0 0
        %3576 = vmatpush2.bf16.msra.mxu0 0
        %3577 = vmatprep.subr.bf16.mxu0 0
        %3578 = vmatpush2.bf16.msra.mxu0 0
        %3579 = vmatprep.subr.bf16.mxu0 0
        %3580 = vmatpush2.bf16.msra.mxu0 0
        %3581 = vmatprep.subr.bf16.mxu0 0
        %3582 = vmatpush2.bf16.msra.mxu0 0
        %3583 = vmatprep.subr.bf16.mxu0 0
        %3584 = vmatpush2.bf16.msra.mxu0 0
        %3585 = vmatprep.mubr.bf16.mxu0 0
        %3586 = vmatmul.mubr.bf16.gmra.mxu0 %v3548
        %v3587 = vpop.f32.mrf.mxu0
        %v3588 = vadd.f32 0.0, %v3587
        %v3589 = vpop.f32.mrf.mxu0
        %v3590 = vpop.f32.mrf.mxu0
        %v3591 = vadd.f32 0.0, %v3590
        %v3592 = vpop.f32.mrf.mxu0
        %3593 = vmatprep.mubr.bf16.mxu0 0
        %3594 = vmatmul.mubr.bf16.gmra.mxu0 %v3551
        %v3595 = vpop.f32.mrf.mxu0
        %v3596 = vadd.f32 0.0, %v3595
        %v3597 = vpop.f32.mrf.mxu0
        %v3598 = vpop.f32.mrf.mxu0
        %v3599 = vadd.f32 0.0, %v3598
        %v3600 = vpop.f32.mrf.mxu0
        %3601 = vdwg.mxu0
        %v3602 = vpack.c.bf16 %v3591, %v3588
        %v3603 = vpack.c.bf16 %v3599, %v3596
        %v3608 = vunpack.c.l.b16 %v3238
        %v3609 = vunpack.c.l.b16 %v3239
        %v3610 = vunpack.c.l.b16 %v3240
        %v3611 = vunpack.c.l.b16 %v3241
        %v3612 = vpack.c.b16 %v3609, %v3608
        %v3613 = vpack.c.b16 %v3611, %v3610
        %v3617 = vsel %vm1128, %v3602, 0
        %v3620 = vsel %vm1128, %v3603, 0
        %3622 = vmatprep.subr.bf16.mxu0 0
        %3623 = vmatpush1.bf16.msra.mxu0 0
        %3624 = vmatprep.subr.bf16.mxu0 0
        %3625 = vmatpush1.bf16.msra.mxu0 0
        %3626 = vmatprep.subr.bf16.mxu0 0
        %3627 = vmatpush1.bf16.msra.mxu0 0
        %3628 = vmatprep.subr.bf16.mxu0 0
        %3629 = vmatpush1.bf16.msra.mxu0 0
        %3630 = vmatprep.subr.bf16.mxu0 0
        %3631 = vmatpush1.bf16.msra.mxu0 0
        %3632 = vmatprep.subr.bf16.mxu0 0
        %3633 = vmatpush1.bf16.msra.mxu0 0
        %3634 = vmatprep.subr.bf16.mxu0 0
        %3635 = vmatpush1.bf16.msra.mxu0 %v3613
        %3636 = vmatprep.subr.bf16.mxu0 0
        %3637 = vmatpush1.bf16.msra.mxu0 %v3612
        %3638 = vmatprep.subr.bf16.mxu0 0
        %3639 = vmatpush2.bf16.msra.mxu0 0
        %3640 = vmatprep.subr.bf16.mxu0 0
        %3641 = vmatpush2.bf16.msra.mxu0 0
        %3642 = vmatprep.subr.bf16.mxu0 0
        %3643 = vmatpush2.bf16.msra.mxu0 0
        %3644 = vmatprep.subr.bf16.mxu0 0
        %3645 = vmatpush2.bf16.msra.mxu0 0
        %3646 = vmatprep.subr.bf16.mxu0 0
        %3647 = vmatpush2.bf16.msra.mxu0 0
        %3648 = vmatprep.subr.bf16.mxu0 0
        %3649 = vmatpush2.bf16.msra.mxu0 0
        %3650 = vmatprep.subr.bf16.mxu0 0
        %3651 = vmatpush2.bf16.msra.mxu0 0
        %3652 = vmatprep.subr.bf16.mxu0 0
        %3653 = vmatpush2.bf16.msra.mxu0 0
        %3654 = vmatprep.mubr.bf16.mxu0 0
        %3655 = vmatmul.mubr.bf16.gmra.mxu0 %v3617
        %v3656 = vpop.f32.mrf.mxu0
        %v3657 = vadd.f32 0.0, %v3656
        %v3658 = vpop.f32.mrf.mxu0
        %v3659 = vpop.f32.mrf.mxu0
        %v3660 = vadd.f32 0.0, %v3659
        %v3661 = vpop.f32.mrf.mxu0
        %3662 = vmatprep.mubr.bf16.mxu0 0
        %3663 = vmatmul.mubr.bf16.gmra.mxu0 %v3620
        %v3664 = vpop.f32.mrf.mxu0
        %v3665 = vadd.f32 0.0, %v3664
        %v3666 = vpop.f32.mrf.mxu0
        %v3667 = vpop.f32.mrf.mxu0
        %v3668 = vadd.f32 0.0, %v3667
        %v3669 = vpop.f32.mrf.mxu0
        %3670 = vdwg.mxu0
        %v3675 = vunpack.c.l.b16 %v3234
        %v3676 = vunpack.c.l.b16 %v3235
        %v3677 = vunpack.c.l.b16 %v3236
        %v3678 = vunpack.c.l.b16 %v3237
        %v3679 = vpack.c.b16 %v3676, %v3675
        %v3680 = vpack.c.b16 %v3678, %v3677
        %v3684 = vsel %vm1128, %v3418, 0
        %v3687 = vsel %vm1128, %v3419, 0
        %3689 = vmatprep.subr.bf16.mxu0 0
        %3690 = vmatpush1.bf16.msra.mxu0 0
        %3691 = vmatprep.subr.bf16.mxu0 0
        %3692 = vmatpush1.bf16.msra.mxu0 0
        %3693 = vmatprep.subr.bf16.mxu0 0
        %3694 = vmatpush1.bf16.msra.mxu0 0
        %3695 = vmatprep.subr.bf16.mxu0 0
        %3696 = vmatpush1.bf16.msra.mxu0 0
        %3697 = vmatprep.subr.bf16.mxu0 0
        %3698 = vmatpush1.bf16.msra.mxu0 0
        %3699 = vmatprep.subr.bf16.mxu0 0
        %3700 = vmatpush1.bf16.msra.mxu0 0
        %3701 = vmatprep.subr.bf16.mxu0 0
        %3702 = vmatpush1.bf16.msra.mxu0 %v3680
        %3703 = vmatprep.subr.bf16.mxu0 0
        %3704 = vmatpush1.bf16.msra.mxu0 %v3679
        %3705 = vmatprep.subr.bf16.mxu0 0
        %3706 = vmatpush2.bf16.msra.mxu0 0
        %3707 = vmatprep.subr.bf16.mxu0 0
        %3708 = vmatpush2.bf16.msra.mxu0 0
        %3709 = vmatprep.subr.bf16.mxu0 0
        %3710 = vmatpush2.bf16.msra.mxu0 0
        %3711 = vmatprep.subr.bf16.mxu0 0
        %3712 = vmatpush2.bf16.msra.mxu0 0
        %3713 = vmatprep.subr.bf16.mxu0 0
        %3714 = vmatpush2.bf16.msra.mxu0 0
        %3715 = vmatprep.subr.bf16.mxu0 0
        %3716 = vmatpush2.bf16.msra.mxu0 0
        %3717 = vmatprep.subr.bf16.mxu0 0
        %3718 = vmatpush2.bf16.msra.mxu0 0
        %3719 = vmatprep.subr.bf16.mxu0 0
        %3720 = vmatpush2.bf16.msra.mxu0 0
        %3721 = vmatprep.mubr.bf16.mxu0 0
        %3722 = vmatmul.mubr.bf16.gmra.mxu0 %v3684
        %v3723 = vpop.f32.mrf.mxu0
        %v3724 = vadd.f32 %v3657, %v3723
        %v3725 = vpop.f32.mrf.mxu0
        %v3726 = vpop.f32.mrf.mxu0
        %v3727 = vadd.f32 %v3660, %v3726
        %v3728 = vpop.f32.mrf.mxu0
        %3729 = vmatprep.mubr.bf16.mxu0 0
        %3730 = vmatmul.mubr.bf16.gmra.mxu0 %v3687
        %v3731 = vpop.f32.mrf.mxu0
        %v3732 = vadd.f32 %v3665, %v3731
        %v3733 = vpop.f32.mrf.mxu0
        %v3734 = vpop.f32.mrf.mxu0
        %v3735 = vadd.f32 %v3668, %v3734
        %v3736 = vpop.f32.mrf.mxu0
        %3737 = vdwg.mxu0
        %3738 = vrot.lane.b32.xlu0 %v3250, 64
        %v3739 = vpop.permute.xlu0 %3738
        %3740 = vrot.lane.b32.xlu0 %v3251, 64
        %v3741 = vpop.permute.xlu0 %3740
        %3742 = vrot.lane.b32.xlu0 %v3252, 64
        %v3743 = vpop.permute.xlu0 %3742
        %3744 = vrot.lane.b32.xlu0 %v3253, 64
        %v3745 = vpop.permute.xlu0 %3744
        %v3747 = vsel %vm1128, %v3739, 0
        %v3750 = vsel %vm1128, %v3741, 0
        %v3753 = vsel %vm1128, %v3743, 0
        %v3756 = vsel %vm1128, %v3745, 0
        %3758 = vmatprep.subr.bf16.mxu0 0
        %3759 = vmatpush1.bf16.xpose.msra.mxu0 0
        %3760 = vmatprep.subr.bf16.mxu0 0
        %3761 = vmatpush1.bf16.xpose.msra.mxu0 0
        %3762 = vmatprep.subr.bf16.mxu0 0
        %3763 = vmatpush1.bf16.xpose.msra.mxu0 0
        %3764 = vmatprep.subr.bf16.mxu0 0
        %3765 = vmatpush1.bf16.xpose.msra.mxu0 0
        %3766 = vmatprep.subr.bf16.mxu0 0
        %3767 = vmatpush1.bf16.xpose.msra.mxu0 0
        %3768 = vmatprep.subr.bf16.mxu0 0
        %3769 = vmatpush1.bf16.xpose.msra.mxu0 0
        %3770 = vmatprep.subr.bf16.mxu0 0
        %3771 = vmatpush1.bf16.xpose.msra.mxu0 %v3756
        %3772 = vmatprep.subr.bf16.mxu0 0
        %3773 = vmatpush1.bf16.xpose.msra.mxu0 %v3753
        %3774 = vmatprep.subr.bf16.mxu0 0
        %3775 = vmatpush2.bf16.xpose.msra.mxu0 0
        %3776 = vmatprep.subr.bf16.mxu0 0
        %3777 = vmatpush2.bf16.xpose.msra.mxu0 0
        %3778 = vmatprep.subr.bf16.mxu0 0
        %3779 = vmatpush2.bf16.xpose.msra.mxu0 0
        %3780 = vmatprep.subr.bf16.mxu0 0
        %3781 = vmatpush2.bf16.xpose.msra.mxu0 0
        %3782 = vmatprep.subr.bf16.mxu0 0
        %3783 = vmatpush2.bf16.xpose.msra.mxu0 0
        %3784 = vmatprep.subr.bf16.mxu0 0
        %3785 = vmatpush2.bf16.xpose.msra.mxu0 0
        %3786 = vmatprep.subr.bf16.mxu0 0
        %3787 = vmatpush2.bf16.xpose.msra.mxu0 0
        %3788 = vmatprep.subr.bf16.mxu0 0
        %3789 = vmatpush2.bf16.xpose.msra.mxu0 0
        %3790 = vmatprep.mubr.bf16.mxu0 0
        %3791 = vmatmul.mubr.bf16.gmra.mxu0 %v3747
        %v3792 = vpop.f32.mrf.mxu0
        %v3793 = vadd.f32 %v838, %v3792
        %v3794 = vpop.f32.mrf.mxu0
        %v3795 = vpop.f32.mrf.mxu0
        %v3796 = vadd.f32 %v839, %v3795
        %v3797 = vpop.f32.mrf.mxu0
        %3798 = vmatprep.mubr.bf16.mxu0 0
        %3799 = vmatmul.mubr.bf16.gmra.mxu0 %v3750
        %v3800 = vpop.f32.mrf.mxu0
        %v3801 = vadd.f32 %v840, %v3800
        %v3802 = vpop.f32.mrf.mxu0
        %v3803 = vpop.f32.mrf.mxu0
        %v3804 = vadd.f32 %v841, %v3803
        %v3805 = vpop.f32.mrf.mxu0
        %3806 = vdwg.mxu0
        %v3807 = vsel %vm1128, %v3793, -inf
        %3808 = vmax.xlane.f32.xlu0 %v3807
        %v3809 = vpop.xlane.xlu0 %3808
        %v3810 = vsel %vm1128, %v3796, -inf
        %3811 = vmax.xlane.f32.xlu0 %v3810
        %v3812 = vpop.xlane.xlu0 %3811
        %v3813 = vsel %vm1128, %v3801, -inf
        %3814 = vmax.xlane.f32.xlu0 %v3813
        %v3815 = vpop.xlane.xlu0 %3814
        %v3816 = vsel %vm1128, %v3804, -inf
        %3817 = vmax.xlane.f32.xlu0 %v3816
        %v3818 = vpop.xlane.xlu0 %3817
        %v3819 = vsub.f32 %v3793, %v3809
        %v3820 = vsub.f32 %v3796, %v3812
        %v3821 = vsub.f32 %v3801, %v3815
        %v3822 = vsub.f32 %v3804, %v3818
        %v3823 = vmul.f32 %v3819, 1.442695
        %v3824 = vpow.pop %v3823
        %v3825 = vmul.f32 %v3820, 1.442695
        %v3826 = vpow.pop %v3825
        %v3827 = vmul.f32 %v3821, 1.442695
        %v3828 = vpow.pop %v3827
        %v3829 = vmul.f32 %v3822, 1.442695
        %v3830 = vpow.pop %v3829
        %v3831 = vsel %vm1128, %v3824, 0.0
        %3832 = vadd.xlane.f32.xlu0 %v3831
        %v3833 = vpop.xlane.xlu0 %3832
        %v3834 = vsel %vm1128, %v3826, 0.0
        %3835 = vadd.xlane.f32.xlu0 %v3834
        %v3836 = vpop.xlane.xlu0 %3835
        %v3837 = vsel %vm1128, %v3828, 0.0
        %3838 = vadd.xlane.f32.xlu0 %v3837
        %v3839 = vpop.xlane.xlu0 %3838
        %v3840 = vsel %vm1128, %v3830, 0.0
        %3841 = vadd.xlane.f32.xlu0 %v3840
        %v3842 = vpop.xlane.xlu0 %3841
        %v3843 = vrcp.pop %v3833
        %v3844 = vrcp.pop %v3836
        %v3845 = vrcp.pop %v3839
        %v3846 = vrcp.pop %v3842
        %v3847 = vmul.f32 %v3824, %v3843
        %v3848 = vmul.f32 %v3826, %v3844
        %v3849 = vmul.f32 %v3828, %v3845
        %v3850 = vmul.f32 %v3830, %v3846
        %v3851 = vpack.c.bf16 %v3848, %v3847
        %v3852 = vpack.c.bf16 %v3850, %v3849
        %3853 = vrot.lane.b32.xlu0 %v3254, 64
        %v3854 = vpop.permute.xlu0 %3853
        %3855 = vrot.lane.b32.xlu0 %v3255, 64
        %v3856 = vpop.permute.xlu0 %3855
        %v3860 = vsel %vm1128, %v3851, 0
        %v3863 = vsel %vm1128, %v3852, 0
        %3865 = vmatprep.subr.bf16.mxu0 0
        %3866 = vmatpush1.bf16.msra.mxu0 0
        %3867 = vmatprep.subr.bf16.mxu0 0
        %3868 = vmatpush1.bf16.msra.mxu0 0
        %3869 = vmatprep.subr.bf16.mxu0 0
        %3870 = vmatpush1.bf16.msra.mxu0 0
        %3871 = vmatprep.subr.bf16.mxu0 0
        %3872 = vmatpush1.bf16.msra.mxu0 0
        %3873 = vmatprep.subr.bf16.mxu0 0
        %3874 = vmatpush1.bf16.msra.mxu0 0
        %3875 = vmatprep.subr.bf16.mxu0 0
        %3876 = vmatpush1.bf16.msra.mxu0 0
        %3877 = vmatprep.subr.bf16.mxu0 0
        %3878 = vmatpush1.bf16.msra.mxu0 %v3856
        %3879 = vmatprep.subr.bf16.mxu0 0
        %3880 = vmatpush1.bf16.msra.mxu0 %v3854
        %3881 = vmatprep.subr.bf16.mxu0 0
        %3882 = vmatpush2.bf16.msra.mxu0 0
        %3883 = vmatprep.subr.bf16.mxu0 0
        %3884 = vmatpush2.bf16.msra.mxu0 0
        %3885 = vmatprep.subr.bf16.mxu0 0
        %3886 = vmatpush2.bf16.msra.mxu0 0
        %3887 = vmatprep.subr.bf16.mxu0 0
        %3888 = vmatpush2.bf16.msra.mxu0 0
        %3889 = vmatprep.subr.bf16.mxu0 0
        %3890 = vmatpush2.bf16.msra.mxu0 0
        %3891 = vmatprep.subr.bf16.mxu0 0
        %3892 = vmatpush2.bf16.msra.mxu0 0
        %3893 = vmatprep.subr.bf16.mxu0 0
        %3894 = vmatpush2.bf16.msra.mxu0 0
        %3895 = vmatprep.subr.bf16.mxu0 0
        %3896 = vmatpush2.bf16.msra.mxu0 0
        %3897 = vmatprep.mubr.bf16.mxu0 0
        %3898 = vmatmul.mubr.bf16.gmra.mxu0 %v3860
        %v3899 = vpop.f32.mrf.mxu0
        %v3900 = vadd.f32 0.0, %v3899
        %v3901 = vpop.f32.mrf.mxu0
        %v3902 = vpop.f32.mrf.mxu0
        %v3903 = vadd.f32 0.0, %v3902
        %v3904 = vpop.f32.mrf.mxu0
        %3905 = vmatprep.mubr.bf16.mxu0 0
        %3906 = vmatmul.mubr.bf16.gmra.mxu0 %v3863
        %v3907 = vpop.f32.mrf.mxu0
        %v3908 = vadd.f32 0.0, %v3907
        %v3909 = vpop.f32.mrf.mxu0
        %v3910 = vpop.f32.mrf.mxu0
        %v3911 = vadd.f32 0.0, %v3910
        %v3912 = vpop.f32.mrf.mxu0
        %3913 = vdwg.mxu0
        %v3914 = vpack.c.bf16 %v3903, %v3900
        %v3915 = vpack.c.bf16 %v3911, %v3908
        %v3920 = vunpack.c.l.b16 %v3242
        %v3921 = vunpack.c.l.b16 %v3243
        %v3922 = vunpack.c.l.b16 %v3244
        %v3923 = vunpack.c.l.b16 %v3245
        %v3924 = vpack.c.b16 %v3921, %v3920
        %v3925 = vpack.c.b16 %v3923, %v3922
        %v3929 = vsel %vm1128, %v3914, 0
        %v3932 = vsel %vm1128, %v3915, 0
        %3934 = vmatprep.subr.bf16.mxu0 0
        %3935 = vmatpush1.bf16.msra.mxu0 0
        %3936 = vmatprep.subr.bf16.mxu0 0
        %3937 = vmatpush1.bf16.msra.mxu0 0
        %3938 = vmatprep.subr.bf16.mxu0 0
        %3939 = vmatpush1.bf16.msra.mxu0 0
        %3940 = vmatprep.subr.bf16.mxu0 0
        %3941 = vmatpush1.bf16.msra.mxu0 0
        %3942 = vmatprep.subr.bf16.mxu0 0
        %3943 = vmatpush1.bf16.msra.mxu0 0
        %3944 = vmatprep.subr.bf16.mxu0 0
        %3945 = vmatpush1.bf16.msra.mxu0 0
        %3946 = vmatprep.subr.bf16.mxu0 0
        %3947 = vmatpush1.bf16.msra.mxu0 %v3925
        %3948 = vmatprep.subr.bf16.mxu0 0
        %3949 = vmatpush1.bf16.msra.mxu0 %v3924
        %3950 = vmatprep.subr.bf16.mxu0 0
        %3951 = vmatpush2.bf16.msra.mxu0 0
        %3952 = vmatprep.subr.bf16.mxu0 0
        %3953 = vmatpush2.bf16.msra.mxu0 0
        %3954 = vmatprep.subr.bf16.mxu0 0
        %3955 = vmatpush2.bf16.msra.mxu0 0
        %3956 = vmatprep.subr.bf16.mxu0 0
        %3957 = vmatpush2.bf16.msra.mxu0 0
        %3958 = vmatprep.subr.bf16.mxu0 0
        %3959 = vmatpush2.bf16.msra.mxu0 0
        %3960 = vmatprep.subr.bf16.mxu0 0
        %3961 = vmatpush2.bf16.msra.mxu0 0
        %3962 = vmatprep.subr.bf16.mxu0 0
        %3963 = vmatpush2.bf16.msra.mxu0 0
        %3964 = vmatprep.subr.bf16.mxu0 0
        %3965 = vmatpush2.bf16.msra.mxu0 0
        %3966 = vmatprep.mubr.bf16.mxu0 0
        %3967 = vmatmul.mubr.bf16.gmra.mxu0 %v3929
        %v3968 = vpop.f32.mrf.mxu0
        %v3969 = vadd.f32 0.0, %v3968
        %v3970 = vpop.f32.mrf.mxu0
        %v3971 = vpop.f32.mrf.mxu0
        %v3972 = vadd.f32 0.0, %v3971
        %v3973 = vpop.f32.mrf.mxu0
        %3974 = vmatprep.mubr.bf16.mxu0 0
        %3975 = vmatmul.mubr.bf16.gmra.mxu0 %v3932
        %v3976 = vpop.f32.mrf.mxu0
        %v3977 = vadd.f32 0.0, %v3976
        %v3978 = vpop.f32.mrf.mxu0
        %v3979 = vpop.f32.mrf.mxu0
        %v3980 = vadd.f32 0.0, %v3979
        %v3981 = vpop.f32.mrf.mxu0
        %3982 = vdwg.mxu0
        %v3983 = vadd.f32 %v3724, %v3969
        %v3984 = vadd.f32 %v3727, %v3972
        %v3985 = vadd.f32 %v3732, %v3977
        %v3986 = vadd.f32 %v3735, %v3980
        %3987 = vrot.lane.b32.xlu0 %v3250, 32
        %v3988 = vpop.permute.xlu0 %3987
        %3989 = vrot.lane.b32.xlu0 %v3251, 32
        %v3990 = vpop.permute.xlu0 %3989
        %3991 = vrot.lane.b32.xlu0 %v3252, 32
        %v3992 = vpop.permute.xlu0 %3991
        %3993 = vrot.lane.b32.xlu0 %v3253, 32
        %v3994 = vpop.permute.xlu0 %3993
        %v3996 = vsel %vm1128, %v3988, 0
        %v3999 = vsel %vm1128, %v3990, 0
        %v4002 = vsel %vm1128, %v3992, 0
        %v4005 = vsel %vm1128, %v3994, 0
        %4007 = vmatprep.subr.bf16.mxu0 0
        %4008 = vmatpush1.bf16.xpose.msra.mxu0 0
        %4009 = vmatprep.subr.bf16.mxu0 0
        %4010 = vmatpush1.bf16.xpose.msra.mxu0 0
        %4011 = vmatprep.subr.bf16.mxu0 0
        %4012 = vmatpush1.bf16.xpose.msra.mxu0 0
        %4013 = vmatprep.subr.bf16.mxu0 0
        %4014 = vmatpush1.bf16.xpose.msra.mxu0 0
        %4015 = vmatprep.subr.bf16.mxu0 0
        %4016 = vmatpush1.bf16.xpose.msra.mxu0 0
        %4017 = vmatprep.subr.bf16.mxu0 0
        %4018 = vmatpush1.bf16.xpose.msra.mxu0 0
        %4019 = vmatprep.subr.bf16.mxu0 0
        %4020 = vmatpush1.bf16.xpose.msra.mxu0 %v4005
        %4021 = vmatprep.subr.bf16.mxu0 0
        %4022 = vmatpush1.bf16.xpose.msra.mxu0 %v4002
        %4023 = vmatprep.subr.bf16.mxu0 0
        %4024 = vmatpush2.bf16.xpose.msra.mxu0 0
        %4025 = vmatprep.subr.bf16.mxu0 0
        %4026 = vmatpush2.bf16.xpose.msra.mxu0 0
        %4027 = vmatprep.subr.bf16.mxu0 0
        %4028 = vmatpush2.bf16.xpose.msra.mxu0 0
        %4029 = vmatprep.subr.bf16.mxu0 0
        %4030 = vmatpush2.bf16.xpose.msra.mxu0 0
        %4031 = vmatprep.subr.bf16.mxu0 0
        %4032 = vmatpush2.bf16.xpose.msra.mxu0 0
        %4033 = vmatprep.subr.bf16.mxu0 0
        %4034 = vmatpush2.bf16.xpose.msra.mxu0 0
        %4035 = vmatprep.subr.bf16.mxu0 0
        %4036 = vmatpush2.bf16.xpose.msra.mxu0 0
        %4037 = vmatprep.subr.bf16.mxu0 0
        %4038 = vmatpush2.bf16.xpose.msra.mxu0 0
        %4039 = vmatprep.mubr.bf16.mxu0 0
        %4040 = vmatmul.mubr.bf16.gmra.mxu0 %v3996
        %v4041 = vpop.f32.mrf.mxu0
        %v4042 = vadd.f32 %v838, %v4041
        %v4043 = vpop.f32.mrf.mxu0
        %v4044 = vpop.f32.mrf.mxu0
        %v4045 = vadd.f32 %v839, %v4044
        %v4046 = vpop.f32.mrf.mxu0
        %4047 = vmatprep.mubr.bf16.mxu0 0
        %4048 = vmatmul.mubr.bf16.gmra.mxu0 %v3999
        %v4049 = vpop.f32.mrf.mxu0
        %v4050 = vadd.f32 %v840, %v4049
        %v4051 = vpop.f32.mrf.mxu0
        %v4052 = vpop.f32.mrf.mxu0
        %v4053 = vadd.f32 %v841, %v4052
        %v4054 = vpop.f32.mrf.mxu0
        %4055 = vdwg.mxu0
        %v4056 = vsel %vm1128, %v4042, -inf
        %4057 = vmax.xlane.f32.xlu0 %v4056
        %v4058 = vpop.xlane.xlu0 %4057
        %v4059 = vsel %vm1128, %v4045, -inf
        %4060 = vmax.xlane.f32.xlu0 %v4059
        %v4061 = vpop.xlane.xlu0 %4060
        %v4062 = vsel %vm1128, %v4050, -inf
        %4063 = vmax.xlane.f32.xlu0 %v4062
        %v4064 = vpop.xlane.xlu0 %4063
        %v4065 = vsel %vm1128, %v4053, -inf
        %4066 = vmax.xlane.f32.xlu0 %v4065
        %v4067 = vpop.xlane.xlu0 %4066
        %v4068 = vsub.f32 %v4042, %v4058
        %v4069 = vsub.f32 %v4045, %v4061
        %v4070 = vsub.f32 %v4050, %v4064
        %v4071 = vsub.f32 %v4053, %v4067
        %v4072 = vmul.f32 %v4068, 1.442695
        %v4073 = vpow.pop %v4072
        %v4074 = vmul.f32 %v4069, 1.442695
        %v4075 = vpow.pop %v4074
        %v4076 = vmul.f32 %v4070, 1.442695
        %v4077 = vpow.pop %v4076
        %v4078 = vmul.f32 %v4071, 1.442695
        %v4079 = vpow.pop %v4078
        %v4080 = vsel %vm1128, %v4073, 0.0
        %4081 = vadd.xlane.f32.xlu0 %v4080
        %v4082 = vpop.xlane.xlu0 %4081
        %v4083 = vsel %vm1128, %v4075, 0.0
        %4084 = vadd.xlane.f32.xlu0 %v4083
        %v4085 = vpop.xlane.xlu0 %4084
        %v4086 = vsel %vm1128, %v4077, 0.0
        %4087 = vadd.xlane.f32.xlu0 %v4086
        %v4088 = vpop.xlane.xlu0 %4087
        %v4089 = vsel %vm1128, %v4079, 0.0
        %4090 = vadd.xlane.f32.xlu0 %v4089
        %v4091 = vpop.xlane.xlu0 %4090
        %v4092 = vrcp.pop %v4082
        %v4093 = vrcp.pop %v4085
        %v4094 = vrcp.pop %v4088
        %v4095 = vrcp.pop %v4091
        %v4096 = vmul.f32 %v4073, %v4092
        %v4097 = vmul.f32 %v4075, %v4093
        %v4098 = vmul.f32 %v4077, %v4094
        %v4099 = vmul.f32 %v4079, %v4095
        %v4100 = vpack.c.bf16 %v4097, %v4096
        %v4101 = vpack.c.bf16 %v4099, %v4098
        %4102 = vrot.lane.b32.xlu0 %v3254, 32
        %v4103 = vpop.permute.xlu0 %4102
        %4104 = vrot.lane.b32.xlu0 %v3255, 32
        %v4105 = vpop.permute.xlu0 %4104
        %v4109 = vsel %vm1128, %v4100, 0
        %v4112 = vsel %vm1128, %v4101, 0
        %4114 = vmatprep.subr.bf16.mxu0 0
        %4115 = vmatpush1.bf16.msra.mxu0 0
        %4116 = vmatprep.subr.bf16.mxu0 0
        %4117 = vmatpush1.bf16.msra.mxu0 0
        %4118 = vmatprep.subr.bf16.mxu0 0
        %4119 = vmatpush1.bf16.msra.mxu0 0
        %4120 = vmatprep.subr.bf16.mxu0 0
        %4121 = vmatpush1.bf16.msra.mxu0 0
        %4122 = vmatprep.subr.bf16.mxu0 0
        %4123 = vmatpush1.bf16.msra.mxu0 0
        %4124 = vmatprep.subr.bf16.mxu0 0
        %4125 = vmatpush1.bf16.msra.mxu0 0
        %4126 = vmatprep.subr.bf16.mxu0 0
        %4127 = vmatpush1.bf16.msra.mxu0 %v4105
        %4128 = vmatprep.subr.bf16.mxu0 0
        %4129 = vmatpush1.bf16.msra.mxu0 %v4103
        %4130 = vmatprep.subr.bf16.mxu0 0
        %4131 = vmatpush2.bf16.msra.mxu0 0
        %4132 = vmatprep.subr.bf16.mxu0 0
        %4133 = vmatpush2.bf16.msra.mxu0 0
        %4134 = vmatprep.subr.bf16.mxu0 0
        %4135 = vmatpush2.bf16.msra.mxu0 0
        %4136 = vmatprep.subr.bf16.mxu0 0
        %4137 = vmatpush2.bf16.msra.mxu0 0
        %4138 = vmatprep.subr.bf16.mxu0 0
        %4139 = vmatpush2.bf16.msra.mxu0 0
        %4140 = vmatprep.subr.bf16.mxu0 0
        %4141 = vmatpush2.bf16.msra.mxu0 0
        %4142 = vmatprep.subr.bf16.mxu0 0
        %4143 = vmatpush2.bf16.msra.mxu0 0
        %4144 = vmatprep.subr.bf16.mxu0 0
        %4145 = vmatpush2.bf16.msra.mxu0 0
        %4146 = vmatprep.mubr.bf16.mxu0 0
        %4147 = vmatmul.mubr.bf16.gmra.mxu0 %v4109
        %v4148 = vpop.f32.mrf.mxu0
        %v4149 = vadd.f32 0.0, %v4148
        %v4150 = vpop.f32.mrf.mxu0
        %v4151 = vpop.f32.mrf.mxu0
        %v4152 = vadd.f32 0.0, %v4151
        %v4153 = vpop.f32.mrf.mxu0
        %4154 = vmatprep.mubr.bf16.mxu0 0
        %4155 = vmatmul.mubr.bf16.gmra.mxu0 %v4112
        %v4156 = vpop.f32.mrf.mxu0
        %v4157 = vadd.f32 0.0, %v4156
        %v4158 = vpop.f32.mrf.mxu0
        %v4159 = vpop.f32.mrf.mxu0
        %v4160 = vadd.f32 0.0, %v4159
        %v4161 = vpop.f32.mrf.mxu0
        %4162 = vdwg.mxu0
        %v4163 = vpack.c.bf16 %v4152, %v4149
        %v4164 = vpack.c.bf16 %v4160, %v4157
        %v4169 = vunpack.c.l.b16 %v3246
        %v4170 = vunpack.c.l.b16 %v3247
        %v4171 = vunpack.c.l.b16 %v3248
        %v4172 = vunpack.c.l.b16 %v3249
        %v4173 = vpack.c.b16 %v4170, %v4169
        %v4174 = vpack.c.b16 %v4172, %v4171
        %v4178 = vsel %vm1128, %v4163, 0
        %v4181 = vsel %vm1128, %v4164, 0
        %4183 = vmatprep.subr.bf16.mxu0 0
        %4184 = vmatpush1.bf16.msra.mxu0 0
        %4185 = vmatprep.subr.bf16.mxu0 0
        %4186 = vmatpush1.bf16.msra.mxu0 0
        %4187 = vmatprep.subr.bf16.mxu0 0
        %4188 = vmatpush1.bf16.msra.mxu0 0
        %4189 = vmatprep.subr.bf16.mxu0 0
        %4190 = vmatpush1.bf16.msra.mxu0 0
        %4191 = vmatprep.subr.bf16.mxu0 0
        %4192 = vmatpush1.bf16.msra.mxu0 0
        %4193 = vmatprep.subr.bf16.mxu0 0
        %4194 = vmatpush1.bf16.msra.mxu0 0
        %4195 = vmatprep.subr.bf16.mxu0 0
        %4196 = vmatpush1.bf16.msra.mxu0 %v4174
        %4197 = vmatprep.subr.bf16.mxu0 0
        %4198 = vmatpush1.bf16.msra.mxu0 %v4173
        %4199 = vmatprep.subr.bf16.mxu0 0
        %4200 = vmatpush2.bf16.msra.mxu0 0
        %4201 = vmatprep.subr.bf16.mxu0 0
        %4202 = vmatpush2.bf16.msra.mxu0 0
        %4203 = vmatprep.subr.bf16.mxu0 0
        %4204 = vmatpush2.bf16.msra.mxu0 0
        %4205 = vmatprep.subr.bf16.mxu0 0
        %4206 = vmatpush2.bf16.msra.mxu0 0
        %4207 = vmatprep.subr.bf16.mxu0 0
        %4208 = vmatpush2.bf16.msra.mxu0 0
        %4209 = vmatprep.subr.bf16.mxu0 0
        %4210 = vmatpush2.bf16.msra.mxu0 0
        %4211 = vmatprep.subr.bf16.mxu0 0
        %4212 = vmatpush2.bf16.msra.mxu0 0
        %4213 = vmatprep.subr.bf16.mxu0 0
        %4214 = vmatpush2.bf16.msra.mxu0 0
        %4215 = vmatprep.mubr.bf16.mxu0 0
        %4216 = vmatmul.mubr.bf16.gmra.mxu0 %v4178
        %v4217 = vpop.f32.mrf.mxu0
        %v4218 = vadd.f32 0.0, %v4217
        %v4219 = vpop.f32.mrf.mxu0
        %v4220 = vpop.f32.mrf.mxu0
        %v4221 = vadd.f32 0.0, %v4220
        %v4222 = vpop.f32.mrf.mxu0
        %4223 = vmatprep.mubr.bf16.mxu0 0
        %4224 = vmatmul.mubr.bf16.gmra.mxu0 %v4181
        %v4225 = vpop.f32.mrf.mxu0
        %v4226 = vadd.f32 0.0, %v4225
        %v4227 = vpop.f32.mrf.mxu0
        %v4228 = vpop.f32.mrf.mxu0
        %v4229 = vadd.f32 0.0, %v4228
        %v4230 = vpop.f32.mrf.mxu0
        %4231 = vdwg.mxu0
        %v4232 = vadd.f32 %v3983, %v4218
        %v4233 = vadd.f32 %v3984, %v4221
        %v4234 = vadd.f32 %v3985, %v4226
        %v4235 = vadd.f32 %v3986, %v4229
        %v4236 = vadd.f32 %v2964, %v4232
        %v4237 = vadd.f32 %v2965, %v4233
        %v4238 = vadd.f32 %v2966, %v4234
        %v4239 = vadd.f32 %v2967, %v4235
        %s4240 = scalar_lea.vmem %s5, 1
        %v4241 = vld [vmem:[%s4240] sm:$0x1]
        %v4243 = vlaneseq
        %v4244 = vshrl.u32 %v4243, 7
        %v4245 = vsub.s32 0, %v4244
        %v4246 = vrot.slane %v4241, %v4245
        %v4248 = vadd.f32 %v4236, %v4246
        %v4249 = vadd.f32 %v4237, %v4246
        %v4250 = vadd.f32 %v4238, %v4246
        %v4251 = vadd.f32 %v4239, %v4246
        %s4252 = scalar_lea.vmem [#allocation8], 1
        %v4253 = vld [vmem:[%s4252] sm:$0x1]
        %s4254 = scalar_lea.vmem %s7, 1
        %v4255 = vld [vmem:[%s4254] sm:$0x1]
        %4256 = vadd.xlane.f32.xlu0 %v4248
        %v4257 = vpop.xlane.xlu0 %4256
        %4258 = vadd.xlane.f32.xlu0 %v4249
        %v4259 = vpop.xlane.xlu0 %4258
        %4260 = vadd.xlane.f32.xlu0 %v4250
        %v4261 = vpop.xlane.xlu0 %4260
        %4262 = vadd.xlane.f32.xlu0 %v4251
        %v4263 = vpop.xlane.xlu0 %4262
        %v4264 = vmul.f32 %v4257, %v2134
        %v4265 = vmul.f32 %v4259, %v2134
        %v4266 = vmul.f32 %v4261, %v2134
        %v4267 = vmul.f32 %v4263, %v2134
        %v4268 = vsub.f32 %v4248, %v4264
        %v4269 = vsub.f32 %v4249, %v4265
        %v4270 = vsub.f32 %v4250, %v4266
        %v4271 = vsub.f32 %v4251, %v4267
        %v4272 = vmul.f32 %v4268, %v4268
        %v4273 = vmul.f32 %v4269, %v4269
        %v4274 = vmul.f32 %v4270, %v4270
        %v4275 = vmul.f32 %v4271, %v4271
        %4276 = vadd.xlane.f32.xlu0 %v4272
        %v4277 = vpop.xlane.xlu0 %4276
        %4278 = vadd.xlane.f32.xlu0 %v4273
        %v4279 = vpop.xlane.xlu0 %4278
        %4280 = vadd.xlane.f32.xlu0 %v4274
        %v4281 = vpop.xlane.xlu0 %4280
        %4282 = vadd.xlane.f32.xlu0 %v4275
        %v4283 = vpop.xlane.xlu0 %4282
        %v4284 = vmul.f32 %v4277, %v2134
        %v4285 = vmul.f32 %v4279, %v2134
        %v4286 = vmul.f32 %v4281, %v2134
        %v4287 = vmul.f32 %v4283, %v2134
        %v4288 = vadd.f32 %v4284, 1e-05
        %v4289 = vadd.f32 %v4285, 1e-05
        %v4290 = vadd.f32 %v4286, 1e-05
        %v4291 = vadd.f32 %v4287, 1e-05
        %v4292 = vrsqrt.pop %v4288
        %v4293 = vrsqrt.pop %v4289
        %v4294 = vrsqrt.pop %v4290
        %v4295 = vrsqrt.pop %v4291
        %v4296 = vmul.f32 %v4268, %v4292
        %v4297 = vmul.f32 %v4269, %v4293
        %v4298 = vmul.f32 %v4270, %v4294
        %v4299 = vmul.f32 %v4271, %v4295
        %v4301 = vlaneseq
        %v4302 = vshrl.u32 %v4301, 7
        %v4303 = vsub.s32 0, %v4302
        %v4304 = vrot.slane %v4253, %v4303
        %v4306 = vmul.f32 %v4296, %v4304
        %v4307 = vmul.f32 %v4297, %v4304
        %v4308 = vmul.f32 %v4298, %v4304
        %v4309 = vmul.f32 %v4299, %v4304
        %v4311 = vlaneseq
        %v4312 = vshrl.u32 %v4311, 7
        %v4313 = vsub.s32 0, %v4312
        %v4314 = vrot.slane %v4255, %v4313
        %v4316 = vadd.f32 %v4306, %v4314
        %v4317 = vadd.f32 %v4307, %v4314
        %v4318 = vadd.f32 %v4308, %v4314
        %v4319 = vadd.f32 %v4309, %v4314
        %v4320 = vpack.c.bf16 %v4317, %v4316
        %v4321 = vpack.c.bf16 %v4319, %v4318
        %s4322 = scalar_lea.vmem [#allocation10], 256
        %v4323 = vld [vmem:[%s4322] sm:$0xff]
        %v4324 = vld [vmem:[%s4322 + $0x8] sm:$0xff]
        %v4325 = vld [vmem:[%s4322 + $0x10] sm:$0xff]
        %v4326 = vld [vmem:[%s4322 + $0x18] sm:$0xff]
        %v4327 = vld [vmem:[%s4322 + $0x20] sm:$0xff]
        %v4328 = vld [vmem:[%s4322 + $0x28] sm:$0xff]
        %v4329 = vld [vmem:[%s4322 + $0x30] sm:$0xff]
        %v4330 = vld [vmem:[%s4322 + $0x38] sm:$0xff]
        %v4331 = vld [vmem:[%s4322 + $0x40] sm:$0xff]
        %v4332 = vld [vmem:[%s4322 + $0x48] sm:$0xff]
        %v4333 = vld [vmem:[%s4322 + $0x50] sm:$0xff]
        %v4334 = vld [vmem:[%s4322 + $0x58] sm:$0xff]
        %v4335 = vld [vmem:[%s4322 + $0x60] sm:$0xff]
        %v4336 = vld [vmem:[%s4322 + $0x68] sm:$0xff]
        %v4337 = vld [vmem:[%s4322 + $0x70] sm:$0xff]
        %v4338 = vld [vmem:[%s4322 + $0x78] sm:$0xff]
        %v4339 = vld [vmem:[%s4322 + $0x80] sm:$0xff]
        %v4340 = vld [vmem:[%s4322 + $0x88] sm:$0xff]
        %v4341 = vld [vmem:[%s4322 + $0x90] sm:$0xff]
        %v4342 = vld [vmem:[%s4322 + $0x98] sm:$0xff]
        %v4343 = vld [vmem:[%s4322 + $0xa0] sm:$0xff]
        %v4344 = vld [vmem:[%s4322 + $0xa8] sm:$0xff]
        %v4345 = vld [vmem:[%s4322 + $0xb0] sm:$0xff]
        %v4346 = vld [vmem:[%s4322 + $0xb8] sm:$0xff]
        %v4347 = vld [vmem:[%s4322 + $0xc0] sm:$0xff]
        %v4348 = vld [vmem:[%s4322 + $0xc8] sm:$0xff]
        %v4349 = vld [vmem:[%s4322 + $0xd0] sm:$0xff]
        %v4350 = vld [vmem:[%s4322 + $0xd8] sm:$0xff]
        %v4351 = vld [vmem:[%s4322 + $0xe0] sm:$0xff]
        %v4352 = vld [vmem:[%s4322 + $0xe8] sm:$0xff]
        %v4353 = vld [vmem:[%s4322 + $0xf0] sm:$0xff]
        %v4354 = vld [vmem:[%s4322 + $0xf8] sm:$0xff]
        %s4355 = scalar_lea.vmem %s9, 4
        %v4356 = vld [vmem:[%s4355] sm:$0xf]
        %v4358 = vlaneseq
        %v4359 = vshrl.u32 %v4358, 7
        %v4360 = vsub.s32 0, %v4359
        %v4361 = vrot.slane %v4356, %v4360
        %v4362 = vlaneseq
        %v4363 = vshrl.u32 %v4362, 7
        %v4364 = vsub.s32 1, %v4363
        %v4365 = vrot.slane %v4356, %v4364
        %v4366 = vlaneseq
        %v4367 = vshrl.u32 %v4366, 7
        %v4368 = vsub.s32 2, %v4367
        %v4369 = vrot.slane %v4356, %v4368
        %v4370 = vlaneseq
        %v4371 = vshrl.u32 %v4370, 7
        %v4372 = vsub.s32 3, %v4371
        %v4373 = vrot.slane %v4356, %v4372
        %v4410 = vunpack.c.l.b16 %v4323
        %v4411 = vunpack.c.h.b16 %v4323
        %v4412 = vunpack.c.l.b16 %v4324
        %v4413 = vunpack.c.h.b16 %v4324
        %v4414 = vunpack.c.l.b16 %v4325
        %v4415 = vunpack.c.h.b16 %v4325
        %v4416 = vunpack.c.l.b16 %v4326
        %v4417 = vunpack.c.h.b16 %v4326
        %v4418 = vunpack.c.l.b16 %v4327
        %v4419 = vunpack.c.h.b16 %v4327
        %v4420 = vunpack.c.l.b16 %v4328
        %v4421 = vunpack.c.h.b16 %v4328
        %v4422 = vunpack.c.l.b16 %v4329
        %v4423 = vunpack.c.h.b16 %v4329
        %v4424 = vunpack.c.l.b16 %v4330
        %v4425 = vunpack.c.h.b16 %v4330
        %v4426 = vunpack.c.l.b16 %v4331
        %v4427 = vunpack.c.h.b16 %v4331
        %v4428 = vunpack.c.l.b16 %v4332
        %v4429 = vunpack.c.h.b16 %v4332
        %v4430 = vunpack.c.l.b16 %v4333
        %v4431 = vunpack.c.h.b16 %v4333
        %v4432 = vunpack.c.l.b16 %v4334
        %v4433 = vunpack.c.h.b16 %v4334
        %v4434 = vunpack.c.l.b16 %v4335
        %v4435 = vunpack.c.h.b16 %v4335
        %v4436 = vunpack.c.l.b16 %v4336
        %v4437 = vunpack.c.h.b16 %v4336
        %v4438 = vunpack.c.l.b16 %v4337
        %v4439 = vunpack.c.h.b16 %v4337
        %v4440 = vunpack.c.l.b16 %v4338
        %v4441 = vunpack.c.h.b16 %v4338
        %v4442 = vunpack.c.l.b16 %v4339
        %v4443 = vunpack.c.h.b16 %v4339
        %v4444 = vunpack.c.l.b16 %v4340
        %v4445 = vunpack.c.h.b16 %v4340
        %v4446 = vunpack.c.l.b16 %v4341
        %v4447 = vunpack.c.h.b16 %v4341
        %v4448 = vunpack.c.l.b16 %v4342
        %v4449 = vunpack.c.h.b16 %v4342
        %v4450 = vunpack.c.l.b16 %v4343
        %v4451 = vunpack.c.h.b16 %v4343
        %v4452 = vunpack.c.l.b16 %v4344
        %v4453 = vunpack.c.h.b16 %v4344
        %v4454 = vunpack.c.l.b16 %v4345
        %v4455 = vunpack.c.h.b16 %v4345
        %v4456 = vunpack.c.l.b16 %v4346
        %v4457 = vunpack.c.h.b16 %v4346
        %v4458 = vunpack.c.l.b16 %v4347
        %v4459 = vunpack.c.h.b16 %v4347
        %v4460 = vunpack.c.l.b16 %v4348
        %v4461 = vunpack.c.h.b16 %v4348
        %v4462 = vunpack.c.l.b16 %v4349
        %v4463 = vunpack.c.h.b16 %v4349
        %v4464 = vunpack.c.l.b16 %v4350
        %v4465 = vunpack.c.h.b16 %v4350
        %v4466 = vunpack.c.l.b16 %v4351
        %v4467 = vunpack.c.h.b16 %v4351
        %v4468 = vunpack.c.l.b16 %v4352
        %v4469 = vunpack.c.h.b16 %v4352
        %v4470 = vunpack.c.l.b16 %v4353
        %v4471 = vunpack.c.h.b16 %v4353
        %v4472 = vunpack.c.l.b16 %v4354
        %v4473 = vunpack.c.h.b16 %v4354
        %v4474 = vpack.c.b16 %v4414, %v4410
        %v4475 = vpack.c.b16 %v4415, %v4411
        %v4476 = vpack.c.b16 %v4416, %v4412
        %v4477 = vpack.c.b16 %v4417, %v4413
        %v4478 = vpack.c.b16 %v4422, %v4418
        %v4479 = vpack.c.b16 %v4423, %v4419
        %v4480 = vpack.c.b16 %v4424, %v4420
        %v4481 = vpack.c.b16 %v4425, %v4421
        %v4482 = vpack.c.b16 %v4430, %v4426
        %v4483 = vpack.c.b16 %v4431, %v4427
        %v4484 = vpack.c.b16 %v4432, %v4428
        %v4485 = vpack.c.b16 %v4433, %v4429
        %v4486 = vpack.c.b16 %v4438, %v4434
        %v4487 = vpack.c.b16 %v4439, %v4435
        %v4488 = vpack.c.b16 %v4440, %v4436
        %v4489 = vpack.c.b16 %v4441, %v4437
        %v4490 = vpack.c.b16 %v4446, %v4442
        %v4491 = vpack.c.b16 %v4447, %v4443
        %v4492 = vpack.c.b16 %v4448, %v4444
        %v4493 = vpack.c.b16 %v4449, %v4445
        %v4494 = vpack.c.b16 %v4454, %v4450
        %v4495 = vpack.c.b16 %v4455, %v4451
        %v4496 = vpack.c.b16 %v4456, %v4452
        %v4497 = vpack.c.b16 %v4457, %v4453
        %v4498 = vpack.c.b16 %v4462, %v4458
        %v4499 = vpack.c.b16 %v4463, %v4459
        %v4500 = vpack.c.b16 %v4464, %v4460
        %v4501 = vpack.c.b16 %v4465, %v4461
        %v4502 = vpack.c.b16 %v4470, %v4466
        %v4503 = vpack.c.b16 %v4471, %v4467
        %v4504 = vpack.c.b16 %v4472, %v4468
        %v4505 = vpack.c.b16 %v4473, %v4469
        %4538 = vmatprep.subr.bf16.mxu0 %v4503
        %4539 = vmatpush1.bf16.msra.mxu0 %v4502
        %4540 = vmatprep.subr.bf16.mxu0 %v4499
        %4541 = vmatpush1.bf16.msra.mxu0 %v4498
        %4542 = vmatprep.subr.bf16.mxu0 %v4495
        %4543 = vmatpush1.bf16.msra.mxu0 %v4494
        %4544 = vmatprep.subr.bf16.mxu0 %v4491
        %4545 = vmatpush1.bf16.msra.mxu0 %v4490
        %4546 = vmatprep.subr.bf16.mxu0 %v4487
        %4547 = vmatpush1.bf16.msra.mxu0 %v4486
        %4548 = vmatprep.subr.bf16.mxu0 %v4483
        %4549 = vmatpush1.bf16.msra.mxu0 %v4482
        %4550 = vmatprep.subr.bf16.mxu0 %v4479
        %4551 = vmatpush1.bf16.msra.mxu0 %v4478
        %4552 = vmatprep.subr.bf16.mxu0 %v4475
        %4553 = vmatpush1.bf16.msra.mxu0 %v4474
        %4554 = vmatprep.subr.bf16.mxu0 0
        %4555 = vmatpush2.bf16.msra.mxu0 0
        %4556 = vmatprep.subr.bf16.mxu0 0
        %4557 = vmatpush2.bf16.msra.mxu0 0
        %4558 = vmatprep.subr.bf16.mxu0 0
        %4559 = vmatpush2.bf16.msra.mxu0 0
        %4560 = vmatprep.subr.bf16.mxu0 0
        %4561 = vmatpush2.bf16.msra.mxu0 0
        %4562 = vmatprep.subr.bf16.mxu0 0
        %4563 = vmatpush2.bf16.msra.mxu0 0
        %4564 = vmatprep.subr.bf16.mxu0 0
        %4565 = vmatpush2.bf16.msra.mxu0 0
        %4566 = vmatprep.subr.bf16.mxu0 0
        %4567 = vmatpush2.bf16.msra.mxu0 0
        %4568 = vmatprep.subr.bf16.mxu0 0
        %4569 = vmatpush2.bf16.msra.mxu0 0
        %4570 = vmatprep.mubr.bf16.mxu0 0
        %4571 = vmatmul.mubr.bf16.gmra.mxu0 %v4320
        %v4572 = vpop.f32.mrf.mxu0
        %v4573 = vadd.f32 %v4361, %v4572
        %v4574 = vpop.f32.mrf.mxu0
        %v4575 = vadd.f32 %v4365, %v4574
        %v4576 = vpop.f32.mrf.mxu0
        %v4577 = vadd.f32 %v4361, %v4576
        %v4578 = vpop.f32.mrf.mxu0
        %v4579 = vadd.f32 %v4365, %v4578
        %4580 = vmatprep.mubr.bf16.mxu0 0
        %4581 = vmatmul.mubr.bf16.gmra.mxu0 %v4321
        %v4582 = vpop.f32.mrf.mxu0
        %v4583 = vadd.f32 %v4361, %v4582
        %v4584 = vpop.f32.mrf.mxu0
        %v4585 = vadd.f32 %v4365, %v4584
        %v4586 = vpop.f32.mrf.mxu0
        %v4587 = vadd.f32 %v4361, %v4586
        %v4588 = vpop.f32.mrf.mxu0
        %v4589 = vadd.f32 %v4365, %v4588
        %4590 = vdwg.mxu0
        %4591 = vmatprep.subr.bf16.mxu0 %v4505
        %4592 = vmatpush1.bf16.msra.mxu0 %v4504
        %4593 = vmatprep.subr.bf16.mxu0 %v4501
        %4594 = vmatpush1.bf16.msra.mxu0 %v4500
        %4595 = vmatprep.subr.bf16.mxu0 %v4497
        %4596 = vmatpush1.bf16.msra.mxu0 %v4496
        %4597 = vmatprep.subr.bf16.mxu0 %v4493
        %4598 = vmatpush1.bf16.msra.mxu0 %v4492
        %4599 = vmatprep.subr.bf16.mxu0 %v4489
        %4600 = vmatpush1.bf16.msra.mxu0 %v4488
        %4601 = vmatprep.subr.bf16.mxu0 %v4485
        %4602 = vmatpush1.bf16.msra.mxu0 %v4484
        %4603 = vmatprep.subr.bf16.mxu0 %v4481
        %4604 = vmatpush1.bf16.msra.mxu0 %v4480
        %4605 = vmatprep.subr.bf16.mxu0 %v4477
        %4606 = vmatpush1.bf16.msra.mxu0 %v4476
        %4607 = vmatprep.subr.bf16.mxu0 0
        %4608 = vmatpush2.bf16.msra.mxu0 0
        %4609 = vmatprep.subr.bf16.mxu0 0
        %4610 = vmatpush2.bf16.msra.mxu0 0
        %4611 = vmatprep.subr.bf16.mxu0 0
        %4612 = vmatpush2.bf16.msra.mxu0 0
        %4613 = vmatprep.subr.bf16.mxu0 0
        %4614 = vmatpush2.bf16.msra.mxu0 0
        %4615 = vmatprep.subr.bf16.mxu0 0
        %4616 = vmatpush2.bf16.msra.mxu0 0
        %4617 = vmatprep.subr.bf16.mxu0 0
        %4618 = vmatpush2.bf16.msra.mxu0 0
        %4619 = vmatprep.subr.bf16.mxu0 0
        %4620 = vmatpush2.bf16.msra.mxu0 0
        %4621 = vmatprep.subr.bf16.mxu0 0
        %4622 = vmatpush2.bf16.msra.mxu0 0
        %4623 = vmatprep.mubr.bf16.mxu0 0
        %4624 = vmatmul.mubr.bf16.gmra.mxu0 %v4320
        %v4625 = vpop.f32.mrf.mxu0
        %v4626 = vadd.f32 %v4369, %v4625
        %v4627 = vpop.f32.mrf.mxu0
        %v4628 = vadd.f32 %v4373, %v4627
        %v4629 = vpop.f32.mrf.mxu0
        %v4630 = vadd.f32 %v4369, %v4629
        %v4631 = vpop.f32.mrf.mxu0
        %v4632 = vadd.f32 %v4373, %v4631
        %4633 = vmatprep.mubr.bf16.mxu0 0
        %4634 = vmatmul.mubr.bf16.gmra.mxu0 %v4321
        %v4635 = vpop.f32.mrf.mxu0
        %v4636 = vadd.f32 %v4369, %v4635
        %v4637 = vpop.f32.mrf.mxu0
        %v4638 = vadd.f32 %v4373, %v4637
        %v4639 = vpop.f32.mrf.mxu0
        %v4640 = vadd.f32 %v4369, %v4639
        %v4641 = vpop.f32.mrf.mxu0
        %v4642 = vadd.f32 %v4373, %v4641
        %4643 = vdwg.mxu0
        %v4644 = vmax.f32 %v4573, 0.0
        %v4645 = vmax.f32 %v4575, 0.0
        %v4646 = vmax.f32 %v4626, 0.0
        %v4647 = vmax.f32 %v4628, 0.0
        %v4648 = vmax.f32 %v4577, 0.0
        %v4649 = vmax.f32 %v4579, 0.0
        %v4650 = vmax.f32 %v4630, 0.0
        %v4651 = vmax.f32 %v4632, 0.0
        %v4652 = vmax.f32 %v4583, 0.0
        %v4653 = vmax.f32 %v4585, 0.0
        %v4654 = vmax.f32 %v4636, 0.0
        %v4655 = vmax.f32 %v4638, 0.0
        %v4656 = vmax.f32 %v4587, 0.0
        %v4657 = vmax.f32 %v4589, 0.0
        %v4658 = vmax.f32 %v4640, 0.0
        %v4659 = vmax.f32 %v4642, 0.0
        %v4660 = vpack.c.bf16 %v4648, %v4644
        %v4661 = vpack.c.bf16 %v4649, %v4645
        %v4662 = vpack.c.bf16 %v4650, %v4646
        %v4663 = vpack.c.bf16 %v4651, %v4647
        %v4664 = vpack.c.bf16 %v4656, %v4652
        %v4665 = vpack.c.bf16 %v4657, %v4653
        %v4666 = vpack.c.bf16 %v4658, %v4654
        %v4667 = vpack.c.bf16 %v4659, %v4655
        %s4668 = scalar_lea.vmem [#allocation11], 256
        %v4669 = vld [vmem:[%s4668] sm:$0xf]
        %v4670 = vld [vmem:[%s4668 + $0x4] sm:$0xf]
        %v4671 = vld [vmem:[%s4668 + $0x8] sm:$0xf]
        %v4672 = vld [vmem:[%s4668 + $0xc] sm:$0xf]
        %v4673 = vld [vmem:[%s4668 + $0x10] sm:$0xf]
        %v4674 = vld [vmem:[%s4668 + $0x14] sm:$0xf]
        %v4675 = vld [vmem:[%s4668 + $0x18] sm:$0xf]
        %v4676 = vld [vmem:[%s4668 + $0x1c] sm:$0xf]
        %v4677 = vld [vmem:[%s4668 + $0x20] sm:$0xf]
        %v4678 = vld [vmem:[%s4668 + $0x24] sm:$0xf]
        %v4679 = vld [vmem:[%s4668 + $0x28] sm:$0xf]
        %v4680 = vld [vmem:[%s4668 + $0x2c] sm:$0xf]
        %v4681 = vld [vmem:[%s4668 + $0x30] sm:$0xf]
        %v4682 = vld [vmem:[%s4668 + $0x34] sm:$0xf]
        %v4683 = vld [vmem:[%s4668 + $0x38] sm:$0xf]
        %v4684 = vld [vmem:[%s4668 + $0x3c] sm:$0xf]
        %v4685 = vld [vmem:[%s4668 + $0x40] sm:$0xf]
        %v4686 = vld [vmem:[%s4668 + $0x44] sm:$0xf]
        %v4687 = vld [vmem:[%s4668 + $0x48] sm:$0xf]
        %v4688 = vld [vmem:[%s4668 + $0x4c] sm:$0xf]
        %v4689 = vld [vmem:[%s4668 + $0x50] sm:$0xf]
        %v4690 = vld [vmem:[%s4668 + $0x54] sm:$0xf]
        %v4691 = vld [vmem:[%s4668 + $0x58] sm:$0xf]
        %v4692 = vld [vmem:[%s4668 + $0x5c] sm:$0xf]
        %v4693 = vld [vmem:[%s4668 + $0x60] sm:$0xf]
        %v4694 = vld [vmem:[%s4668 + $0x64] sm:$0xf]
        %v4695 = vld [vmem:[%s4668 + $0x68] sm:$0xf]
        %v4696 = vld [vmem:[%s4668 + $0x6c] sm:$0xf]
        %v4697 = vld [vmem:[%s4668 + $0x70] sm:$0xf]
        %v4698 = vld [vmem:[%s4668 + $0x74] sm:$0xf]
        %v4699 = vld [vmem:[%s4668 + $0x78] sm:$0xf]
        %v4700 = vld [vmem:[%s4668 + $0x7c] sm:$0xf]
        %v4701 = vld [vmem:[%s4668 + $0x80] sm:$0xf]
        %v4702 = vld [vmem:[%s4668 + $0x84] sm:$0xf]
        %v4703 = vld [vmem:[%s4668 + $0x88] sm:$0xf]
        %v4704 = vld [vmem:[%s4668 + $0x8c] sm:$0xf]
        %v4705 = vld [vmem:[%s4668 + $0x90] sm:$0xf]
        %v4706 = vld [vmem:[%s4668 + $0x94] sm:$0xf]
        %v4707 = vld [vmem:[%s4668 + $0x98] sm:$0xf]
        %v4708 = vld [vmem:[%s4668 + $0x9c] sm:$0xf]
        %v4709 = vld [vmem:[%s4668 + $0xa0] sm:$0xf]
        %v4710 = vld [vmem:[%s4668 + $0xa4] sm:$0xf]
        %v4711 = vld [vmem:[%s4668 + $0xa8] sm:$0xf]
        %v4712 = vld [vmem:[%s4668 + $0xac] sm:$0xf]
        %v4713 = vld [vmem:[%s4668 + $0xb0] sm:$0xf]
        %v4714 = vld [vmem:[%s4668 + $0xb4] sm:$0xf]
        %v4715 = vld [vmem:[%s4668 + $0xb8] sm:$0xf]
        %v4716 = vld [vmem:[%s4668 + $0xbc] sm:$0xf]
        %v4717 = vld [vmem:[%s4668 + $0xc0] sm:$0xf]
        %v4718 = vld [vmem:[%s4668 + $0xc4] sm:$0xf]
        %v4719 = vld [vmem:[%s4668 + $0xc8] sm:$0xf]
        %v4720 = vld [vmem:[%s4668 + $0xcc] sm:$0xf]
        %v4721 = vld [vmem:[%s4668 + $0xd0] sm:$0xf]
        %v4722 = vld [vmem:[%s4668 + $0xd4] sm:$0xf]
        %v4723 = vld [vmem:[%s4668 + $0xd8] sm:$0xf]
        %v4724 = vld [vmem:[%s4668 + $0xdc] sm:$0xf]
        %v4725 = vld [vmem:[%s4668 + $0xe0] sm:$0xf]
        %v4726 = vld [vmem:[%s4668 + $0xe4] sm:$0xf]
        %v4727 = vld [vmem:[%s4668 + $0xe8] sm:$0xf]
        %v4728 = vld [vmem:[%s4668 + $0xec] sm:$0xf]
        %v4729 = vld [vmem:[%s4668 + $0xf0] sm:$0xf]
        %v4730 = vld [vmem:[%s4668 + $0xf4] sm:$0xf]
        %v4731 = vld [vmem:[%s4668 + $0xf8] sm:$0xf]
        %v4732 = vld [vmem:[%s4668 + $0xfc] sm:$0xf]
        %s4733 = scalar_lea.vmem %s11, 1
        %v4734 = vld [vmem:[%s4733] sm:$0x1]
        %v4736 = vlaneseq
        %v4737 = vshrl.u32 %v4736, 7
        %v4738 = vsub.s32 0, %v4737
        %v4739 = vrot.slane %v4734, %v4738
        %v4805 = vunpack.c.l.b16 %v4669
        %v4806 = vunpack.c.l.b16 %v4670
        %v4807 = vunpack.c.l.b16 %v4671
        %v4808 = vunpack.c.l.b16 %v4672
        %v4809 = vunpack.c.l.b16 %v4673
        %v4810 = vunpack.c.l.b16 %v4674
        %v4811 = vunpack.c.l.b16 %v4675
        %v4812 = vunpack.c.l.b16 %v4676
        %v4813 = vunpack.c.l.b16 %v4677
        %v4814 = vunpack.c.l.b16 %v4678
        %v4815 = vunpack.c.l.b16 %v4679
        %v4816 = vunpack.c.l.b16 %v4680
        %v4817 = vunpack.c.l.b16 %v4681
        %v4818 = vunpack.c.l.b16 %v4682
        %v4819 = vunpack.c.l.b16 %v4683
        %v4820 = vunpack.c.l.b16 %v4684
        %v4821 = vunpack.c.l.b16 %v4685
        %v4822 = vunpack.c.l.b16 %v4686
        %v4823 = vunpack.c.l.b16 %v4687
        %v4824 = vunpack.c.l.b16 %v4688
        %v4825 = vunpack.c.l.b16 %v4689
        %v4826 = vunpack.c.l.b16 %v4690
        %v4827 = vunpack.c.l.b16 %v4691
        %v4828 = vunpack.c.l.b16 %v4692
        %v4829 = vunpack.c.l.b16 %v4693
        %v4830 = vunpack.c.l.b16 %v4694
        %v4831 = vunpack.c.l.b16 %v4695
        %v4832 = vunpack.c.l.b16 %v4696
        %v4833 = vunpack.c.l.b16 %v4697
        %v4834 = vunpack.c.l.b16 %v4698
        %v4835 = vunpack.c.l.b16 %v4699
        %v4836 = vunpack.c.l.b16 %v4700
        %v4837 = vunpack.c.l.b16 %v4701
        %v4838 = vunpack.c.l.b16 %v4702
        %v4839 = vunpack.c.l.b16 %v4703
        %v4840 = vunpack.c.l.b16 %v4704
        %v4841 = vunpack.c.l.b16 %v4705
        %v4842 = vunpack.c.l.b16 %v4706
        %v4843 = vunpack.c.l.b16 %v4707
        %v4844 = vunpack.c.l.b16 %v4708
        %v4845 = vunpack.c.l.b16 %v4709
        %v4846 = vunpack.c.l.b16 %v4710
        %v4847 = vunpack.c.l.b16 %v4711
        %v4848 = vunpack.c.l.b16 %v4712
        %v4849 = vunpack.c.l.b16 %v4713
        %v4850 = vunpack.c.l.b16 %v4714
        %v4851 = vunpack.c.l.b16 %v4715
        %v4852 = vunpack.c.l.b16 %v4716
        %v4853 = vunpack.c.l.b16 %v4717
        %v4854 = vunpack.c.l.b16 %v4718
        %v4855 = vunpack.c.l.b16 %v4719
        %v4856 = vunpack.c.l.b16 %v4720
        %v4857 = vunpack.c.l.b16 %v4721
        %v4858 = vunpack.c.l.b16 %v4722
        %v4859 = vunpack.c.l.b16 %v4723
        %v4860 = vunpack.c.l.b16 %v4724
        %v4861 = vunpack.c.l.b16 %v4725
        %v4862 = vunpack.c.l.b16 %v4726
        %v4863 = vunpack.c.l.b16 %v4727
        %v4864 = vunpack.c.l.b16 %v4728
        %v4865 = vunpack.c.l.b16 %v4729
        %v4866 = vunpack.c.l.b16 %v4730
        %v4867 = vunpack.c.l.b16 %v4731
        %v4868 = vunpack.c.l.b16 %v4732
        %v4869 = vpack.c.b16 %v4806, %v4805
        %v4870 = vpack.c.b16 %v4808, %v4807
        %v4871 = vpack.c.b16 %v4810, %v4809
        %v4872 = vpack.c.b16 %v4812, %v4811
        %v4873 = vpack.c.b16 %v4814, %v4813
        %v4874 = vpack.c.b16 %v4816, %v4815
        %v4875 = vpack.c.b16 %v4818, %v4817
        %v4876 = vpack.c.b16 %v4820, %v4819
        %v4877 = vpack.c.b16 %v4822, %v4821
        %v4878 = vpack.c.b16 %v4824, %v4823
        %v4879 = vpack.c.b16 %v4826, %v4825
        %v4880 = vpack.c.b16 %v4828, %v4827
        %v4881 = vpack.c.b16 %v4830, %v4829
        %v4882 = vpack.c.b16 %v4832, %v4831
        %v4883 = vpack.c.b16 %v4834, %v4833
        %v4884 = vpack.c.b16 %v4836, %v4835
        %v4885 = vpack.c.b16 %v4838, %v4837
        %v4886 = vpack.c.b16 %v4840, %v4839
        %v4887 = vpack.c.b16 %v4842, %v4841
        %v4888 = vpack.c.b16 %v4844, %v4843
        %v4889 = vpack.c.b16 %v4846, %v4845
        %v4890 = vpack.c.b16 %v4848, %v4847
        %v4891 = vpack.c.b16 %v4850, %v4849
        %v4892 = vpack.c.b16 %v4852, %v4851
        %v4893 = vpack.c.b16 %v4854, %v4853
        %v4894 = vpack.c.b16 %v4856, %v4855
        %v4895 = vpack.c.b16 %v4858, %v4857
        %v4896 = vpack.c.b16 %v4860, %v4859
        %v4897 = vpack.c.b16 %v4862, %v4861
        %v4898 = vpack.c.b16 %v4864, %v4863
        %v4899 = vpack.c.b16 %v4866, %v4865
        %v4900 = vpack.c.b16 %v4868, %v4867
        %4933 = vmatprep.subr.bf16.mxu0 0
        %4934 = vmatpush1.bf16.msra.mxu0 %v4876
        %4935 = vmatprep.subr.bf16.mxu0 0
        %4936 = vmatpush1.bf16.msra.mxu0 %v4875
        %4937 = vmatprep.subr.bf16.mxu0 0
        %4938 = vmatpush1.bf16.msra.mxu0 %v4874
        %4939 = vmatprep.subr.bf16.mxu0 0
        %4940 = vmatpush1.bf16.msra.mxu0 %v4873
        %4941 = vmatprep.subr.bf16.mxu0 0
        %4942 = vmatpush1.bf16.msra.mxu0 %v4872
        %4943 = vmatprep.subr.bf16.mxu0 0
        %4944 = vmatpush1.bf16.msra.mxu0 %v4871
        %4945 = vmatprep.subr.bf16.mxu0 0
        %4946 = vmatpush1.bf16.msra.mxu0 %v4870
        %4947 = vmatprep.subr.bf16.mxu0 0
        %4948 = vmatpush1.bf16.msra.mxu0 %v4869
        %4949 = vmatprep.subr.bf16.mxu0 0
        %4950 = vmatpush2.bf16.msra.mxu0 %v4884
        %4951 = vmatprep.subr.bf16.mxu0 0
        %4952 = vmatpush2.bf16.msra.mxu0 %v4883
        %4953 = vmatprep.subr.bf16.mxu0 0
        %4954 = vmatpush2.bf16.msra.mxu0 %v4882
        %4955 = vmatprep.subr.bf16.mxu0 0
        %4956 = vmatpush2.bf16.msra.mxu0 %v4881
        %4957 = vmatprep.subr.bf16.mxu0 0
        %4958 = vmatpush2.bf16.msra.mxu0 %v4880
        %4959 = vmatprep.subr.bf16.mxu0 0
        %4960 = vmatpush2.bf16.msra.mxu0 %v4879
        %4961 = vmatprep.subr.bf16.mxu0 0
        %4962 = vmatpush2.bf16.msra.mxu0 %v4878
        %4963 = vmatprep.subr.bf16.mxu0 0
        %4964 = vmatpush2.bf16.msra.mxu0 %v4877
        %4965 = vmatprep.mubr.bf16.mxu0 %v4661
        %4966 = vmatmul.mubr.bf16.gmra.mxu0 %v4660
        %v4967 = vpop.f32.mrf.mxu0
        %v4968 = vadd.f32 %v4739, %v4967
        %v4969 = vpop.f32.mrf.mxu0
        %v4970 = vpop.f32.mrf.mxu0
        %v4971 = vadd.f32 %v4739, %v4970
        %v4972 = vpop.f32.mrf.mxu0
        %4973 = vmatprep.mubr.bf16.mxu0 %v4665
        %4974 = vmatmul.mubr.bf16.gmra.mxu0 %v4664
        %v4975 = vpop.f32.mrf.mxu0
        %v4976 = vadd.f32 %v4739, %v4975
        %v4977 = vpop.f32.mrf.mxu0
        %v4978 = vpop.f32.mrf.mxu0
        %v4979 = vadd.f32 %v4739, %v4978
        %v4980 = vpop.f32.mrf.mxu0
        %4981 = vdwg.mxu0
        %4982 = vmatprep.subr.bf16.mxu0 0
        %4983 = vmatpush1.bf16.msra.mxu0 %v4892
        %4984 = vmatprep.subr.bf16.mxu0 0
        %4985 = vmatpush1.bf16.msra.mxu0 %v4891
        %4986 = vmatprep.subr.bf16.mxu0 0
        %4987 = vmatpush1.bf16.msra.mxu0 %v4890
        %4988 = vmatprep.subr.bf16.mxu0 0
        %4989 = vmatpush1.bf16.msra.mxu0 %v4889
        %4990 = vmatprep.subr.bf16.mxu0 0
        %4991 = vmatpush1.bf16.msra.mxu0 %v4888
        %4992 = vmatprep.subr.bf16.mxu0 0
        %4993 = vmatpush1.bf16.msra.mxu0 %v4887
        %4994 = vmatprep.subr.bf16.mxu0 0
        %4995 = vmatpush1.bf16.msra.mxu0 %v4886
        %4996 = vmatprep.subr.bf16.mxu0 0
        %4997 = vmatpush1.bf16.msra.mxu0 %v4885
        %4998 = vmatprep.subr.bf16.mxu0 0
        %4999 = vmatpush2.bf16.msra.mxu0 %v4900
        %5000 = vmatprep.subr.bf16.mxu0 0
        %5001 = vmatpush2.bf16.msra.mxu0 %v4899
        %5002 = vmatprep.subr.bf16.mxu0 0
        %5003 = vmatpush2.bf16.msra.mxu0 %v4898
        %5004 = vmatprep.subr.bf16.mxu0 0
        %5005 = vmatpush2.bf16.msra.mxu0 %v4897
        %5006 = vmatprep.subr.bf16.mxu0 0
        %5007 = vmatpush2.bf16.msra.mxu0 %v4896
        %5008 = vmatprep.subr.bf16.mxu0 0
        %5009 = vmatpush2.bf16.msra.mxu0 %v4895
        %5010 = vmatprep.subr.bf16.mxu0 0
        %5011 = vmatpush2.bf16.msra.mxu0 %v4894
        %5012 = vmatprep.subr.bf16.mxu0 0
        %5013 = vmatpush2.bf16.msra.mxu0 %v4893
        %5014 = vmatprep.mubr.bf16.mxu0 %v4663
        %5015 = vmatmul.mubr.bf16.gmra.mxu0 %v4662
        %v5016 = vpop.f32.mrf.mxu0
        %v5017 = vadd.f32 %v4968, %v5016
        %v5018 = vpop.f32.mrf.mxu0
        %v5019 = vpop.f32.mrf.mxu0
        %v5020 = vadd.f32 %v4971, %v5019
        %v5021 = vpop.f32.mrf.mxu0
        %5022 = vmatprep.mubr.bf16.mxu0 %v4667
        %5023 = vmatmul.mubr.bf16.gmra.mxu0 %v4666
        %v5024 = vpop.f32.mrf.mxu0
        %v5025 = vadd.f32 %v4976, %v5024
        %v5026 = vpop.f32.mrf.mxu0
        %v5027 = vpop.f32.mrf.mxu0
        %v5028 = vadd.f32 %v4979, %v5027
        %v5029 = vpop.f32.mrf.mxu0
        %5030 = vdwg.mxu0
        %v5031 = vadd.f32 %v4316, %v5017
        %v5032 = vadd.f32 %v4317, %v5020
        %v5033 = vadd.f32 %v4318, %v5025
        %v5034 = vadd.f32 %v4319, %v5028
        %s5035 = scalar_lea.vmem %s12, 1
        %v5036 = vld [vmem:[%s5035] sm:$0x1]
        %s5037 = scalar_lea.vmem %s13, 1
        %v5038 = vld [vmem:[%s5037] sm:$0x1]
        %5039 = vadd.xlane.f32.xlu0 %v5031
        %v5040 = vpop.xlane.xlu0 %5039
        %5041 = vadd.xlane.f32.xlu0 %v5032
        %v5042 = vpop.xlane.xlu0 %5041
        %5043 = vadd.xlane.f32.xlu0 %v5033
        %v5044 = vpop.xlane.xlu0 %5043
        %5045 = vadd.xlane.f32.xlu0 %v5034
        %v5046 = vpop.xlane.xlu0 %5045
        %v5047 = vmul.f32 %v5040, %v2134
        %v5048 = vmul.f32 %v5042, %v2134
        %v5049 = vmul.f32 %v5044, %v2134
        %v5050 = vmul.f32 %v5046, %v2134
        %v5051 = vsub.f32 %v5031, %v5047
        %v5052 = vsub.f32 %v5032, %v5048
        %v5053 = vsub.f32 %v5033, %v5049
        %v5054 = vsub.f32 %v5034, %v5050
        %v5055 = vmul.f32 %v5051, %v5051
        %v5056 = vmul.f32 %v5052, %v5052
        %v5057 = vmul.f32 %v5053, %v5053
        %v5058 = vmul.f32 %v5054, %v5054
        %5059 = vadd.xlane.f32.xlu0 %v5055
        %v5060 = vpop.xlane.xlu0 %5059
        %5061 = vadd.xlane.f32.xlu0 %v5056
        %v5062 = vpop.xlane.xlu0 %5061
        %5063 = vadd.xlane.f32.xlu0 %v5057
        %v5064 = vpop.xlane.xlu0 %5063
        %5065 = vadd.xlane.f32.xlu0 %v5058
        %v5066 = vpop.xlane.xlu0 %5065
        %v5067 = vmul.f32 %v5060, %v2134
        %v5068 = vmul.f32 %v5062, %v2134
        %v5069 = vmul.f32 %v5064, %v2134
        %v5070 = vmul.f32 %v5066, %v2134
        %v5071 = vadd.f32 %v5067, 1e-05
        %v5072 = vadd.f32 %v5068, 1e-05
        %v5073 = vadd.f32 %v5069, 1e-05
        %v5074 = vadd.f32 %v5070, 1e-05
        %v5075 = vrsqrt.pop %v5071
        %v5076 = vrsqrt.pop %v5072
        %v5077 = vrsqrt.pop %v5073
        %v5078 = vrsqrt.pop %v5074
        %v5079 = vmul.f32 %v5051, %v5075
        %v5080 = vmul.f32 %v5052, %v5076
        %v5081 = vmul.f32 %v5053, %v5077
        %v5082 = vmul.f32 %v5054, %v5078
        %v5084 = vlaneseq
        %v5085 = vshrl.u32 %v5084, 7
        %v5086 = vsub.s32 0, %v5085
        %v5087 = vrot.slane %v5036, %v5086
        %v5089 = vmul.f32 %v5079, %v5087
        %v5090 = vmul.f32 %v5080, %v5087
        %v5091 = vmul.f32 %v5081, %v5087
        %v5092 = vmul.f32 %v5082, %v5087
        %v5094 = vlaneseq
        %v5095 = vshrl.u32 %v5094, 7
        %v5096 = vsub.s32 0, %v5095
        %v5097 = vrot.slane %v5038, %v5096
        %v5099 = vadd.f32 %v5089, %v5097
        %v5100 = vadd.f32 %v5090, %v5097
        %v5101 = vadd.f32 %v5091, %v5097
        %v5102 = vadd.f32 %v5092, %v5097
        %v5103 = vld [vmem:[%s14] sm:$0x1]
        %v5104 = vld [vmem:[%s15] sm:$0x1]
        %5105 = vadd.xlane.f32.xlu0 %v5099
        %v5106 = vpop.xlane.xlu0 %5105
        %5107 = vadd.xlane.f32.xlu0 %v5100
        %v5108 = vpop.xlane.xlu0 %5107
        %5109 = vadd.xlane.f32.xlu0 %v5101
        %v5110 = vpop.xlane.xlu0 %5109
        %5111 = vadd.xlane.f32.xlu0 %v5102
        %v5112 = vpop.xlane.xlu0 %5111
        %v5113 = vmul.f32 %v5106, %v2134
        %v5114 = vmul.f32 %v5108, %v2134
        %v5115 = vmul.f32 %v5110, %v2134
        %v5116 = vmul.f32 %v5112, %v2134
        %v5117 = vsub.f32 %v5099, %v5113
        %v5118 = vsub.f32 %v5100, %v5114
        %v5119 = vsub.f32 %v5101, %v5115
        %v5120 = vsub.f32 %v5102, %v5116
        %v5121 = vmul.f32 %v5117, %v5117
        %v5122 = vmul.f32 %v5118, %v5118
        %v5123 = vmul.f32 %v5119, %v5119
        %v5124 = vmul.f32 %v5120, %v5120
        %5125 = vadd.xlane.f32.xlu0 %v5121
        %v5126 = vpop.xlane.xlu0 %5125
        %5127 = vadd.xlane.f32.xlu0 %v5122
        %v5128 = vpop.xlane.xlu0 %5127
        %5129 = vadd.xlane.f32.xlu0 %v5123
        %v5130 = vpop.xlane.xlu0 %5129
        %5131 = vadd.xlane.f32.xlu0 %v5124
        %v5132 = vpop.xlane.xlu0 %5131
        %v5133 = vmul.f32 %v5126, %v2134
        %v5134 = vmul.f32 %v5128, %v2134
        %v5135 = vmul.f32 %v5130, %v2134
        %v5136 = vmul.f32 %v5132, %v2134
        %v5137 = vadd.f32 %v5133, 1e-05
        %v5138 = vadd.f32 %v5134, 1e-05
        %v5139 = vadd.f32 %v5135, 1e-05
        %v5140 = vadd.f32 %v5136, 1e-05
        %v5141 = vrsqrt.pop %v5137
        %v5142 = vrsqrt.pop %v5138
        %v5143 = vrsqrt.pop %v5139
        %v5144 = vrsqrt.pop %v5140
        %v5145 = vmul.f32 %v5117, %v5141
        %v5146 = vmul.f32 %v5118, %v5142
        %v5147 = vmul.f32 %v5119, %v5143
        %v5148 = vmul.f32 %v5120, %v5144
        %v5150 = vlaneseq
        %v5151 = vshrl.u32 %v5150, 7
        %v5152 = vsub.s32 0, %v5151
        %v5153 = vrot.slane %v5103, %v5152
        %v5155 = vmul.f32 %v5145, %v5153
        %v5156 = vmul.f32 %v5146, %v5153
        %v5157 = vmul.f32 %v5147, %v5153
        %v5158 = vmul.f32 %v5148, %v5153
        %v5160 = vlaneseq
        %v5161 = vshrl.u32 %v5160, 7
        %v5162 = vsub.s32 0, %v5161
        %v5163 = vrot.slane %v5104, %v5162
        %v5165 = vadd.f32 %v5155, %v5163
        %v5166 = vadd.f32 %v5156, %v5163
        %v5167 = vadd.f32 %v5157, %v5163
        %v5168 = vadd.f32 %v5158, %v5163
        %v5169 = vpack.c.bf16 %v5166, %v5165
        %v5170 = vpack.c.bf16 %v5168, %v5167
        %v5171 = vld [vmem:[#allocation13] sm:$0xf]
        %v5172 = vld [vmem:[#allocation13 + $0x4] sm:$0xf]
        %v5173 = vld [vmem:[#allocation13 + $0x8] sm:$0xf]
        %v5174 = vld [vmem:[#allocation13 + $0xc] sm:$0xf]
        %v5175 = vld [vmem:[#allocation13 + $0x10] sm:$0xf]
        %v5176 = vld [vmem:[#allocation13 + $0x14] sm:$0xf]
        %v5177 = vld [vmem:[#allocation13 + $0x18] sm:$0xf]
        %v5178 = vld [vmem:[#allocation13 + $0x1c] sm:$0xf]
        %v5179 = vld [vmem:[#allocation13 + $0x20] sm:$0xf]
        %v5180 = vld [vmem:[#allocation13 + $0x24] sm:$0xf]
        %v5181 = vld [vmem:[#allocation13 + $0x28] sm:$0xf]
        %v5182 = vld [vmem:[#allocation13 + $0x2c] sm:$0xf]
        %v5183 = vld [vmem:[#allocation13 + $0x30] sm:$0xf]
        %v5184 = vld [vmem:[#allocation13 + $0x34] sm:$0xf]
        %v5185 = vld [vmem:[#allocation13 + $0x38] sm:$0xf]
        %v5186 = vld [vmem:[#allocation13 + $0x3c] sm:$0xf]
        %v5187 = vld [vmem:[%s17] sm:$0x1]
        %v5189 = vlaneseq
        %v5190 = vshrl.u32 %v5189, 7
        %v5191 = vsub.s32 0, %v5190
        %v5192 = vrot.slane %v5187, %v5191
        %v5210 = vunpack.c.l.b16 %v5171
        %v5211 = vunpack.c.l.b16 %v5172
        %v5212 = vunpack.c.l.b16 %v5173
        %v5213 = vunpack.c.l.b16 %v5174
        %v5214 = vunpack.c.l.b16 %v5175
        %v5215 = vunpack.c.l.b16 %v5176
        %v5216 = vunpack.c.l.b16 %v5177
        %v5217 = vunpack.c.l.b16 %v5178
        %v5218 = vunpack.c.l.b16 %v5179
        %v5219 = vunpack.c.l.b16 %v5180
        %v5220 = vunpack.c.l.b16 %v5181
        %v5221 = vunpack.c.l.b16 %v5182
        %v5222 = vunpack.c.l.b16 %v5183
        %v5223 = vunpack.c.l.b16 %v5184
        %v5224 = vunpack.c.l.b16 %v5185
        %v5225 = vunpack.c.l.b16 %v5186
        %v5226 = vpack.c.b16 %v5211, %v5210
        %v5227 = vpack.c.b16 %v5213, %v5212
        %v5228 = vpack.c.b16 %v5215, %v5214
        %v5229 = vpack.c.b16 %v5217, %v5216
        %v5230 = vpack.c.b16 %v5219, %v5218
        %v5231 = vpack.c.b16 %v5221, %v5220
        %v5232 = vpack.c.b16 %v5223, %v5222
        %v5233 = vpack.c.b16 %v5225, %v5224
        %5242 = vmatprep.subr.bf16.mxu0 0
        %5243 = vmatpush1.bf16.msra.mxu0 %v5233
        %5244 = vmatprep.subr.bf16.mxu0 0
        %5245 = vmatpush1.bf16.msra.mxu0 %v5232
        %5246 = vmatprep.subr.bf16.mxu0 0
        %5247 = vmatpush1.bf16.msra.mxu0 %v5231
        %5248 = vmatprep.subr.bf16.mxu0 0
        %5249 = vmatpush1.bf16.msra.mxu0 %v5230
        %5250 = vmatprep.subr.bf16.mxu0 0
        %5251 = vmatpush1.bf16.msra.mxu0 %v5229
        %5252 = vmatprep.subr.bf16.mxu0 0
        %5253 = vmatpush1.bf16.msra.mxu0 %v5228
        %5254 = vmatprep.subr.bf16.mxu0 0
        %5255 = vmatpush1.bf16.msra.mxu0 %v5227
        %5256 = vmatprep.subr.bf16.mxu0 0
        %5257 = vmatpush1.bf16.msra.mxu0 %v5226
        %5258 = vmatprep.subr.bf16.mxu0 0
        %5259 = vmatpush2.bf16.msra.mxu0 0
        %5260 = vmatprep.subr.bf16.mxu0 0
        %5261 = vmatpush2.bf16.msra.mxu0 0
        %5262 = vmatprep.subr.bf16.mxu0 0
        %5263 = vmatpush2.bf16.msra.mxu0 0
        %5264 = vmatprep.subr.bf16.mxu0 0
        %5265 = vmatpush2.bf16.msra.mxu0 0
        %5266 = vmatprep.subr.bf16.mxu0 0
        %5267 = vmatpush2.bf16.msra.mxu0 0
        %5268 = vmatprep.subr.bf16.mxu0 0
        %5269 = vmatpush2.bf16.msra.mxu0 0
        %5270 = vmatprep.subr.bf16.mxu0 0
        %5271 = vmatpush2.bf16.msra.mxu0 0
        %5272 = vmatprep.subr.bf16.mxu0 0
        %5273 = vmatpush2.bf16.msra.mxu0 0
        %5274 = vmatprep.mubr.bf16.mxu0 0
        %5275 = vmatmul.mubr.bf16.gmra.mxu0 %v5169
        %v5276 = vpop.f32.mrf.mxu0
        %v5277 = vadd.f32 %v5192, %v5276
        %v5278 = vpop.f32.mrf.mxu0
        %v5279 = vpop.f32.mrf.mxu0
        %v5280 = vadd.f32 %v5192, %v5279
        %v5281 = vpop.f32.mrf.mxu0
        %5282 = vmatprep.mubr.bf16.mxu0 0
        %5283 = vmatmul.mubr.bf16.gmra.mxu0 %v5170
        %v5284 = vpop.f32.mrf.mxu0
        %v5285 = vadd.f32 %v5192, %v5284
        %v5286 = vpop.f32.mrf.mxu0
        %v5287 = vpop.f32.mrf.mxu0
        %v5288 = vadd.f32 %v5192, %v5287
        %v5289 = vpop.f32.mrf.mxu0
        %5290 = vdwg.mxu0
        %5291 = vst [vmem:[%s671] sm:$0xff] %v5277
        %5292 = vst [vmem:[%s671 + $0x8] sm:$0xff] %v5280
        %5293 = vst [vmem:[%s671 + $0x10] sm:$0xff] %v5285
        %5294 = vst [vmem:[%s671 + $0x18] sm:$0xff] %v5288
        %s5295 = sand.u32 %s427, 1
        %s5296 = scalar_lea.sflag [#allocation4], %s5295
        %s5297 = sand.u32 %s427, 1
        %s5298 = smul.addr %s5297, 32
        %s5299 = scalar_lea.vmem [#allocation14], %s5298
        // Predicated region
        $region121: #{tpu_custom_call.1} parent=91 // pred_check
          %p5300 = pneg %p437
        $region122: #{tpu_custom_call.1} parent=91 // pred_check_branch
          %5302 = sbr.rel (%p5300) target = $region124
        $region123: #{tpu_custom_call.1} parent=91 // pred_region
          %s5303 = smul.u32 4, %s36
          %s5305 = ssub.s32 512, 512
          %5306 = vsyncadd %s5296, %s5305
          %s5307 = smul.addr %s5303, 128
          %s5308 = scalar_lea.hbm %s18, %s5307
          %s5309 = sshll.u32 %s5299, 4
          %s5310 = int_to_ptr.vmem [resolvable:$true] %s5309
          %5315 = dma.vmem_to_hbm [thread:$0]  %s5310, 512, %s5308, %s5296, 128, 128, 8
        $region124: #{tpu_custom_call.1} parent=91 // pred_fallthru
          _
      $region92: #{tpu_custom_call.1} parent=5 // pred_fallthru
        _
      %p5316 = scmp.le.s32.totalorder 2, %s31
      // Predicated region
      $region125: #{tpu_custom_call.1} parent=5 // pred_check
        %p5317 = pneg %p5316
      $region126: #{tpu_custom_call.1} parent=5 // pred_check_branch
        %5319 = sbr.rel (%p5317) target = $region128
      $region127: #{tpu_custom_call.1} parent=5 // pred_region
        %s5320 = ssub.s32 %s31, 2
        // Predicated region
        $region129: #{tpu_custom_call.1} parent=127 // pred_check
          %p5321 = pneg %p443
        $region130: #{tpu_custom_call.1} parent=127 // pred_check_branch
          %5323 = sbr.rel (%p5321) target = $region132
        $region131: #{tpu_custom_call.1} parent=127 // pred_region
          %s5324 = sand.u32 %s428, 1
          %s5325 = scalar_lea.sflag [#allocation4], %s5324
          %s5326 = sand.u32 %s428, 1
          %s5327 = smul.addr %s5326, 32
          %s5328 = scalar_lea.vmem [#allocation14], %s5327
          %5329 = dma.done %s5325, 512
        $region132: #{tpu_custom_call.1} parent=127 // pred_fallthru
          _
      $region128: #{tpu_custom_call.1} parent=5 // pred_fallthru
        _
    $region6: #{tpu_custom_call.1} parent=1 // loop_footer
      %s35 = sadd.s32 1, %s31
    $region7: #{tpu_custom_call.1} parent=1 // loop_footer_branch
      %30 = sbr.rel target = $region3
    $region8: #{tpu_custom_call.1} parent=1 // loop_exit
      _
    %5330 = vsyncpa [#allocation3], 1
    %s5331 = scalar_lea.sflag [#allocation3], 1
    %5332 = vsyncpa %s5331, 1
    %5333 = vsyncpa [#allocation6], 1
    %5334 = vsyncpa [#allocation9], 1
    %5335 = vsyncpa [#allocation12], 1
    %5336 = vsyncpa [#allocation4], 1
    %s5337 = scalar_lea.sflag [#allocation4], 1
    %5338 = vsyncpa %s5337, 1

</llo_original>
